<compile_context>
chip_gen: v7x
topology: tpu7x:2x2x1
jax: 0.10.0
libtpu: 0.0.40
codegen_flags: <defaults>
</compile_context>

<pallas_src>
import functools

import numpy as np
import jax
import jax.numpy as jnp
from jax import lax
from jax.experimental import pallas as pl
from jax.experimental.pallas import tpu as pltpu

IN_FEATS = 7       # 3 (Delta_XYT) + 3 (std_xyt) + 1 (distance) -- forced by E_EdgeConv.alpha
OUT_FEATS = 4
LN_EPS = 1e-5


# ----------------------------------------------------------------------------
# Fused kernel (one grid step == one independent forward instance):
# in-kernel edge gathers + E_EdgeConv message + alpha Linear + scatter-sum +
# sigmoid + sum_nodes + min-max norm + Transformer(1 enc/1 dec) + classify3.
# ----------------------------------------------------------------------------
def net_classifier2_kernel(nx_ref, srcc_ref, dstc_ref, dstr_ref, gid_ref,
                           wga_ref, wgd_ref, bga_ref,
                           wx4_ref, bx4_ref, wsq_ref,
                           wds21_ref, bds21_ref, wckv_ref, bckv_ref,
                           wff1_ref, bff1_ref, wff2_ref, vec_ref,
                           wc_ref, bc_ref, out_ref):
    # ---------------- graph part ----------------
    node_x = nx_ref[...]                                      # [N,3] this instance
    N = node_x.shape[0]
    E = srcc_ref.shape[0]
    B = out_ref.shape[0]                                      # num_graphs
    F = wx4_ref.shape[0]                                      # d_model == in_feats
    inv_e = 1.0 / float(E)

    # 0/1 gather / scatter / graph-sum masks built in VMEM from int32 index rows
    # (no [E,N]/[N,E]/[B,N] HBM traffic, no wrapper-side gathers).  f32, exact.
    src_oh = (srcc_ref[...] == lax.broadcasted_iota(jnp.int32, (E, N), 1)
              ).astype(jnp.float32)                           # [E,N]
    dst_oh = (dstc_ref[...] == lax.broadcasted_iota(jnp.int32, (E, N), 1)
              ).astype(jnp.float32)                           # [E,N]
    scat = (dstr_ref[...] == lax.broadcasted_iota(jnp.int32, (N, E), 0)
            ).astype(jnp.float32)                             # [N,E]
    gsum = (gid_ref[...] == lax.broadcasted_iota(jnp.int32, (B, N), 0)
            ).astype(jnp.float32)                             # [B,N]

    xs = jnp.dot(src_oh, node_x, preferred_element_type=jnp.float32)   # [E,3] src feats
    xd = jnp.dot(dst_oh, node_x, preferred_element_type=jnp.float32)   # [E,3] dst feats

    delta = xd - xs                                           # Delta_XYT       [E,3]
    mean_dst = jnp.sum(xd, axis=0, keepdims=True) * inv_e     # mean of dst     [1,3]
    std = jnp.sqrt(jnp.square(xs - mean_dst) * inv_e)         # "std" per edge  [E,3]
    dist = jnp.sqrt(jnp.sum(jnp.square(xs - xd), axis=1, keepdims=True))  #     [E,1]

    # alpha Linear: feat @ W.T == (delta||std) @ Wds + dist * We + b.  One dot for
    # the delta/std pair (lane concat goes to the idle XLU slot).
    ds = jnp.concatenate([delta, std], axis=1)                # [E,6]
    msg = (jnp.dot(ds, wga_ref[...], preferred_element_type=jnp.float32)
           + dist * wgd_ref[...] + bga_ref[...])              # [E,F]

    node = jnp.dot(scat, msg, preferred_element_type=jnp.float32)       # fn.sum -> [N,F]
    h = pl.reciprocal(1.0 + jnp.exp(-node), approx=True)                # sigmoid (EUP)
    hg = jnp.dot(gsum, h, preferred_element_type=jnp.float32)           # dgl.sum_nodes [B,F]

    mn = jnp.min(hg, keepdims=True)                           # global min over [B,F]
    mx = jnp.max(hg, keepdims=True)
    rng = mx - mn
    safe_rng = jnp.where(rng > 0.0, rng, 1.0)
    # exact divide: this single scalar feeds every downstream activation.
    x = jnp.where(rng > 0.0, (hg - mn) / safe_rng, 0.0)       # normalised [B,F], stays in VMEM

    # ---------------- transformer part ----------------
    # Lazy ref indexing (no whole-stack loads): wsq_ref = [cross-Q, enc-out,
    # dec-self-out, dec-cross-out] square weights; vec_ref = all F-sized biases /
    # layernorm params.
    def sq(i):
        return wsq_ref[i]                 # [F,F] loaded at point of use

    def row(i):
        return vec_ref[i:i + 1, :]        # [1,F] loaded at point of use

    def layer_norm(z, gi, bi):
        mu = jnp.mean(z, axis=-1, keepdims=True)
        var = jnp.mean(jnp.square(z - mu), axis=-1, keepdims=True)
        return (z - mu) * lax.rsqrt(var + LN_EPS) * row(gi) + row(bi)   # rsqrt -> EUP

    def attend(q, k, v):
        # nhead == d_model  =>  head_dim == 1 (scale = 1); heads live on lanes.
        scores = q[:, None, :] * k[None, :, :]                # [Sq,Sk,H]
        m = jnp.max(scores, axis=1, keepdims=True)
        p = jnp.exp(scores - m)
        pv = jnp.sum(p * v[None, :, :], axis=1)               # [Sq,H]
        return pv * pl.reciprocal(jnp.sum(p, axis=1), approx=True)      # denom on EUP
        # TODO(synk): if S (num_graphs) grows, switch to a flash-style online softmax.

    # Fused shared-input projections on x: [h3 | enc-Q | enc-K | enc-V] in one dot.
    xp = jnp.dot(x, wx4_ref[...], preferred_element_type=jnp.float32) + bx4_ref[...]  # [B,4F]
    tgt = xp[:, 0:F]                                          # hiddenLayer3(normalised)
    q_e, k_e, v_e = xp[:, F:2 * F], xp[:, 2 * F:3 * F], xp[:, 3 * F:4 * F]

    # ---- encoder layer (post-norm) ----
    sa = jnp.dot(attend(q_e, k_e, v_e), sq(1),
                 preferred_element_type=jnp.float32) + row(1)
    src = layer_norm(x + sa, 6, 7)
    ff = jnp.dot(
        jnp.maximum(jnp.dot(src, wff1_ref[0], preferred_element_type=jnp.float32)
                    + bff1_ref[0:1, :], 0.0),
        wff2_ref[0], preferred_element_type=jnp.float32) + row(4)
    src = layer_norm(src + ff, 8, 9)
    memory = layer_norm(src, 10, 11)                          # encoder final norm

    # ---- decoder layer (post-norm) ----
    y = tgt
    # self-attention: fused QKV in one dot
    yqkv = jnp.dot(y, wds21_ref[...], preferred_element_type=jnp.float32) + bds21_ref[...]
    sa = jnp.dot(attend(yqkv[:, 0:F], yqkv[:, F:2 * F], yqkv[:, 2 * F:3 * F]), sq(2),
                 preferred_element_type=jnp.float32) + row(2)
    y = layer_norm(y + sa, 12, 13)
    # cross-attention: Q from y, fused K/V from encoder memory
    q_c = jnp.dot(y, sq(0), preferred_element_type=jnp.float32) + row(0)
    kv = jnp.dot(memory, wckv_ref[...], preferred_element_type=jnp.float32) + bckv_ref[...]
    ca = jnp.dot(attend(q_c, kv[:, 0:F], kv[:, F:2 * F]), sq(3),
                 preferred_element_type=jnp.float32) + row(3)
    y = layer_norm(y + ca, 14, 15)
    ff = jnp.dot(
        jnp.maximum(jnp.dot(y, wff1_ref[1], preferred_element_type=jnp.float32)
                    + bff1_ref[1:2, :], 0.0),
        wff2_ref[1], preferred_element_type=jnp.float32) + row(5)
    y = layer_norm(y + ff, 16, 17)
    y = layer_norm(y, 18, 19)                                 # decoder final norm

    # classify3 (no lane padding; [B,OUT_FEATS] masked store is neutral here).
    out_ref[...] = jnp.dot(y, wc_ref[...], preferred_element_type=jnp.float32) + bc_ref[...]


# ----------------------------------------------------------------------------
# Parameter init (raw, PyTorch-layout) and ONE-TIME packing for the kernel.
# ----------------------------------------------------------------------------
def init_params(key, in_feats, out_feats):
    keys = iter(jax.random.split(key, 48))
    F = in_feats

    def nrm(shape, scale=0.1):
        return scale * jax.random.normal(next(keys), shape, dtype=jnp.float32)

    p = {
        "alpha_w": nrm((F, F)), "alpha_b": nrm((F,)),
        "h3_w": nrm((F, F)), "h3_b": nrm((F,)),
        "cls_w": nrm((out_feats, F)), "cls_b": nrm((out_feats,)),
        "enc_in_w": nrm((3 * F, F)), "enc_in_b": nrm((3 * F,)),
        "enc_out_w": nrm((F, F)), "enc_out_b": nrm((F,)),
        "enc_l1_w": nrm((2 * F, F)), "enc_l1_b": nrm((2 * F,)),
        "enc_l2_w": nrm((F, 2 * F)), "enc_l2_b": nrm((F,)),
        "dec_s_in_w": nrm((3 * F, F)), "dec_s_in_b": nrm((3 * F,)),
        "dec_s_out_w": nrm((F, F)), "dec_s_out_b": nrm((F,)),
        "dec_c_in_w": nrm((3 * F, F)), "dec_c_in_b": nrm((3 * F,)),
        "dec_c_out_w": nrm((F, F)), "dec_c_out_b": nrm((F,)),
        "dec_l1_w": nrm((2 * F, F)), "dec_l1_b": nrm((2 * F,)),
        "dec_l2_w": nrm((F, 2 * F)), "dec_l2_b": nrm((F,)),
    }
    for name in ("enc_n1", "enc_n2", "enc_nf", "dec_n1", "dec_n2", "dec_n3", "dec_nf"):
        p[name + "_g"] = 1.0 + nrm((F,), 0.05)
        p[name + "_b"] = nrm((F,), 0.05)
    return p


def pack_params(p, in_feats, out_feats):
    """Pack once (outside the per-call path) into the fused tensors the kernel expects."""
    F = in_feats
    at = p["alpha_w"].T                                         # [F,F], y = feat @ at

    packed = {
        # E_EdgeConv alpha, split as (delta||std) block, dist row, bias.
        "wga": at[0:6], "wgd": at[6:7], "bga": p["alpha_b"].reshape(1, F),
        # fused x-projections: [h3 | enc-Q | enc-K | enc-V]  (y = x @ w)
        "wx4": jnp.concatenate([p["h3_w"].T, p["enc_in_w"].T], axis=1),       # [F,4F]
        "bx4": jnp.concatenate([p["h3_b"], p["enc_in_b"]]).reshape(1, 4 * F), # [1,4F]
        # square weights: 0 = dec-cross-Q, 1 = enc-out, 2 = dec-self-out, 3 = dec-cross-out
        "wsq": jnp.stack([p["dec_c_in_w"][0:F].T, p["enc_out_w"].T,
                          p["dec_s_out_w"].T, p["dec_c_out_w"].T]),           # [4,F,F]
        # decoder self-attn fused QKV, cross-attn fused KV
        "wds21": p["dec_s_in_w"].T,                                           # [F,3F]
        "bds21": p["dec_s_in_b"].reshape(1, 3 * F),
        "wckv": p["dec_c_in_w"][F:3 * F].T,                                   # [F,2F]
        "bckv": p["dec_c_in_b"][F:3 * F].reshape(1, 2 * F),
        # feed-forward (enc, dec)
        "wff1": jnp.stack([p["enc_l1_w"].T, p["dec_l1_w"].T]),                # [2,F,2F]
        "bff1": jnp.stack([p["enc_l1_b"], p["dec_l1_b"]]),                    # [2,2F]
        "wff2": jnp.stack([p["enc_l2_w"].T, p["dec_l2_w"].T]),                # [2,2F,F]
        # all F-sized biases / layernorm params (indexed lazily in the kernel)
        "vec": jnp.stack([
            p["dec_c_in_b"][0:F],                                # 0  cross-attn Q bias
            p["enc_out_b"], p["dec_s_out_b"], p["dec_c_out_b"],  # 1-3 out-proj biases
            p["enc_l2_b"], p["dec_l2_b"],                        # 4,5 FFN linear2 biases
            p["enc_n1_g"], p["enc_n1_b"],                        # 6,7
            p["enc_n2_g"], p["enc_n2_b"],                        # 8,9
            p["enc_nf_g"], p["enc_nf_b"],                        # 10,11
            p["dec_n1_g"], p["dec_n1_b"],                        # 12,13
            p["dec_n2_g"], p["dec_n2_b"],                        # 14,15
            p["dec_n3_g"], p["dec_n3_b"],                        # 16,17
            p["dec_nf_g"], p["dec_nf_b"],                        # 18,19
        ]),                                                      # [20,F]
        # classify3
        "wc": p["cls_w"].T,                                      # [F,OUT_FEATS]
        "bc": p["cls_b"].reshape(1, out_feats),
    }
    return packed


# ----------------------------------------------------------------------------
# Forward wrapper: ONE pallas_call for K independent instances (grid over K,
# "parallel" -> shards across TensorCores on v7x).
# ----------------------------------------------------------------------------
def _shared_spec(arr):
    zeros = (0,) * arr.ndim
    return pl.BlockSpec(arr.shape, lambda k, _z=zeros: _z)


@functools.partial(jax.jit, static_argnames=("num_graphs",))
def net_classifier2_forward_batched(packed, node_x_b, src_idx, dst_idx, graph_ids,
                                    num_graphs):
    """node_x_b: [K, N, 3]; topology (src/dst/graph ids) shared across instances."""
    K, N, _ = node_x_b.shape
    E = src_idx.shape[0]
    src_col = src_idx.reshape(E, 1).astype(jnp.int32)
    dst_col = dst_idx.reshape(E, 1).astype(jnp.int32)
    dst_row = dst_idx.reshape(1, E).astype(jnp.int32)
    gid_row = graph_ids.reshape(1, N).astype(jnp.int32)

    weights = (packed["wga"], packed["wgd"], packed["bga"],
               packed["wx4"], packed["bx4"], packed["wsq"],
               packed["wds21"], packed["bds21"], packed["wckv"], packed["bckv"],
               packed["wff1"], packed["bff1"], packed["wff2"], packed["vec"],
               packed["wc"], packed["bc"])

    in_specs = ([pl.BlockSpec((None, N, 3), lambda k: (k, 0, 0))]        # per-instance node_x
                + [_shared_spec(a) for a in (src_col, dst_col, dst_row, gid_row)]
                + [_shared_spec(w) for w in weights])

    out = pl.pallas_call(
        net_classifier2_kernel,
        grid=(K,),
        out_shape=jax.ShapeDtypeStruct((K, num_graphs, OUT_FEATS), jnp.float32),
        in_specs=in_specs,
        out_specs=pl.BlockSpec((None, num_graphs, OUT_FEATS), lambda k: (k, 0, 0)),
        compiler_params=pltpu.CompilerParams(dimension_semantics=("parallel",)),
    )(node_x_b, src_col, dst_col, dst_row, gid_row, *weights)
    return out                                                  # [K, num_graphs, OUT_FEATS]


def net_classifier2_forward(packed, node_x, src_idx, dst_idx, graph_ids, num_graphs):
    """Single-instance path with the PyTorch output shape (seq, batch=1, out_feats)."""
    out = net_classifier2_forward_batched(packed, node_x[None], src_idx, dst_idx,
                                          graph_ids, num_graphs)
    return out.reshape(num_graphs, 1, OUT_FEATS)               # bitcast reshape


# ----------------------------------------------------------------------------
# Pure-JAX f32 reference (same math, no Pallas) for a numerical sanity check.
# ----------------------------------------------------------------------------
def reference_forward(p, node_x, src_idx, dst_idx, graph_ids, num_graphs):
    F = IN_FEATS
    N = node_x.shape[0]
    xs, xd = node_x[src_idx], node_x[dst_idx]
    E = xs.shape[0]
    delta = xd - xs
    mean_dst = jnp.sum(xd, axis=0) / E
    std = jnp.sqrt(jnp.square(xs - mean_dst) / E)
    dist = jnp.sqrt(jnp.sum(jnp.square(xs - xd), axis=1, keepdims=True))
    feat = jnp.concatenate([delta, std, dist], axis=1)
    msg = feat @ p["alpha_w"].T + p["alpha_b"]
    scat = (dst_idx[None, :] == jnp.arange(N)[:, None]).astype(jnp.float32)
    gsum = (graph_ids[None, :] == jnp.arange(num_graphs)[:, None]).astype(jnp.float32)
    h = jax.nn.sigmoid(scat @ msg)
    hg = gsum @ h
    mn, mx = jnp.min(hg), jnp.max(hg)
    rng = mx - mn
    xn = jnp.where(rng > 0, (hg - mn) / jnp.where(rng > 0, rng, 1.0), 0.0)

    def lin(z, w, b):
        return z @ w.T + b

    def ln(z, g, b):
        mu = z.mean(-1, keepdims=True)
        var = ((z - mu) ** 2).mean(-1, keepdims=True)
        return (z - mu) / jnp.sqrt(var + LN_EPS) * g + b

    def mha(qi, kvi, inw, inb, ow, ob):
        q = qi @ inw[0:F].T + inb[0:F]
        k = kvi @ inw[F:2 * F].T + inb[F:2 * F]
        v = kvi @ inw[2 * F:].T + inb[2 * F:]
        attn = jax.nn.softmax(q[:, None, :] * k[None, :, :], axis=1)
        ctx = jnp.sum(attn * v[None, :, :], axis=1)
        return ctx @ ow.T + ob

    src = xn
    tgt = lin(xn, p["h3_w"], p["h3_b"])
    sa = mha(src, src, p["enc_in_w"], p["enc_in_b"], p["enc_out_w"], p["enc_out_b"])
    src = ln(src + sa, p["enc_n1_g"], p["enc_n1_b"])
    ff = lin(jax.nn.relu(lin(src, p["enc_l1_w"], p["enc_l1_b"])), p["enc_l2_w"], p["enc_l2_b"])
    src = ln(src + ff, p["enc_n2_g"], p["enc_n2_b"])
    mem = ln(src, p["enc_nf_g"], p["enc_nf_b"])
    y = tgt
    sa = mha(y, y, p["dec_s_in_w"], p["dec_s_in_b"], p["dec_s_out_w"], p["dec_s_out_b"])
    y = ln(y + sa, p["dec_n1_g"], p["dec_n1_b"])
    ca = mha(y, mem, p["dec_c_in_w"], p["dec_c_in_b"], p["dec_c_out_w"], p["dec_c_out_b"])
    y = ln(y + ca, p["dec_n2_g"], p["dec_n2_b"])
    ff = lin(jax.nn.relu(lin(y, p["dec_l1_w"], p["dec_l1_b"])), p["dec_l2_w"], p["dec_l2_b"])
    y = ln(y + ff, p["dec_n3_g"], p["dec_n3_b"])
    y = ln(y, p["dec_nf_g"], p["dec_nf_b"])
    return lin(y, p["cls_w"], p["cls_b"]).reshape(num_graphs, 1, OUT_FEATS)


if __name__ == "__main__":
    key = jax.random.PRNGKey(0)
    k_param, k_x = jax.random.split(key)
    params = init_params(k_param, IN_FEATS, OUT_FEATS)
    packed = pack_params(params, IN_FEATS, OUT_FEATS)   # packed ONCE, reused every forward

    # K=4 independent forward instances, each: two graphs, 4 nodes each, fully
    # connected (no self loops): N=8 nodes, E=24 edges, shared topology.
    nodes_per_graph, num_graphs, num_instances = 4, 2, 4
    N = nodes_per_graph * num_graphs
    node_x_b = jax.random.normal(k_x, (num_instances, N, 3), dtype=jnp.float32)

    src_list, dst_list, gid = [], [], []
    for g in range(num_graphs):
        base = g * nodes_per_graph
        for u in range(nodes_per_graph):
            gid.append(g)
            for v in range(nodes_per_graph):
                if u != v:
                    src_list.append(base + u)
                    dst_list.append(base + v)
    src_idx = jnp.array(src_list, dtype=jnp.int32)
    dst_idx = jnp.array(dst_list, dtype=jnp.int32)
    graph_ids = jnp.array(gid, dtype=jnp.int32)

    out_b = jax.block_until_ready(net_classifier2_forward_batched(
        packed, node_x_b, src_idx, dst_idx, graph_ids, num_graphs))
    assert out_b.shape == (num_instances, num_graphs, OUT_FEATS)
    assert bool(jnp.all(jnp.isfinite(out_b)))

    # Per-instance check against the exact f32 reference.  Kernel is all-f32 now;
    # the remaining delta is the EUP approx-reciprocal (sigmoid / softmax denom)
    # and rsqrt paths.
    ok = True
    max_diff = 0.0
    for i in range(num_instances):
        ref = reference_forward(params, node_x_b[i], src_idx, dst_idx, graph_ids, num_graphs)
        got = np.asarray(out_b[i]).reshape(num_graphs, 1, OUT_FEATS)
        max_diff = max(max_diff, float(np.max(np.abs(got - np.asarray(ref)))))
        ok = ok and np.allclose(got, np.asarray(ref), rtol=1e-2, atol=1e-2)

    if ok:
        print("KERNEL_OK")
    else:
        print("mismatch, max abs diff =", max_diff)
</pallas_src>

<mosaic_0001>
module attributes {stable_mosaic.version = 11 : i64} {
  func.func @net_classifier2_kernel(%arg0: i32, %arg1: memref<1x8x3xf32, #tpu.memory_space<vmem>>, %arg2: memref<24x1xi32, #tpu.memory_space<vmem>>, %arg3: memref<24x1xi32, #tpu.memory_space<vmem>>, %arg4: memref<1x24xi32, #tpu.memory_space<vmem>>, %arg5: memref<1x8xi32, #tpu.memory_space<vmem>>, %arg6: memref<6x7xf32, #tpu.memory_space<vmem>>, %arg7: memref<1x7xf32, #tpu.memory_space<vmem>>, %arg8: memref<1x7xf32, #tpu.memory_space<vmem>>, %arg9: memref<7x28xf32, #tpu.memory_space<vmem>>, %arg10: memref<1x28xf32, #tpu.memory_space<vmem>>, %arg11: memref<4x7x7xf32, #tpu.memory_space<vmem>>, %arg12: memref<7x21xf32, #tpu.memory_space<vmem>>, %arg13: memref<1x21xf32, #tpu.memory_space<vmem>>, %arg14: memref<7x14xf32, #tpu.memory_space<vmem>>, %arg15: memref<1x14xf32, #tpu.memory_space<vmem>>, %arg16: memref<2x7x14xf32, #tpu.memory_space<vmem>>, %arg17: memref<2x14xf32, #tpu.memory_space<vmem>>, %arg18: memref<2x14x7xf32, #tpu.memory_space<vmem>>, %arg19: memref<20x7xf32, #tpu.memory_space<vmem>>, %arg20: memref<7x4xf32, #tpu.memory_space<vmem>>, %arg21: memref<1x4xf32, #tpu.memory_space<vmem>>, %arg22: memref<1x2x4xf32, #tpu.memory_space<vmem>>) attributes {dimension_semantics = [#tpu.dimension_semantics<parallel>], iteration_bounds = array<i64: 4>, scalar_prefetch = 0 : i64, scratch_operands = 0 : i64, tpu.core_type = #tpu.core_type<tc>, window_params = [{transform_indices = @transform_0, window_bounds = array<i64: 1, 8, 3>}, {pipeline_mode = #tpu.pipeline_mode<synchronous>, transform_indices = @transform_1, window_bounds = array<i64: 24, 1>}, {pipeline_mode = #tpu.pipeline_mode<synchronous>, transform_indices = @transform_2, window_bounds = array<i64: 24, 1>}, {pipeline_mode = #tpu.pipeline_mode<synchronous>, transform_indices = @transform_3, window_bounds = array<i64: 1, 24>}, {pipeline_mode = #tpu.pipeline_mode<synchronous>, transform_indices = @transform_4, window_bounds = array<i64: 1, 8>}, {pipeline_mode = #tpu.pipeline_mode<synchronous>, transform_indices = @transform_5, window_bounds = array<i64: 6, 7>}, {pipeline_mode = #tpu.pipeline_mode<synchronous>, transform_indices = @transform_6, window_bounds = array<i64: 1, 7>}, {pipeline_mode = #tpu.pipeline_mode<synchronous>, transform_indices = @transform_7, window_bounds = array<i64: 1, 7>}, {pipeline_mode = #tpu.pipeline_mode<synchronous>, transform_indices = @transform_8, window_bounds = array<i64: 7, 28>}, {pipeline_mode = #tpu.pipeline_mode<synchronous>, transform_indices = @transform_9, window_bounds = array<i64: 1, 28>}, {pipeline_mode = #tpu.pipeline_mode<synchronous>, transform_indices = @transform_10, window_bounds = array<i64: 4, 7, 7>}, {pipeline_mode = #tpu.pipeline_mode<synchronous>, transform_indices = @transform_11, window_bounds = array<i64: 7, 21>}, {pipeline_mode = #tpu.pipeline_mode<synchronous>, transform_indices = @transform_12, window_bounds = array<i64: 1, 21>}, {pipeline_mode = #tpu.pipeline_mode<synchronous>, transform_indices = @transform_13, window_bounds = array<i64: 7, 14>}, {pipeline_mode = #tpu.pipeline_mode<synchronous>, transform_indices = @transform_14, window_bounds = array<i64: 1, 14>}, {pipeline_mode = #tpu.pipeline_mode<synchronous>, transform_indices = @transform_15, window_bounds = array<i64: 2, 7, 14>}, {pipeline_mode = #tpu.pipeline_mode<synchronous>, transform_indices = @transform_16, window_bounds = array<i64: 2, 14>}, {pipeline_mode = #tpu.pipeline_mode<synchronous>, transform_indices = @transform_17, window_bounds = array<i64: 2, 14, 7>}, {pipeline_mode = #tpu.pipeline_mode<synchronous>, transform_indices = @transform_18, window_bounds = array<i64: 20, 7>}, {pipeline_mode = #tpu.pipeline_mode<synchronous>, transform_indices = @transform_19, window_bounds = array<i64: 7, 4>}, {pipeline_mode = #tpu.pipeline_mode<synchronous>, transform_indices = @transform_20, window_bounds = array<i64: 1, 4>}, {transform_indices = @transform_21, window_bounds = array<i64: 1, 2, 4>}]} {
    %c0 = arith.constant 0 : index
    %c0_0 = arith.constant 0 : index
    %c0_1 = arith.constant 0 : index
    %0 = vector.load %arg1[%c0, %c0_0, %c0_1] : memref<1x8x3xf32, #tpu.memory_space<vmem>>, vector<1x8x3xf32>
    %1 = vector.shape_cast %0 : vector<1x8x3xf32> to vector<8x3xf32>
    %c0_2 = arith.constant 0 : index
    %c0_3 = arith.constant 0 : index
    %2 = vector.load %arg2[%c0_2, %c0_3] : memref<24x1xi32, #tpu.memory_space<vmem>>, vector<24x1xi32>
    %3 = tpu.iota {dimensions = array<i32: 1>} : vector<24x8xi32>
    %4 = vector.broadcast %2 : vector<24x1xi32> to vector<24x8xi32>
    %5 = arith.cmpi eq, %4, %3 : vector<24x8xi32>
    %6 = arith.extui %5 : vector<24x8xi1> to vector<24x8xi32>
    %7 = arith.sitofp %6 : vector<24x8xi32> to vector<24x8xf32>
    %c0_4 = arith.constant 0 : index
    %c0_5 = arith.constant 0 : index
    %8 = vector.load %arg3[%c0_4, %c0_5] : memref<24x1xi32, #tpu.memory_space<vmem>>, vector<24x1xi32>
    %9 = tpu.iota {dimensions = array<i32: 1>} : vector<24x8xi32>
    %10 = vector.broadcast %8 : vector<24x1xi32> to vector<24x8xi32>
    %11 = arith.cmpi eq, %10, %9 : vector<24x8xi32>
    %12 = arith.extui %11 : vector<24x8xi1> to vector<24x8xi32>
    %13 = arith.sitofp %12 : vector<24x8xi32> to vector<24x8xf32>
    %c0_6 = arith.constant 0 : index
    %c0_7 = arith.constant 0 : index
    %14 = vector.load %arg4[%c0_6, %c0_7] : memref<1x24xi32, #tpu.memory_space<vmem>>, vector<1x24xi32>
    %15 = tpu.iota {dimensions = array<i32: 0>} : vector<8x24xi32>
    %16 = vector.broadcast %14 : vector<1x24xi32> to vector<8x24xi32>
    %17 = arith.cmpi eq, %16, %15 : vector<8x24xi32>
    %18 = arith.extui %17 : vector<8x24xi1> to vector<8x24xi32>
    %19 = arith.sitofp %18 : vector<8x24xi32> to vector<8x24xf32>
    %c0_8 = arith.constant 0 : index
    %c0_9 = arith.constant 0 : index
    %20 = vector.load %arg5[%c0_8, %c0_9] : memref<1x8xi32, #tpu.memory_space<vmem>>, vector<1x8xi32>
    %21 = tpu.iota {dimensions = array<i32: 0>} : vector<2x8xi32>
    %22 = vector.broadcast %20 : vector<1x8xi32> to vector<2x8xi32>
    %23 = arith.cmpi eq, %22, %21 : vector<2x8xi32>
    %24 = arith.extui %23 : vector<2x8xi1> to vector<2x8xi32>
    %25 = arith.sitofp %24 : vector<2x8xi32> to vector<2x8xf32>
    %cst = arith.constant dense<0.000000e+00> : vector<24x3xf32>
    %26 = tpu.matmul %7, %1, %cst {dimension_numbers = #tpu.dot_dimension_numbers<[1], [0], [0], [1], [0, 0, 1, 1], [], []>} : vector<24x8xf32>, vector<8x3xf32>, vector<24x3xf32> -> vector<24x3xf32>
    %cst_10 = arith.constant dense<0.000000e+00> : vector<24x3xf32>
    %27 = tpu.matmul %13, %1, %cst_10 {dimension_numbers = #tpu.dot_dimension_numbers<[1], [0], [0], [1], [0, 0, 1, 1], [], []>} : vector<24x8xf32>, vector<8x3xf32>, vector<24x3xf32> -> vector<24x3xf32>
    %28 = arith.subf %27, %26 : vector<24x3xf32>
    %cst_11 = arith.constant dense<0.000000e+00> : vector<3xf32>
    %29 = vector.multi_reduction <add>, %27, %cst_11 [0] : vector<24x3xf32> to vector<3xf32>
    %30 = vector.shape_cast %29 : vector<3xf32> to vector<1x3xf32>
    %cst_12 = arith.constant 0.0416666679 : f32
    %31 = vector.broadcast %cst_12 : f32 to vector<1x3xf32>
    %32 = arith.mulf %30, %31 : vector<1x3xf32>
    %33 = vector.broadcast %32 : vector<1x3xf32> to vector<24x3xf32>
    %34 = arith.subf %26, %33 : vector<24x3xf32>
    %35 = arith.mulf %34, %34 : vector<24x3xf32>
    %cst_13 = arith.constant 0.0416666679 : f32
    %36 = vector.broadcast %cst_13 : f32 to vector<24x3xf32>
    %37 = arith.mulf %35, %36 : vector<24x3xf32>
    %38 = math.sqrt %37 : vector<24x3xf32>
    %39 = arith.subf %26, %27 : vector<24x3xf32>
    %40 = arith.mulf %39, %39 : vector<24x3xf32>
    %cst_14 = arith.constant dense<0.000000e+00> : vector<24xf32>
    %41 = vector.multi_reduction <add>, %40, %cst_14 [1] : vector<24x3xf32> to vector<24xf32>
    %42 = vector.shape_cast %41 : vector<24xf32> to vector<24x1xf32>
    %43 = math.sqrt %42 : vector<24x1xf32>
    %44 = tpu.concatenate %28, %38 in 1 : vector<24x3xf32>, vector<24x3xf32> -> vector<24x6xf32>
    %c0_15 = arith.constant 0 : index
    %c0_16 = arith.constant 0 : index
    %45 = vector.load %arg6[%c0_15, %c0_16] : memref<6x7xf32, #tpu.memory_space<vmem>>, vector<6x7xf32>
    %cst_17 = arith.constant dense<0.000000e+00> : vector<24x7xf32>
    %46 = tpu.matmul %44, %45, %cst_17 {dimension_numbers = #tpu.dot_dimension_numbers<[1], [0], [0], [1], [0, 0, 1, 1], [], []>} : vector<24x6xf32>, vector<6x7xf32>, vector<24x7xf32> -> vector<24x7xf32>
    %c0_18 = arith.constant 0 : index
    %c0_19 = arith.constant 0 : index
    %47 = vector.load %arg7[%c0_18, %c0_19] : memref<1x7xf32, #tpu.memory_space<vmem>>, vector<1x7xf32>
    %48 = vector.broadcast %43 : vector<24x1xf32> to vector<24x7xf32>
    %49 = vector.broadcast %47 : vector<1x7xf32> to vector<24x7xf32>
    %50 = arith.mulf %48, %49 : vector<24x7xf32>
    %51 = arith.addf %46, %50 : vector<24x7xf32>
    %c0_20 = arith.constant 0 : index
    %c0_21 = arith.constant 0 : index
    %52 = vector.load %arg8[%c0_20, %c0_21] : memref<1x7xf32, #tpu.memory_space<vmem>>, vector<1x7xf32>
    %53 = vector.broadcast %52 : vector<1x7xf32> to vector<24x7xf32>
    %54 = arith.addf %51, %53 : vector<24x7xf32>
    %cst_22 = arith.constant dense<0.000000e+00> : vector<8x7xf32>
    %55 = tpu.matmul %19, %54, %cst_22 {dimension_numbers = #tpu.dot_dimension_numbers<[1], [0], [0], [1], [0, 0, 1, 1], [], []>} : vector<8x24xf32>, vector<24x7xf32>, vector<8x7xf32> -> vector<8x7xf32>
    %cst_23 = arith.constant 0.000000e+00 : f32
    %56 = vector.broadcast %cst_23 : f32 to vector<8x7xf32>
    %57 = arith.subf %56, %55 : vector<8x7xf32>
    %58 = math.exp %57 : vector<8x7xf32>
    %cst_24 = arith.constant 1.000000e+00 : f32
    %59 = vector.broadcast %cst_24 : f32 to vector<8x7xf32>
    %60 = arith.addf %59, %58 : vector<8x7xf32>
    %61 = tpu.reciprocal %60 {approx = true} : vector<8x7xf32> -> vector<8x7xf32>
    %cst_25 = arith.constant dense<0.000000e+00> : vector<2x7xf32>
    %62 = tpu.matmul %25, %61, %cst_25 {dimension_numbers = #tpu.dot_dimension_numbers<[1], [0], [0], [1], [0, 0, 1, 1], [], []>} : vector<2x8xf32>, vector<8x7xf32>, vector<2x7xf32> -> vector<2x7xf32>
    %63 = vector.shape_cast %62 : vector<2x7xf32> to vector<1x2x7xf32>
    %cst_26 = arith.constant dense<0x7F800000> : vector<1xf32>
    %64 = vector.multi_reduction <minimumf>, %63, %cst_26 [1, 2] : vector<1x2x7xf32> to vector<1xf32>
    %65 = vector.shape_cast %64 : vector<1xf32> to vector<1x1x1xf32>
    %66 = vector.extract %65[0, 0, 0] : f32 from vector<1x1x1xf32>
    %67 = vector.broadcast %66 : f32 to vector<1x1xf32>
    %68 = vector.shape_cast %62 : vector<2x7xf32> to vector<1x2x7xf32>
    %cst_27 = arith.constant dense<0xFF800000> : vector<1xf32>
    %69 = vector.multi_reduction <maximumf>, %68, %cst_27 [1, 2] : vector<1x2x7xf32> to vector<1xf32>
    %70 = vector.shape_cast %69 : vector<1xf32> to vector<1x1x1xf32>
    %71 = vector.extract %70[0, 0, 0] : f32 from vector<1x1x1xf32>
    %72 = vector.broadcast %71 : f32 to vector<1x1xf32>
    %73 = arith.subf %72, %67 : vector<1x1xf32>
    %cst_28 = arith.constant 0.000000e+00 : f32
    %74 = vector.broadcast %cst_28 : f32 to vector<1x1xf32>
    %75 = arith.cmpf ogt, %73, %74 : vector<1x1xf32>
    %cst_29 = arith.constant 1.000000e+00 : f32
    %76 = vector.broadcast %cst_29 : f32 to vector<1x1xf32>
    %77 = arith.select %75, %73, %76 : vector<1x1xi1>, vector<1x1xf32>
    %cst_30 = arith.constant 0.000000e+00 : f32
    %78 = vector.broadcast %cst_30 : f32 to vector<1x1xf32>
    %79 = arith.cmpf ogt, %73, %78 : vector<1x1xf32>
    %80 = vector.broadcast %67 : vector<1x1xf32> to vector<2x7xf32>
    %81 = arith.subf %62, %80 : vector<2x7xf32>
    %82 = vector.broadcast %77 : vector<1x1xf32> to vector<2x7xf32>
    %83 = arith.divf %81, %82 : vector<2x7xf32>
    %cst_31 = arith.constant 0.000000e+00 : f32
    %84 = vector.shape_cast %79 : vector<1x1xi1> to vector<1x1xi1>
    %85 = vector.broadcast %84 : vector<1x1xi1> to vector<2x7xi1>
    %86 = vector.broadcast %cst_31 : f32 to vector<2x7xf32>
    %87 = arith.select %85, %83, %86 : vector<2x7xi1>, vector<2x7xf32>
    %c0_32 = arith.constant 0 : index
    %c0_33 = arith.constant 0 : index
    %88 = vector.load %arg9[%c0_32, %c0_33] : memref<7x28xf32, #tpu.memory_space<vmem>>, vector<7x28xf32>
    %cst_34 = arith.constant dense<0.000000e+00> : vector<2x28xf32>
    %89 = tpu.matmul %87, %88, %cst_34 {dimension_numbers = #tpu.dot_dimension_numbers<[1], [0], [0], [1], [0, 0, 1, 1], [], []>} : vector<2x7xf32>, vector<7x28xf32>, vector<2x28xf32> -> vector<2x28xf32>
    %c0_35 = arith.constant 0 : index
    %c0_36 = arith.constant 0 : index
    %90 = vector.load %arg10[%c0_35, %c0_36] : memref<1x28xf32, #tpu.memory_space<vmem>>, vector<1x28xf32>
    %91 = vector.broadcast %90 : vector<1x28xf32> to vector<2x28xf32>
    %92 = arith.addf %89, %91 : vector<2x28xf32>
    %93 = vector.extract_strided_slice %92 {offsets = [0, 0], sizes = [2, 7], strides = [1, 1]} : vector<2x28xf32> to vector<2x7xf32>
    %94 = vector.extract_strided_slice %92 {offsets = [0, 7], sizes = [2, 7], strides = [1, 1]} : vector<2x28xf32> to vector<2x7xf32>
    %95 = vector.extract_strided_slice %92 {offsets = [0, 14], sizes = [2, 7], strides = [1, 1]} : vector<2x28xf32> to vector<2x7xf32>
    %96 = vector.extract_strided_slice %92 {offsets = [0, 21], sizes = [2, 7], strides = [1, 1]} : vector<2x28xf32> to vector<2x7xf32>
    %97 = vector.shape_cast %94 : vector<2x7xf32> to vector<2x1x7xf32>
    %98 = vector.shape_cast %95 : vector<2x7xf32> to vector<1x2x7xf32>
    %99 = vector.broadcast %97 : vector<2x1x7xf32> to vector<2x2x7xf32>
    %100 = vector.broadcast %98 : vector<1x2x7xf32> to vector<2x2x7xf32>
    %101 = arith.mulf %99, %100 : vector<2x2x7xf32>
    %cst_37 = arith.constant dense<0xFF800000> : vector<2x7xf32>
    %102 = vector.multi_reduction <maximumf>, %101, %cst_37 [1] : vector<2x2x7xf32> to vector<2x7xf32>
    %103 = vector.shape_cast %102 : vector<2x7xf32> to vector<2x1x7xf32>
    %104 = vector.broadcast %103 : vector<2x1x7xf32> to vector<2x2x7xf32>
    %105 = arith.subf %101, %104 : vector<2x2x7xf32>
    %106 = math.exp %105 : vector<2x2x7xf32>
    %107 = vector.shape_cast %96 : vector<2x7xf32> to vector<1x2x7xf32>
    %108 = vector.broadcast %107 : vector<1x2x7xf32> to vector<2x2x7xf32>
    %109 = arith.mulf %106, %108 : vector<2x2x7xf32>
    %cst_38 = arith.constant dense<0.000000e+00> : vector<2x7xf32>
    %110 = vector.multi_reduction <add>, %109, %cst_38 [1] : vector<2x2x7xf32> to vector<2x7xf32>
    %cst_39 = arith.constant dense<0.000000e+00> : vector<2x7xf32>
    %111 = vector.multi_reduction <add>, %106, %cst_39 [1] : vector<2x2x7xf32> to vector<2x7xf32>
    %112 = tpu.reciprocal %111 {approx = true} : vector<2x7xf32> -> vector<2x7xf32>
    %113 = arith.mulf %110, %112 : vector<2x7xf32>
    %c1 = arith.constant 1 : index
    %c0_40 = arith.constant 0 : index
    %c0_41 = arith.constant 0 : index
    %114 = vector.load %arg11[%c1, %c0_40, %c0_41] : memref<4x7x7xf32, #tpu.memory_space<vmem>>, vector<1x7x7xf32>
    %115 = vector.shape_cast %114 : vector<1x7x7xf32> to vector<7x7xf32>
    %cst_42 = arith.constant dense<0.000000e+00> : vector<2x7xf32>
    %116 = tpu.matmul %113, %115, %cst_42 {dimension_numbers = #tpu.dot_dimension_numbers<[1], [0], [0], [1], [0, 0, 1, 1], [], []>} : vector<2x7xf32>, vector<7x7xf32>, vector<2x7xf32> -> vector<2x7xf32>
    %c1_43 = arith.constant 1 : index
    %c0_44 = arith.constant 0 : index
    %117 = vector.load %arg19[%c1_43, %c0_44] : memref<20x7xf32, #tpu.memory_space<vmem>>, vector<1x7xf32>
    %118 = vector.broadcast %117 : vector<1x7xf32> to vector<2x7xf32>
    %119 = arith.addf %116, %118 : vector<2x7xf32>
    %120 = arith.addf %87, %119 : vector<2x7xf32>
    %cst_45 = arith.constant dense<0.000000e+00> : vector<2xf32>
    %121 = vector.multi_reduction <add>, %120, %cst_45 [1] : vector<2x7xf32> to vector<2xf32>
    %122 = vector.shape_cast %121 : vector<2xf32> to vector<2x1xf32>
    %cst_46 = arith.constant 7.000000e+00 : f32
    %123 = vector.broadcast %cst_46 : f32 to vector<2x1xf32>
    %124 = arith.divf %122, %123 : vector<2x1xf32>
    %125 = vector.broadcast %124 : vector<2x1xf32> to vector<2x7xf32>
    %126 = arith.subf %120, %125 : vector<2x7xf32>
    %127 = arith.mulf %126, %126 : vector<2x7xf32>
    %cst_47 = arith.constant dense<0.000000e+00> : vector<2xf32>
    %128 = vector.multi_reduction <add>, %127, %cst_47 [1] : vector<2x7xf32> to vector<2xf32>
    %129 = vector.shape_cast %128 : vector<2xf32> to vector<2x1xf32>
    %cst_48 = arith.constant 7.000000e+00 : f32
    %130 = vector.broadcast %cst_48 : f32 to vector<2x1xf32>
    %131 = arith.divf %129, %130 : vector<2x1xf32>
    %132 = vector.broadcast %124 : vector<2x1xf32> to vector<2x7xf32>
    %133 = arith.subf %120, %132 : vector<2x7xf32>
    %cst_49 = arith.constant 9.99999974E-6 : f32
    %134 = vector.broadcast %cst_49 : f32 to vector<2x1xf32>
    %135 = arith.addf %131, %134 : vector<2x1xf32>
    %136 = math.rsqrt %135 : vector<2x1xf32>
    %137 = vector.broadcast %136 : vector<2x1xf32> to vector<2x7xf32>
    %138 = arith.mulf %133, %137 : vector<2x7xf32>
    %c6 = arith.constant 6 : index
    %c0_50 = arith.constant 0 : index
    %139 = vector.load %arg19[%c6, %c0_50] : memref<20x7xf32, #tpu.memory_space<vmem>>, vector<1x7xf32>
    %140 = vector.broadcast %139 : vector<1x7xf32> to vector<2x7xf32>
    %141 = arith.mulf %138, %140 : vector<2x7xf32>
    %c7 = arith.constant 7 : index
    %c0_51 = arith.constant 0 : index
    %142 = vector.load %arg19[%c7, %c0_51] : memref<20x7xf32, #tpu.memory_space<vmem>>, vector<1x7xf32>
    %143 = vector.broadcast %142 : vector<1x7xf32> to vector<2x7xf32>
    %144 = arith.addf %141, %143 : vector<2x7xf32>
    %c0_52 = arith.constant 0 : index
    %c0_53 = arith.constant 0 : index
    %c0_54 = arith.constant 0 : index
    %145 = vector.load %arg16[%c0_52, %c0_53, %c0_54] : memref<2x7x14xf32, #tpu.memory_space<vmem>>, vector<1x7x14xf32>
    %146 = vector.shape_cast %145 : vector<1x7x14xf32> to vector<7x14xf32>
    %cst_55 = arith.constant dense<0.000000e+00> : vector<2x14xf32>
    %147 = tpu.matmul %144, %146, %cst_55 {dimension_numbers = #tpu.dot_dimension_numbers<[1], [0], [0], [1], [0, 0, 1, 1], [], []>} : vector<2x7xf32>, vector<7x14xf32>, vector<2x14xf32> -> vector<2x14xf32>
    %c0_56 = arith.constant 0 : index
    %c0_57 = arith.constant 0 : index
    %148 = vector.load %arg17[%c0_56, %c0_57] : memref<2x14xf32, #tpu.memory_space<vmem>>, vector<1x14xf32>
    %149 = vector.broadcast %148 : vector<1x14xf32> to vector<2x14xf32>
    %150 = arith.addf %147, %149 : vector<2x14xf32>
    %cst_58 = arith.constant 0.000000e+00 : f32
    %151 = vector.broadcast %cst_58 : f32 to vector<2x14xf32>
    %152 = arith.maximumf %150, %151 : vector<2x14xf32>
    %c0_59 = arith.constant 0 : index
    %c0_60 = arith.constant 0 : index
    %c0_61 = arith.constant 0 : index
    %153 = vector.load %arg18[%c0_59, %c0_60, %c0_61] : memref<2x14x7xf32, #tpu.memory_space<vmem>>, vector<1x14x7xf32>
    %154 = vector.shape_cast %153 : vector<1x14x7xf32> to vector<14x7xf32>
    %cst_62 = arith.constant dense<0.000000e+00> : vector<2x7xf32>
    %155 = tpu.matmul %152, %154, %cst_62 {dimension_numbers = #tpu.dot_dimension_numbers<[1], [0], [0], [1], [0, 0, 1, 1], [], []>} : vector<2x14xf32>, vector<14x7xf32>, vector<2x7xf32> -> vector<2x7xf32>
    %c4 = arith.constant 4 : index
    %c0_63 = arith.constant 0 : index
    %156 = vector.load %arg19[%c4, %c0_63] : memref<20x7xf32, #tpu.memory_space<vmem>>, vector<1x7xf32>
    %157 = vector.broadcast %156 : vector<1x7xf32> to vector<2x7xf32>
    %158 = arith.addf %155, %157 : vector<2x7xf32>
    %159 = arith.addf %144, %158 : vector<2x7xf32>
    %cst_64 = arith.constant dense<0.000000e+00> : vector<2xf32>
    %160 = vector.multi_reduction <add>, %159, %cst_64 [1] : vector<2x7xf32> to vector<2xf32>
    %161 = vector.shape_cast %160 : vector<2xf32> to vector<2x1xf32>
    %cst_65 = arith.constant 7.000000e+00 : f32
    %162 = vector.broadcast %cst_65 : f32 to vector<2x1xf32>
    %163 = arith.divf %161, %162 : vector<2x1xf32>
    %164 = vector.broadcast %163 : vector<2x1xf32> to vector<2x7xf32>
    %165 = arith.subf %159, %164 : vector<2x7xf32>
    %166 = arith.mulf %165, %165 : vector<2x7xf32>
    %cst_66 = arith.constant dense<0.000000e+00> : vector<2xf32>
    %167 = vector.multi_reduction <add>, %166, %cst_66 [1] : vector<2x7xf32> to vector<2xf32>
    %168 = vector.shape_cast %167 : vector<2xf32> to vector<2x1xf32>
    %cst_67 = arith.constant 7.000000e+00 : f32
    %169 = vector.broadcast %cst_67 : f32 to vector<2x1xf32>
    %170 = arith.divf %168, %169 : vector<2x1xf32>
    %171 = vector.broadcast %163 : vector<2x1xf32> to vector<2x7xf32>
    %172 = arith.subf %159, %171 : vector<2x7xf32>
    %cst_68 = arith.constant 9.99999974E-6 : f32
    %173 = vector.broadcast %cst_68 : f32 to vector<2x1xf32>
    %174 = arith.addf %170, %173 : vector<2x1xf32>
    %175 = math.rsqrt %174 : vector<2x1xf32>
    %176 = vector.broadcast %175 : vector<2x1xf32> to vector<2x7xf32>
    %177 = arith.mulf %172, %176 : vector<2x7xf32>
    %c8 = arith.constant 8 : index
    %c0_69 = arith.constant 0 : index
    %178 = vector.load %arg19[%c8, %c0_69] : memref<20x7xf32, #tpu.memory_space<vmem>>, vector<1x7xf32>
    %179 = vector.broadcast %178 : vector<1x7xf32> to vector<2x7xf32>
    %180 = arith.mulf %177, %179 : vector<2x7xf32>
    %c9 = arith.constant 9 : index
    %c0_70 = arith.constant 0 : index
    %181 = vector.load %arg19[%c9, %c0_70] : memref<20x7xf32, #tpu.memory_space<vmem>>, vector<1x7xf32>
    %182 = vector.broadcast %181 : vector<1x7xf32> to vector<2x7xf32>
    %183 = arith.addf %180, %182 : vector<2x7xf32>
    %cst_71 = arith.constant dense<0.000000e+00> : vector<2xf32>
    %184 = vector.multi_reduction <add>, %183, %cst_71 [1] : vector<2x7xf32> to vector<2xf32>
    %185 = vector.shape_cast %184 : vector<2xf32> to vector<2x1xf32>
    %cst_72 = arith.constant 7.000000e+00 : f32
    %186 = vector.broadcast %cst_72 : f32 to vector<2x1xf32>
    %187 = arith.divf %185, %186 : vector<2x1xf32>
    %188 = vector.broadcast %187 : vector<2x1xf32> to vector<2x7xf32>
    %189 = arith.subf %183, %188 : vector<2x7xf32>
    %190 = arith.mulf %189, %189 : vector<2x7xf32>
    %cst_73 = arith.constant dense<0.000000e+00> : vector<2xf32>
    %191 = vector.multi_reduction <add>, %190, %cst_73 [1] : vector<2x7xf32> to vector<2xf32>
    %192 = vector.shape_cast %191 : vector<2xf32> to vector<2x1xf32>
    %cst_74 = arith.constant 7.000000e+00 : f32
    %193 = vector.broadcast %cst_74 : f32 to vector<2x1xf32>
    %194 = arith.divf %192, %193 : vector<2x1xf32>
    %195 = vector.broadcast %187 : vector<2x1xf32> to vector<2x7xf32>
    %196 = arith.subf %183, %195 : vector<2x7xf32>
    %cst_75 = arith.constant 9.99999974E-6 : f32
    %197 = vector.broadcast %cst_75 : f32 to vector<2x1xf32>
    %198 = arith.addf %194, %197 : vector<2x1xf32>
    %199 = math.rsqrt %198 : vector<2x1xf32>
    %200 = vector.broadcast %199 : vector<2x1xf32> to vector<2x7xf32>
    %201 = arith.mulf %196, %200 : vector<2x7xf32>
    %c10 = arith.constant 10 : index
    %c0_76 = arith.constant 0 : index
    %202 = vector.load %arg19[%c10, %c0_76] : memref<20x7xf32, #tpu.memory_space<vmem>>, vector<1x7xf32>
    %203 = vector.broadcast %202 : vector<1x7xf32> to vector<2x7xf32>
    %204 = arith.mulf %201, %203 : vector<2x7xf32>
    %c11 = arith.constant 11 : index
    %c0_77 = arith.constant 0 : index
    %205 = vector.load %arg19[%c11, %c0_77] : memref<20x7xf32, #tpu.memory_space<vmem>>, vector<1x7xf32>
    %206 = vector.broadcast %205 : vector<1x7xf32> to vector<2x7xf32>
    %207 = arith.addf %204, %206 : vector<2x7xf32>
    %c0_78 = arith.constant 0 : index
    %c0_79 = arith.constant 0 : index
    %208 = vector.load %arg12[%c0_78, %c0_79] : memref<7x21xf32, #tpu.memory_space<vmem>>, vector<7x21xf32>
    %cst_80 = arith.constant dense<0.000000e+00> : vector<2x21xf32>
    %209 = tpu.matmul %93, %208, %cst_80 {dimension_numbers = #tpu.dot_dimension_numbers<[1], [0], [0], [1], [0, 0, 1, 1], [], []>} : vector<2x7xf32>, vector<7x21xf32>, vector<2x21xf32> -> vector<2x21xf32>
    %c0_81 = arith.constant 0 : index
    %c0_82 = arith.constant 0 : index
    %210 = vector.load %arg13[%c0_81, %c0_82] : memref<1x21xf32, #tpu.memory_space<vmem>>, vector<1x21xf32>
    %211 = vector.broadcast %210 : vector<1x21xf32> to vector<2x21xf32>
    %212 = arith.addf %209, %211 : vector<2x21xf32>
    %213 = vector.extract_strided_slice %212 {offsets = [0, 0], sizes = [2, 7], strides = [1, 1]} : vector<2x21xf32> to vector<2x7xf32>
    %214 = vector.extract_strided_slice %212 {offsets = [0, 7], sizes = [2, 7], strides = [1, 1]} : vector<2x21xf32> to vector<2x7xf32>
    %215 = vector.extract_strided_slice %212 {offsets = [0, 14], sizes = [2, 7], strides = [1, 1]} : vector<2x21xf32> to vector<2x7xf32>
    %216 = vector.shape_cast %213 : vector<2x7xf32> to vector<2x1x7xf32>
    %217 = vector.shape_cast %214 : vector<2x7xf32> to vector<1x2x7xf32>
    %218 = vector.broadcast %216 : vector<2x1x7xf32> to vector<2x2x7xf32>
    %219 = vector.broadcast %217 : vector<1x2x7xf32> to vector<2x2x7xf32>
    %220 = arith.mulf %218, %219 : vector<2x2x7xf32>
    %cst_83 = arith.constant dense<0xFF800000> : vector<2x7xf32>
    %221 = vector.multi_reduction <maximumf>, %220, %cst_83 [1] : vector<2x2x7xf32> to vector<2x7xf32>
    %222 = vector.shape_cast %221 : vector<2x7xf32> to vector<2x1x7xf32>
    %223 = vector.broadcast %222 : vector<2x1x7xf32> to vector<2x2x7xf32>
    %224 = arith.subf %220, %223 : vector<2x2x7xf32>
    %225 = math.exp %224 : vector<2x2x7xf32>
    %226 = vector.shape_cast %215 : vector<2x7xf32> to vector<1x2x7xf32>
    %227 = vector.broadcast %226 : vector<1x2x7xf32> to vector<2x2x7xf32>
    %228 = arith.mulf %225, %227 : vector<2x2x7xf32>
    %cst_84 = arith.constant dense<0.000000e+00> : vector<2x7xf32>
    %229 = vector.multi_reduction <add>, %228, %cst_84 [1] : vector<2x2x7xf32> to vector<2x7xf32>
    %cst_85 = arith.constant dense<0.000000e+00> : vector<2x7xf32>
    %230 = vector.multi_reduction <add>, %225, %cst_85 [1] : vector<2x2x7xf32> to vector<2x7xf32>
    %231 = tpu.reciprocal %230 {approx = true} : vector<2x7xf32> -> vector<2x7xf32>
    %232 = arith.mulf %229, %231 : vector<2x7xf32>
    %c2 = arith.constant 2 : index
    %c0_86 = arith.constant 0 : index
    %c0_87 = arith.constant 0 : index
    %233 = vector.load %arg11[%c2, %c0_86, %c0_87] : memref<4x7x7xf32, #tpu.memory_space<vmem>>, vector<1x7x7xf32>
    %234 = vector.shape_cast %233 : vector<1x7x7xf32> to vector<7x7xf32>
    %cst_88 = arith.constant dense<0.000000e+00> : vector<2x7xf32>
    %235 = tpu.matmul %232, %234, %cst_88 {dimension_numbers = #tpu.dot_dimension_numbers<[1], [0], [0], [1], [0, 0, 1, 1], [], []>} : vector<2x7xf32>, vector<7x7xf32>, vector<2x7xf32> -> vector<2x7xf32>
    %c2_89 = arith.constant 2 : index
    %c0_90 = arith.constant 0 : index
    %236 = vector.load %arg19[%c2_89, %c0_90] : memref<20x7xf32, #tpu.memory_space<vmem>>, vector<1x7xf32>
    %237 = vector.broadcast %236 : vector<1x7xf32> to vector<2x7xf32>
    %238 = arith.addf %235, %237 : vector<2x7xf32>
    %239 = arith.addf %93, %238 : vector<2x7xf32>
    %cst_91 = arith.constant dense<0.000000e+00> : vector<2xf32>
    %240 = vector.multi_reduction <add>, %239, %cst_91 [1] : vector<2x7xf32> to vector<2xf32>
    %241 = vector.shape_cast %240 : vector<2xf32> to vector<2x1xf32>
    %cst_92 = arith.constant 7.000000e+00 : f32
    %242 = vector.broadcast %cst_92 : f32 to vector<2x1xf32>
    %243 = arith.divf %241, %242 : vector<2x1xf32>
    %244 = vector.broadcast %243 : vector<2x1xf32> to vector<2x7xf32>
    %245 = arith.subf %239, %244 : vector<2x7xf32>
    %246 = arith.mulf %245, %245 : vector<2x7xf32>
    %cst_93 = arith.constant dense<0.000000e+00> : vector<2xf32>
    %247 = vector.multi_reduction <add>, %246, %cst_93 [1] : vector<2x7xf32> to vector<2xf32>
    %248 = vector.shape_cast %247 : vector<2xf32> to vector<2x1xf32>
    %cst_94 = arith.constant 7.000000e+00 : f32
    %249 = vector.broadcast %cst_94 : f32 to vector<2x1xf32>
    %250 = arith.divf %248, %249 : vector<2x1xf32>
    %251 = vector.broadcast %243 : vector<2x1xf32> to vector<2x7xf32>
    %252 = arith.subf %239, %251 : vector<2x7xf32>
    %cst_95 = arith.constant 9.99999974E-6 : f32
    %253 = vector.broadcast %cst_95 : f32 to vector<2x1xf32>
    %254 = arith.addf %250, %253 : vector<2x1xf32>
    %255 = math.rsqrt %254 : vector<2x1xf32>
    %256 = vector.broadcast %255 : vector<2x1xf32> to vector<2x7xf32>
    %257 = arith.mulf %252, %256 : vector<2x7xf32>
    %c12 = arith.constant 12 : index
    %c0_96 = arith.constant 0 : index
    %258 = vector.load %arg19[%c12, %c0_96] : memref<20x7xf32, #tpu.memory_space<vmem>>, vector<1x7xf32>
    %259 = vector.broadcast %258 : vector<1x7xf32> to vector<2x7xf32>
    %260 = arith.mulf %257, %259 : vector<2x7xf32>
    %c13 = arith.constant 13 : index
    %c0_97 = arith.constant 0 : index
    %261 = vector.load %arg19[%c13, %c0_97] : memref<20x7xf32, #tpu.memory_space<vmem>>, vector<1x7xf32>
    %262 = vector.broadcast %261 : vector<1x7xf32> to vector<2x7xf32>
    %263 = arith.addf %260, %262 : vector<2x7xf32>
    %c0_98 = arith.constant 0 : index
    %c0_99 = arith.constant 0 : index
    %c0_100 = arith.constant 0 : index
    %264 = vector.load %arg11[%c0_98, %c0_99, %c0_100] : memref<4x7x7xf32, #tpu.memory_space<vmem>>, vector<1x7x7xf32>
    %265 = vector.shape_cast %264 : vector<1x7x7xf32> to vector<7x7xf32>
    %cst_101 = arith.constant dense<0.000000e+00> : vector<2x7xf32>
    %266 = tpu.matmul %263, %265, %cst_101 {dimension_numbers = #tpu.dot_dimension_numbers<[1], [0], [0], [1], [0, 0, 1, 1], [], []>} : vector<2x7xf32>, vector<7x7xf32>, vector<2x7xf32> -> vector<2x7xf32>
    %c0_102 = arith.constant 0 : index
    %c0_103 = arith.constant 0 : index
    %267 = vector.load %arg19[%c0_102, %c0_103] : memref<20x7xf32, #tpu.memory_space<vmem>>, vector<1x7xf32>
    %268 = vector.broadcast %267 : vector<1x7xf32> to vector<2x7xf32>
    %269 = arith.addf %266, %268 : vector<2x7xf32>
    %c0_104 = arith.constant 0 : index
    %c0_105 = arith.constant 0 : index
    %270 = vector.load %arg14[%c0_104, %c0_105] : memref<7x14xf32, #tpu.memory_space<vmem>>, vector<7x14xf32>
    %cst_106 = arith.constant dense<0.000000e+00> : vector<2x14xf32>
    %271 = tpu.matmul %207, %270, %cst_106 {dimension_numbers = #tpu.dot_dimension_numbers<[1], [0], [0], [1], [0, 0, 1, 1], [], []>} : vector<2x7xf32>, vector<7x14xf32>, vector<2x14xf32> -> vector<2x14xf32>
    %c0_107 = arith.constant 0 : index
    %c0_108 = arith.constant 0 : index
    %272 = vector.load %arg15[%c0_107, %c0_108] : memref<1x14xf32, #tpu.memory_space<vmem>>, vector<1x14xf32>
    %273 = vector.broadcast %272 : vector<1x14xf32> to vector<2x14xf32>
    %274 = arith.addf %271, %273 : vector<2x14xf32>
    %275 = vector.extract_strided_slice %274 {offsets = [0, 0], sizes = [2, 7], strides = [1, 1]} : vector<2x14xf32> to vector<2x7xf32>
    %276 = vector.extract_strided_slice %274 {offsets = [0, 7], sizes = [2, 7], strides = [1, 1]} : vector<2x14xf32> to vector<2x7xf32>
    %277 = vector.shape_cast %269 : vector<2x7xf32> to vector<2x1x7xf32>
    %278 = vector.shape_cast %275 : vector<2x7xf32> to vector<1x2x7xf32>
    %279 = vector.broadcast %277 : vector<2x1x7xf32> to vector<2x2x7xf32>
    %280 = vector.broadcast %278 : vector<1x2x7xf32> to vector<2x2x7xf32>
    %281 = arith.mulf %279, %280 : vector<2x2x7xf32>
    %cst_109 = arith.constant dense<0xFF800000> : vector<2x7xf32>
    %282 = vector.multi_reduction <maximumf>, %281, %cst_109 [1] : vector<2x2x7xf32> to vector<2x7xf32>
    %283 = vector.shape_cast %282 : vector<2x7xf32> to vector<2x1x7xf32>
    %284 = vector.broadcast %283 : vector<2x1x7xf32> to vector<2x2x7xf32>
    %285 = arith.subf %281, %284 : vector<2x2x7xf32>
    %286 = math.exp %285 : vector<2x2x7xf32>
    %287 = vector.shape_cast %276 : vector<2x7xf32> to vector<1x2x7xf32>
    %288 = vector.broadcast %287 : vector<1x2x7xf32> to vector<2x2x7xf32>
    %289 = arith.mulf %286, %288 : vector<2x2x7xf32>
    %cst_110 = arith.constant dense<0.000000e+00> : vector<2x7xf32>
    %290 = vector.multi_reduction <add>, %289, %cst_110 [1] : vector<2x2x7xf32> to vector<2x7xf32>
    %cst_111 = arith.constant dense<0.000000e+00> : vector<2x7xf32>
    %291 = vector.multi_reduction <add>, %286, %cst_111 [1] : vector<2x2x7xf32> to vector<2x7xf32>
    %292 = tpu.reciprocal %291 {approx = true} : vector<2x7xf32> -> vector<2x7xf32>
    %293 = arith.mulf %290, %292 : vector<2x7xf32>
    %c3 = arith.constant 3 : index
    %c0_112 = arith.constant 0 : index
    %c0_113 = arith.constant 0 : index
    %294 = vector.load %arg11[%c3, %c0_112, %c0_113] : memref<4x7x7xf32, #tpu.memory_space<vmem>>, vector<1x7x7xf32>
    %295 = vector.shape_cast %294 : vector<1x7x7xf32> to vector<7x7xf32>
    %cst_114 = arith.constant dense<0.000000e+00> : vector<2x7xf32>
    %296 = tpu.matmul %293, %295, %cst_114 {dimension_numbers = #tpu.dot_dimension_numbers<[1], [0], [0], [1], [0, 0, 1, 1], [], []>} : vector<2x7xf32>, vector<7x7xf32>, vector<2x7xf32> -> vector<2x7xf32>
    %c3_115 = arith.constant 3 : index
    %c0_116 = arith.constant 0 : index
    %297 = vector.load %arg19[%c3_115, %c0_116] : memref<20x7xf32, #tpu.memory_space<vmem>>, vector<1x7xf32>
    %298 = vector.broadcast %297 : vector<1x7xf32> to vector<2x7xf32>
    %299 = arith.addf %296, %298 : vector<2x7xf32>
    %300 = arith.addf %263, %299 : vector<2x7xf32>
    %cst_117 = arith.constant dense<0.000000e+00> : vector<2xf32>
    %301 = vector.multi_reduction <add>, %300, %cst_117 [1] : vector<2x7xf32> to vector<2xf32>
    %302 = vector.shape_cast %301 : vector<2xf32> to vector<2x1xf32>
    %cst_118 = arith.constant 7.000000e+00 : f32
    %303 = vector.broadcast %cst_118 : f32 to vector<2x1xf32>
    %304 = arith.divf %302, %303 : vector<2x1xf32>
    %305 = vector.broadcast %304 : vector<2x1xf32> to vector<2x7xf32>
    %306 = arith.subf %300, %305 : vector<2x7xf32>
    %307 = arith.mulf %306, %306 : vector<2x7xf32>
    %cst_119 = arith.constant dense<0.000000e+00> : vector<2xf32>
    %308 = vector.multi_reduction <add>, %307, %cst_119 [1] : vector<2x7xf32> to vector<2xf32>
    %309 = vector.shape_cast %308 : vector<2xf32> to vector<2x1xf32>
    %cst_120 = arith.constant 7.000000e+00 : f32
    %310 = vector.broadcast %cst_120 : f32 to vector<2x1xf32>
    %311 = arith.divf %309, %310 : vector<2x1xf32>
    %312 = vector.broadcast %304 : vector<2x1xf32> to vector<2x7xf32>
    %313 = arith.subf %300, %312 : vector<2x7xf32>
    %cst_121 = arith.constant 9.99999974E-6 : f32
    %314 = vector.broadcast %cst_121 : f32 to vector<2x1xf32>
    %315 = arith.addf %311, %314 : vector<2x1xf32>
    %316 = math.rsqrt %315 : vector<2x1xf32>
    %317 = vector.broadcast %316 : vector<2x1xf32> to vector<2x7xf32>
    %318 = arith.mulf %313, %317 : vector<2x7xf32>
    %c14 = arith.constant 14 : index
    %c0_122 = arith.constant 0 : index
    %319 = vector.load %arg19[%c14, %c0_122] : memref<20x7xf32, #tpu.memory_space<vmem>>, vector<1x7xf32>
    %320 = vector.broadcast %319 : vector<1x7xf32> to vector<2x7xf32>
    %321 = arith.mulf %318, %320 : vector<2x7xf32>
    %c15 = arith.constant 15 : index
    %c0_123 = arith.constant 0 : index
    %322 = vector.load %arg19[%c15, %c0_123] : memref<20x7xf32, #tpu.memory_space<vmem>>, vector<1x7xf32>
    %323 = vector.broadcast %322 : vector<1x7xf32> to vector<2x7xf32>
    %324 = arith.addf %321, %323 : vector<2x7xf32>
    %c1_124 = arith.constant 1 : index
    %c0_125 = arith.constant 0 : index
    %c0_126 = arith.constant 0 : index
    %325 = vector.load %arg16[%c1_124, %c0_125, %c0_126] : memref<2x7x14xf32, #tpu.memory_space<vmem>>, vector<1x7x14xf32>
    %326 = vector.shape_cast %325 : vector<1x7x14xf32> to vector<7x14xf32>
    %cst_127 = arith.constant dense<0.000000e+00> : vector<2x14xf32>
    %327 = tpu.matmul %324, %326, %cst_127 {dimension_numbers = #tpu.dot_dimension_numbers<[1], [0], [0], [1], [0, 0, 1, 1], [], []>} : vector<2x7xf32>, vector<7x14xf32>, vector<2x14xf32> -> vector<2x14xf32>
    %c1_128 = arith.constant 1 : index
    %c0_129 = arith.constant 0 : index
    %328 = vector.load %arg17[%c1_128, %c0_129] : memref<2x14xf32, #tpu.memory_space<vmem>>, vector<1x14xf32>
    %329 = vector.broadcast %328 : vector<1x14xf32> to vector<2x14xf32>
    %330 = arith.addf %327, %329 : vector<2x14xf32>
    %cst_130 = arith.constant 0.000000e+00 : f32
    %331 = vector.broadcast %cst_130 : f32 to vector<2x14xf32>
    %332 = arith.maximumf %330, %331 : vector<2x14xf32>
    %c1_131 = arith.constant 1 : index
    %c0_132 = arith.constant 0 : index
    %c0_133 = arith.constant 0 : index
    %333 = vector.load %arg18[%c1_131, %c0_132, %c0_133] : memref<2x14x7xf32, #tpu.memory_space<vmem>>, vector<1x14x7xf32>
    %334 = vector.shape_cast %333 : vector<1x14x7xf32> to vector<14x7xf32>
    %cst_134 = arith.constant dense<0.000000e+00> : vector<2x7xf32>
    %335 = tpu.matmul %332, %334, %cst_134 {dimension_numbers = #tpu.dot_dimension_numbers<[1], [0], [0], [1], [0, 0, 1, 1], [], []>} : vector<2x14xf32>, vector<14x7xf32>, vector<2x7xf32> -> vector<2x7xf32>
    %c5 = arith.constant 5 : index
    %c0_135 = arith.constant 0 : index
    %336 = vector.load %arg19[%c5, %c0_135] : memref<20x7xf32, #tpu.memory_space<vmem>>, vector<1x7xf32>
    %337 = vector.broadcast %336 : vector<1x7xf32> to vector<2x7xf32>
    %338 = arith.addf %335, %337 : vector<2x7xf32>
    %339 = arith.addf %324, %338 : vector<2x7xf32>
    %cst_136 = arith.constant dense<0.000000e+00> : vector<2xf32>
    %340 = vector.multi_reduction <add>, %339, %cst_136 [1] : vector<2x7xf32> to vector<2xf32>
    %341 = vector.shape_cast %340 : vector<2xf32> to vector<2x1xf32>
    %cst_137 = arith.constant 7.000000e+00 : f32
    %342 = vector.broadcast %cst_137 : f32 to vector<2x1xf32>
    %343 = arith.divf %341, %342 : vector<2x1xf32>
    %344 = vector.broadcast %343 : vector<2x1xf32> to vector<2x7xf32>
    %345 = arith.subf %339, %344 : vector<2x7xf32>
    %346 = arith.mulf %345, %345 : vector<2x7xf32>
    %cst_138 = arith.constant dense<0.000000e+00> : vector<2xf32>
    %347 = vector.multi_reduction <add>, %346, %cst_138 [1] : vector<2x7xf32> to vector<2xf32>
    %348 = vector.shape_cast %347 : vector<2xf32> to vector<2x1xf32>
    %cst_139 = arith.constant 7.000000e+00 : f32
    %349 = vector.broadcast %cst_139 : f32 to vector<2x1xf32>
    %350 = arith.divf %348, %349 : vector<2x1xf32>
    %351 = vector.broadcast %343 : vector<2x1xf32> to vector<2x7xf32>
    %352 = arith.subf %339, %351 : vector<2x7xf32>
    %cst_140 = arith.constant 9.99999974E-6 : f32
    %353 = vector.broadcast %cst_140 : f32 to vector<2x1xf32>
    %354 = arith.addf %350, %353 : vector<2x1xf32>
    %355 = math.rsqrt %354 : vector<2x1xf32>
    %356 = vector.broadcast %355 : vector<2x1xf32> to vector<2x7xf32>
    %357 = arith.mulf %352, %356 : vector<2x7xf32>
    %c16 = arith.constant 16 : index
    %c0_141 = arith.constant 0 : index
    %358 = vector.load %arg19[%c16, %c0_141] : memref<20x7xf32, #tpu.memory_space<vmem>>, vector<1x7xf32>
    %359 = vector.broadcast %358 : vector<1x7xf32> to vector<2x7xf32>
    %360 = arith.mulf %357, %359 : vector<2x7xf32>
    %c17 = arith.constant 17 : index
    %c0_142 = arith.constant 0 : index
    %361 = vector.load %arg19[%c17, %c0_142] : memref<20x7xf32, #tpu.memory_space<vmem>>, vector<1x7xf32>
    %362 = vector.broadcast %361 : vector<1x7xf32> to vector<2x7xf32>
    %363 = arith.addf %360, %362 : vector<2x7xf32>
    %cst_143 = arith.constant dense<0.000000e+00> : vector<2xf32>
    %364 = vector.multi_reduction <add>, %363, %cst_143 [1] : vector<2x7xf32> to vector<2xf32>
    %365 = vector.shape_cast %364 : vector<2xf32> to vector<2x1xf32>
    %cst_144 = arith.constant 7.000000e+00 : f32
    %366 = vector.broadcast %cst_144 : f32 to vector<2x1xf32>
    %367 = arith.divf %365, %366 : vector<2x1xf32>
    %368 = vector.broadcast %367 : vector<2x1xf32> to vector<2x7xf32>
    %369 = arith.subf %363, %368 : vector<2x7xf32>
    %370 = arith.mulf %369, %369 : vector<2x7xf32>
    %cst_145 = arith.constant dense<0.000000e+00> : vector<2xf32>
    %371 = vector.multi_reduction <add>, %370, %cst_145 [1] : vector<2x7xf32> to vector<2xf32>
    %372 = vector.shape_cast %371 : vector<2xf32> to vector<2x1xf32>
    %cst_146 = arith.constant 7.000000e+00 : f32
    %373 = vector.broadcast %cst_146 : f32 to vector<2x1xf32>
    %374 = arith.divf %372, %373 : vector<2x1xf32>
    %375 = vector.broadcast %367 : vector<2x1xf32> to vector<2x7xf32>
    %376 = arith.subf %363, %375 : vector<2x7xf32>
    %cst_147 = arith.constant 9.99999974E-6 : f32
    %377 = vector.broadcast %cst_147 : f32 to vector<2x1xf32>
    %378 = arith.addf %374, %377 : vector<2x1xf32>
    %379 = math.rsqrt %378 : vector<2x1xf32>
    %380 = vector.broadcast %379 : vector<2x1xf32> to vector<2x7xf32>
    %381 = arith.mulf %376, %380 : vector<2x7xf32>
    %c18 = arith.constant 18 : index
    %c0_148 = arith.constant 0 : index
    %382 = vector.load %arg19[%c18, %c0_148] : memref<20x7xf32, #tpu.memory_space<vmem>>, vector<1x7xf32>
    %383 = vector.broadcast %382 : vector<1x7xf32> to vector<2x7xf32>
    %384 = arith.mulf %381, %383 : vector<2x7xf32>
    %c19 = arith.constant 19 : index
    %c0_149 = arith.constant 0 : index
    %385 = vector.load %arg19[%c19, %c0_149] : memref<20x7xf32, #tpu.memory_space<vmem>>, vector<1x7xf32>
    %386 = vector.broadcast %385 : vector<1x7xf32> to vector<2x7xf32>
    %387 = arith.addf %384, %386 : vector<2x7xf32>
    %c0_150 = arith.constant 0 : index
    %c0_151 = arith.constant 0 : index
    %388 = vector.load %arg20[%c0_150, %c0_151] : memref<7x4xf32, #tpu.memory_space<vmem>>, vector<7x4xf32>
    %cst_152 = arith.constant dense<0.000000e+00> : vector<2x4xf32>
    %389 = tpu.matmul %387, %388, %cst_152 {dimension_numbers = #tpu.dot_dimension_numbers<[1], [0], [0], [1], [0, 0, 1, 1], [], []>} : vector<2x7xf32>, vector<7x4xf32>, vector<2x4xf32> -> vector<2x4xf32>
    %c0_153 = arith.constant 0 : index
    %c0_154 = arith.constant 0 : index
    %390 = vector.load %arg21[%c0_153, %c0_154] : memref<1x4xf32, #tpu.memory_space<vmem>>, vector<1x4xf32>
    %391 = vector.broadcast %390 : vector<1x4xf32> to vector<2x4xf32>
    %392 = arith.addf %389, %391 : vector<2x4xf32>
    %c0_155 = arith.constant 0 : index
    %c0_156 = arith.constant 0 : index
    %c0_157 = arith.constant 0 : index
    %393 = vector.load %arg22[%c0_155, %c0_156, %c0_157] : memref<1x2x4xf32, #tpu.memory_space<vmem>>, vector<1x2x4xf32>
    %394 = vector.shape_cast %393 : vector<1x2x4xf32> to vector<2x4xf32>
    %395 = vector.shape_cast %392 : vector<2x4xf32> to vector<1x2x4xf32>
    tpu.vector_store %arg22[%c0_155, %c0_156, %c0_157], %395 {strides = array<i32>} : memref<1x2x4xf32, #tpu.memory_space<vmem>>, vector<1x2x4xf32>,
    return
  }
  func.func @transform_0(%arg0: i32) -> (i32, i32, i32) {
    %c0_i32 = arith.constant 0 : i32
    %c0_i32_0 = arith.constant 0 : i32
    %c0_i32_1 = arith.constant 0 : i32
    return %arg0, %c0_i32, %c0_i32_0 : i32, i32, i32
  }
  func.func @transform_1(%arg0: i32) -> (i32, i32) {
    %c0_i32 = arith.constant 0 : i32
    %c0_i32_0 = arith.constant 0 : i32
    %c0_i32_1 = arith.constant 0 : i32
    return %c0_i32, %c0_i32_0 : i32, i32
  }
  func.func @transform_2(%arg0: i32) -> (i32, i32) {
    %c0_i32 = arith.constant 0 : i32
    %c0_i32_0 = arith.constant 0 : i32
    %c0_i32_1 = arith.constant 0 : i32
    return %c0_i32, %c0_i32_0 : i32, i32
  }
  func.func @transform_3(%arg0: i32) -> (i32, i32) {
    %c0_i32 = arith.constant 0 : i32
    %c0_i32_0 = arith.constant 0 : i32
    %c0_i32_1 = arith.constant 0 : i32
    return %c0_i32, %c0_i32_0 : i32, i32
  }
  func.func @transform_4(%arg0: i32) -> (i32, i32) {
    %c0_i32 = arith.constant 0 : i32
    %c0_i32_0 = arith.constant 0 : i32
    %c0_i32_1 = arith.constant 0 : i32
    return %c0_i32, %c0_i32_0 : i32, i32
  }
  func.func @transform_5(%arg0: i32) -> (i32, i32) {
    %c0_i32 = arith.constant 0 : i32
    %c0_i32_0 = arith.constant 0 : i32
    %c0_i32_1 = arith.constant 0 : i32
    return %c0_i32, %c0_i32_0 : i32, i32
  }
  func.func @transform_6(%arg0: i32) -> (i32, i32) {
    %c0_i32 = arith.constant 0 : i32
    %c0_i32_0 = arith.constant 0 : i32
    %c0_i32_1 = arith.constant 0 : i32
    return %c0_i32, %c0_i32_0 : i32, i32
  }
  func.func @transform_7(%arg0: i32) -> (i32, i32) {
    %c0_i32 = arith.constant 0 : i32
    %c0_i32_0 = arith.constant 0 : i32
    %c0_i32_1 = arith.constant 0 : i32
    return %c0_i32, %c0_i32_0 : i32, i32
  }
  func.func @transform_8(%arg0: i32) -> (i32, i32) {
    %c0_i32 = arith.constant 0 : i32
    %c0_i32_0 = arith.constant 0 : i32
    %c0_i32_1 = arith.constant 0 : i32
    return %c0_i32, %c0_i32_0 : i32, i32
  }
  func.func @transform_9(%arg0: i32) -> (i32, i32) {
    %c0_i32 = arith.constant 0 : i32
    %c0_i32_0 = arith.constant 0 : i32
    %c0_i32_1 = arith.constant 0 : i32
    return %c0_i32, %c0_i32_0 : i32, i32
  }
  func.func @transform_10(%arg0: i32) -> (i32, i32, i32) {
    %c0_i32 = arith.constant 0 : i32
    %c0_i32_0 = arith.constant 0 : i32
    %c0_i32_1 = arith.constant 0 : i32
    %c0_i32_2 = arith.constant 0 : i32
    return %c0_i32, %c0_i32_0, %c0_i32_1 : i32, i32, i32
  }
  func.func @transform_11(%arg0: i32) -> (i32, i32) {
    %c0_i32 = arith.constant 0 : i32
    %c0_i32_0 = arith.constant 0 : i32
    %c0_i32_1 = arith.constant 0 : i32
    return %c0_i32, %c0_i32_0 : i32, i32
  }
  func.func @transform_12(%arg0: i32) -> (i32, i32) {
    %c0_i32 = arith.constant 0 : i32
    %c0_i32_0 = arith.constant 0 : i32
    %c0_i32_1 = arith.constant 0 : i32
    return %c0_i32, %c0_i32_0 : i32, i32
  }
  func.func @transform_13(%arg0: i32) -> (i32, i32) {
    %c0_i32 = arith.constant 0 : i32
    %c0_i32_0 = arith.constant 0 : i32
    %c0_i32_1 = arith.constant 0 : i32
    return %c0_i32, %c0_i32_0 : i32, i32
  }
  func.func @transform_14(%arg0: i32) -> (i32, i32) {
    %c0_i32 = arith.constant 0 : i32
    %c0_i32_0 = arith.constant 0 : i32
    %c0_i32_1 = arith.constant 0 : i32
    return %c0_i32, %c0_i32_0 : i32, i32
  }
  func.func @transform_15(%arg0: i32) -> (i32, i32, i32) {
    %c0_i32 = arith.constant 0 : i32
    %c0_i32_0 = arith.constant 0 : i32
    %c0_i32_1 = arith.constant 0 : i32
    %c0_i32_2 = arith.constant 0 : i32
    return %c0_i32, %c0_i32_0, %c0_i32_1 : i32, i32, i32
  }
  func.func @transform_16(%arg0: i32) -> (i32, i32) {
    %c0_i32 = arith.constant 0 : i32
    %c0_i32_0 = arith.constant 0 : i32
    %c0_i32_1 = arith.constant 0 : i32
    return %c0_i32, %c0_i32_0 : i32, i32
  }
  func.func @transform_17(%arg0: i32) -> (i32, i32, i32) {
    %c0_i32 = arith.constant 0 : i32
    %c0_i32_0 = arith.constant 0 : i32
    %c0_i32_1 = arith.constant 0 : i32
    %c0_i32_2 = arith.constant 0 : i32
    return %c0_i32, %c0_i32_0, %c0_i32_1 : i32, i32, i32
  }
  func.func @transform_18(%arg0: i32) -> (i32, i32) {
    %c0_i32 = arith.constant 0 : i32
    %c0_i32_0 = arith.constant 0 : i32
    %c0_i32_1 = arith.constant 0 : i32
    return %c0_i32, %c0_i32_0 : i32, i32
  }
  func.func @transform_19(%arg0: i32) -> (i32, i32) {
    %c0_i32 = arith.constant 0 : i32
    %c0_i32_0 = arith.constant 0 : i32
    %c0_i32_1 = arith.constant 0 : i32
    return %c0_i32, %c0_i32_0 : i32, i32
  }
  func.func @transform_20(%arg0: i32) -> (i32, i32) {
    %c0_i32 = arith.constant 0 : i32
    %c0_i32_0 = arith.constant 0 : i32
    %c0_i32_1 = arith.constant 0 : i32
    return %c0_i32, %c0_i32_0 : i32, i32
  }
  func.func @transform_21(%arg0: i32) -> (i32, i32, i32) {
    %c0_i32 = arith.constant 0 : i32
    %c0_i32_0 = arith.constant 0 : i32
    %c0_i32_1 = arith.constant 0 : i32
    return %arg0, %c0_i32, %c0_i32_0 : i32, i32, i32
  }
}

</mosaic_0001>

<llo_original>
// kernel: net_classifier2_forward_batched.1
$region0: #{net_classifier2_forward_batched.1}
  #allocation0 [shape = 'u32[]', space=smem, size = 0x4, offset = 0x4, fixed_abs, tag = 'smem constant byte address 0x4 - core index']
  #allocation1 [shape = 'u32[144,128]{1,0:T(1,128)}', space=vmem, size = 0x12000, scoped, tag = 'internal scratch']
  %s0 = inlined_call_operand.vmem [shape: f32[4,8,3], index: 0, kind: input, shape index: {}]
  %s1 = inlined_call_operand.vmem [shape: s32[24,1], index: 1, kind: input, shape index: {}]
  %s2 = inlined_call_operand.vmem [shape: s32[24,1], index: 2, kind: input, shape index: {}]
  %s3 = inlined_call_operand.vmem [shape: s32[1,24], index: 3, kind: input, shape index: {}]
  %s4 = inlined_call_operand.vmem [shape: s32[1,8], index: 4, kind: input, shape index: {}]
  %s5 = inlined_call_operand.vmem [shape: f32[6,7], index: 5, kind: input, shape index: {}]
  %s6 = inlined_call_operand.vmem [shape: f32[1,7], index: 6, kind: input, shape index: {}]
  %s7 = inlined_call_operand.vmem [shape: f32[1,7], index: 7, kind: input, shape index: {}]
  %s8 = inlined_call_operand.vmem [shape: f32[7,28], index: 8, kind: input, shape index: {}]
  %s9 = inlined_call_operand.vmem [shape: f32[1,28], index: 9, kind: input, shape index: {}]
  %s10 = inlined_call_operand.vmem [shape: f32[4,7,7], index: 10, kind: input, shape index: {}]
  %s11 = inlined_call_operand.vmem [shape: f32[7,21], index: 11, kind: input, shape index: {}]
  %s12 = inlined_call_operand.vmem [shape: f32[1,21], index: 12, kind: input, shape index: {}]
  %s13 = inlined_call_operand.vmem [shape: f32[7,14], index: 13, kind: input, shape index: {}]
  %s14 = inlined_call_operand.vmem [shape: f32[1,14], index: 14, kind: input, shape index: {}]
  %s15 = inlined_call_operand.vmem [shape: f32[2,7,14], index: 15, kind: input, shape index: {}]
  %s16 = inlined_call_operand.vmem [shape: f32[2,14], index: 16, kind: input, shape index: {}]
  %s17 = inlined_call_operand.vmem [shape: f32[2,14,7], index: 17, kind: input, shape index: {}]
  %s18 = inlined_call_operand.vmem [shape: f32[20,7], index: 18, kind: input, shape index: {}]
  %s19 = inlined_call_operand.vmem [shape: f32[7,4], index: 19, kind: input, shape index: {}]
  %s20 = inlined_call_operand.vmem [shape: f32[1,4], index: 20, kind: input, shape index: {}]
  %s21 = inlined_call_operand.hbm [shape: f32[4,2,4], index: 21, kind: output, shape index: {}]
  %s22 = sld [smem:[#allocation0]]
  $region117: #{net_classifier2_forward_batched.1} parent=0
    _
  %s24 = ssub.s32 1, %s22
  %s25 = scalar_select 0, %s24, %s22
  $region1: #{net_classifier2_forward_batched.1} parent=0
    #allocation2 [shape = 'u8[2048]{0}', space=vmem, size = 0x800, scoped, tag = 'output window, operand 0']
    #allocation3 [shape = 's32[2]{0}', space=sflag, size = 0x8, scoped, tag = 'scoped memory for net_classifier2_forward_batched.1']
    %26 = vsyncpa [#allocation3], 0
    %s27 = scalar_lea.sflag [#allocation3], 1
    %28 = vsyncpa %s27, 0
    loop: start=0, step=1, limit=6
    $region2: #{net_classifier2_forward_batched.1} parent=1 // loop_pre_header
      _
    $region3: #{net_classifier2_forward_batched.1} parent=1 // loop_header
      %s30 = sphi 0, %s34
      %p31 = scmp.ge.s32.totalorder %s30, 6
      %s40 = sphi 0, %s42
      %s43 = sphi 0, %s40
      %s44 = sphi 0, %s43
      %s60 = sphi 0, %s44
      %s64 = sphi 0, %s64
      %s66 = sphi 0, %s64
      %s67 = sphi 0, %s66
      %s81 = sphi 0, %s67
      %s85 = sphi 0, %s85
      %s87 = sphi 0, %s85
      %s88 = sphi 0, %s87
      %s102 = sphi 0, %s88
      %s106 = sphi 0, %s106
      %s108 = sphi 0, %s106
      %s109 = sphi 0, %s108
      %s123 = sphi 0, %s109
      %s127 = sphi 0, %s127
      %s129 = sphi 0, %s127
      %s130 = sphi 0, %s129
      %s144 = sphi 0, %s130
      %s148 = sphi 0, %s148
      %s150 = sphi 0, %s148
      %s151 = sphi 0, %s150
      %s165 = sphi 0, %s151
      %s169 = sphi 0, %s169
      %s171 = sphi 0, %s169
      %s172 = sphi 0, %s171
      %s186 = sphi 0, %s172
      %s190 = sphi 0, %s190
      %s192 = sphi 0, %s190
      %s193 = sphi 0, %s192
      %s207 = sphi 0, %s193
      %s211 = sphi 0, %s211
      %s213 = sphi 0, %s211
      %s214 = sphi 0, %s213
      %s228 = sphi 0, %s214
      %s232 = sphi 0, %s232
      %s234 = sphi 0, %s232
      %s235 = sphi 0, %s234
      %s249 = sphi 0, %s235
      %s253 = sphi 0, %s253
      %s255 = sphi 0, %s253
      %s256 = sphi 0, %s255
      %s270 = sphi 0, %s256
      %s274 = sphi 0, %s274
      %s276 = sphi 0, %s274
      %s277 = sphi 0, %s276
      %s291 = sphi 0, %s277
      %s295 = sphi 0, %s295
      %s297 = sphi 0, %s295
      %s298 = sphi 0, %s297
      %s312 = sphi 0, %s298
      %s316 = sphi 0, %s316
      %s318 = sphi 0, %s316
      %s319 = sphi 0, %s318
      %s333 = sphi 0, %s319
      %s337 = sphi 0, %s337
      %s339 = sphi 0, %s337
      %s340 = sphi 0, %s339
      %s354 = sphi 0, %s340
      %s358 = sphi 0, %s358
      %s360 = sphi 0, %s358
      %s361 = sphi 0, %s360
      %s375 = sphi 0, %s361
      %s379 = sphi 0, %s379
      %s381 = sphi 0, %s379
      %s382 = sphi 0, %s381
      %s396 = sphi 0, %s382
      %s400 = sphi 0, %s400
      %s402 = sphi 0, %s400
      %s403 = sphi 0, %s402
      %s417 = sphi 0, %s403
      %s421 = sphi 0, %s421
      %s423 = sphi 0, %s421
      %s424 = sphi 0, %s423
      %s438 = sphi 0, %s424
      %s442 = sphi 0, %s442
      %s444 = sphi 0, %s442
      %s445 = sphi 0, %s444
      %s459 = sphi 0, %s445
      %s463 = sphi 0, %s463
      %s465 = sphi 0, %s463
      %s466 = sphi 0, %s465
      %s480 = sphi 0, %s466
      %s486 = sphi 0, %s488
      %s489 = sphi 0, %s486
      %s490 = sphi 0, %s489
      %s506 = sphi 0, %s490
    $region4: #{net_classifier2_forward_batched.1} parent=1 // loop_header_branch
      %33 = sbr.rel (%p31) target = $region8
    $region5: #{net_classifier2_forward_batched.1} parent=1 // loop_body
      %s35 = ssub.s32 %s30, 1
      %s36 = ssub.s32 %s30, 2
      %s37 = sadd.s32 %s30, 1
      %s38 = ssub.s32 %s30, %s37
      %p39 = scmp.eq.s32.totalorder %s38, 0
      %s41 = sadd.s32 %s40, 1
      %s42 = scalar_select %p39, %s40, %s41
      %p45 = pneg %p39
      %p46 = scmp.eq.s32.totalorder %s30, 3
      %p47 = por %p45, %p46
      %p48 = scmp.ne.s32.totalorder %s40, %s43
      %p49 = scmp.eq.s32.totalorder %s30, 0
      %p50 = por %p48, %p49
      %p51 = scmp.ne.s32.totalorder %s40, %s43
      %p52 = scmp.eq.s32.totalorder %s35, 3
      %p53 = por %p51, %p52
      %p54 = scmp.ne.s32.totalorder %s43, %s44
      %p55 = scmp.eq.s32.totalorder %s35, 0
      %p56 = por %p54, %p55
      %p57 = scmp.ne.s32.totalorder %s43, %s44
      %p58 = scmp.eq.s32.totalorder %s36, 3
      %p59 = por %p57, %p58
      %p61 = scmp.ne.s32.totalorder %s44, %s60
      %p62 = scmp.eq.s32.totalorder %s36, 0
      %p63 = por %p61, %p62
      %s65 = sadd.s32 %s64, 1
      %p68 = scmp.eq.s32.totalorder %s30, 3
      %p69 = scmp.ne.s32.totalorder %s64, %s66
      %p70 = scmp.eq.s32.totalorder %s30, 0
      %p71 = por %p69, %p70
      %p72 = scmp.ne.s32.totalorder %s64, %s66
      %p73 = scmp.eq.s32.totalorder %s35, 3
      %p74 = por %p72, %p73
      %p75 = scmp.ne.s32.totalorder %s66, %s67
      %p76 = scmp.eq.s32.totalorder %s35, 0
      %p77 = por %p75, %p76
      %p78 = scmp.ne.s32.totalorder %s66, %s67
      %p79 = scmp.eq.s32.totalorder %s36, 3
      %p80 = por %p78, %p79
      %p82 = scmp.ne.s32.totalorder %s67, %s81
      %p83 = scmp.eq.s32.totalorder %s36, 0
      %p84 = por %p82, %p83
      %s86 = sadd.s32 %s85, 1
      %p89 = scmp.eq.s32.totalorder %s30, 3
      %p90 = scmp.ne.s32.totalorder %s85, %s87
      %p91 = scmp.eq.s32.totalorder %s30, 0
      %p92 = por %p90, %p91
      %p93 = scmp.ne.s32.totalorder %s85, %s87
      %p94 = scmp.eq.s32.totalorder %s35, 3
      %p95 = por %p93, %p94
      %p96 = scmp.ne.s32.totalorder %s87, %s88
      %p97 = scmp.eq.s32.totalorder %s35, 0
      %p98 = por %p96, %p97
      %p99 = scmp.ne.s32.totalorder %s87, %s88
      %p100 = scmp.eq.s32.totalorder %s36, 3
      %p101 = por %p99, %p100
      %p103 = scmp.ne.s32.totalorder %s88, %s102
      %p104 = scmp.eq.s32.totalorder %s36, 0
      %p105 = por %p103, %p104
      %s107 = sadd.s32 %s106, 1
      %p110 = scmp.eq.s32.totalorder %s30, 3
      %p111 = scmp.ne.s32.totalorder %s106, %s108
      %p112 = scmp.eq.s32.totalorder %s30, 0
      %p113 = por %p111, %p112
      %p114 = scmp.ne.s32.totalorder %s106, %s108
      %p115 = scmp.eq.s32.totalorder %s35, 3
      %p116 = por %p114, %p115
      %p117 = scmp.ne.s32.totalorder %s108, %s109
      %p118 = scmp.eq.s32.totalorder %s35, 0
      %p119 = por %p117, %p118
      %p120 = scmp.ne.s32.totalorder %s108, %s109
      %p121 = scmp.eq.s32.totalorder %s36, 3
      %p122 = por %p120, %p121
      %p124 = scmp.ne.s32.totalorder %s109, %s123
      %p125 = scmp.eq.s32.totalorder %s36, 0
      %p126 = por %p124, %p125
      %s128 = sadd.s32 %s127, 1
      %p131 = scmp.eq.s32.totalorder %s30, 3
      %p132 = scmp.ne.s32.totalorder %s127, %s129
      %p133 = scmp.eq.s32.totalorder %s30, 0
      %p134 = por %p132, %p133
      %p135 = scmp.ne.s32.totalorder %s127, %s129
      %p136 = scmp.eq.s32.totalorder %s35, 3
      %p137 = por %p135, %p136
      %p138 = scmp.ne.s32.totalorder %s129, %s130
      %p139 = scmp.eq.s32.totalorder %s35, 0
      %p140 = por %p138, %p139
      %p141 = scmp.ne.s32.totalorder %s129, %s130
      %p142 = scmp.eq.s32.totalorder %s36, 3
      %p143 = por %p141, %p142
      %p145 = scmp.ne.s32.totalorder %s130, %s144
      %p146 = scmp.eq.s32.totalorder %s36, 0
      %p147 = por %p145, %p146
      %s149 = sadd.s32 %s148, 1
      %p152 = scmp.eq.s32.totalorder %s30, 3
      %p153 = scmp.ne.s32.totalorder %s148, %s150
      %p154 = scmp.eq.s32.totalorder %s30, 0
      %p155 = por %p153, %p154
      %p156 = scmp.ne.s32.totalorder %s148, %s150
      %p157 = scmp.eq.s32.totalorder %s35, 3
      %p158 = por %p156, %p157
      %p159 = scmp.ne.s32.totalorder %s150, %s151
      %p160 = scmp.eq.s32.totalorder %s35, 0
      %p161 = por %p159, %p160
      %p162 = scmp.ne.s32.totalorder %s150, %s151
      %p163 = scmp.eq.s32.totalorder %s36, 3
      %p164 = por %p162, %p163
      %p166 = scmp.ne.s32.totalorder %s151, %s165
      %p167 = scmp.eq.s32.totalorder %s36, 0
      %p168 = por %p166, %p167
      %s170 = sadd.s32 %s169, 1
      %p173 = scmp.eq.s32.totalorder %s30, 3
      %p174 = scmp.ne.s32.totalorder %s169, %s171
      %p175 = scmp.eq.s32.totalorder %s30, 0
      %p176 = por %p174, %p175
      %p177 = scmp.ne.s32.totalorder %s169, %s171
      %p178 = scmp.eq.s32.totalorder %s35, 3
      %p179 = por %p177, %p178
      %p180 = scmp.ne.s32.totalorder %s171, %s172
      %p181 = scmp.eq.s32.totalorder %s35, 0
      %p182 = por %p180, %p181
      %p183 = scmp.ne.s32.totalorder %s171, %s172
      %p184 = scmp.eq.s32.totalorder %s36, 3
      %p185 = por %p183, %p184
      %p187 = scmp.ne.s32.totalorder %s172, %s186
      %p188 = scmp.eq.s32.totalorder %s36, 0
      %p189 = por %p187, %p188
      %s191 = sadd.s32 %s190, 1
      %p194 = scmp.eq.s32.totalorder %s30, 3
      %p195 = scmp.ne.s32.totalorder %s190, %s192
      %p196 = scmp.eq.s32.totalorder %s30, 0
      %p197 = por %p195, %p196
      %p198 = scmp.ne.s32.totalorder %s190, %s192
      %p199 = scmp.eq.s32.totalorder %s35, 3
      %p200 = por %p198, %p199
      %p201 = scmp.ne.s32.totalorder %s192, %s193
      %p202 = scmp.eq.s32.totalorder %s35, 0
      %p203 = por %p201, %p202
      %p204 = scmp.ne.s32.totalorder %s192, %s193
      %p205 = scmp.eq.s32.totalorder %s36, 3
      %p206 = por %p204, %p205
      %p208 = scmp.ne.s32.totalorder %s193, %s207
      %p209 = scmp.eq.s32.totalorder %s36, 0
      %p210 = por %p208, %p209
      %s212 = sadd.s32 %s211, 1
      %p215 = scmp.eq.s32.totalorder %s30, 3
      %p216 = scmp.ne.s32.totalorder %s211, %s213
      %p217 = scmp.eq.s32.totalorder %s30, 0
      %p218 = por %p216, %p217
      %p219 = scmp.ne.s32.totalorder %s211, %s213
      %p220 = scmp.eq.s32.totalorder %s35, 3
      %p221 = por %p219, %p220
      %p222 = scmp.ne.s32.totalorder %s213, %s214
      %p223 = scmp.eq.s32.totalorder %s35, 0
      %p224 = por %p222, %p223
      %p225 = scmp.ne.s32.totalorder %s213, %s214
      %p226 = scmp.eq.s32.totalorder %s36, 3
      %p227 = por %p225, %p226
      %p229 = scmp.ne.s32.totalorder %s214, %s228
      %p230 = scmp.eq.s32.totalorder %s36, 0
      %p231 = por %p229, %p230
      %s233 = sadd.s32 %s232, 1
      %p236 = scmp.eq.s32.totalorder %s30, 3
      %p237 = scmp.ne.s32.totalorder %s232, %s234
      %p238 = scmp.eq.s32.totalorder %s30, 0
      %p239 = por %p237, %p238
      %p240 = scmp.ne.s32.totalorder %s232, %s234
      %p241 = scmp.eq.s32.totalorder %s35, 3
      %p242 = por %p240, %p241
      %p243 = scmp.ne.s32.totalorder %s234, %s235
      %p244 = scmp.eq.s32.totalorder %s35, 0
      %p245 = por %p243, %p244
      %p246 = scmp.ne.s32.totalorder %s234, %s235
      %p247 = scmp.eq.s32.totalorder %s36, 3
      %p248 = por %p246, %p247
      %p250 = scmp.ne.s32.totalorder %s235, %s249
      %p251 = scmp.eq.s32.totalorder %s36, 0
      %p252 = por %p250, %p251
      %s254 = sadd.s32 %s253, 1
      %p257 = scmp.eq.s32.totalorder %s30, 3
      %p258 = scmp.ne.s32.totalorder %s253, %s255
      %p259 = scmp.eq.s32.totalorder %s30, 0
      %p260 = por %p258, %p259
      %p261 = scmp.ne.s32.totalorder %s253, %s255
      %p262 = scmp.eq.s32.totalorder %s35, 3
      %p263 = por %p261, %p262
      %p264 = scmp.ne.s32.totalorder %s255, %s256
      %p265 = scmp.eq.s32.totalorder %s35, 0
      %p266 = por %p264, %p265
      %p267 = scmp.ne.s32.totalorder %s255, %s256
      %p268 = scmp.eq.s32.totalorder %s36, 3
      %p269 = por %p267, %p268
      %p271 = scmp.ne.s32.totalorder %s256, %s270
      %p272 = scmp.eq.s32.totalorder %s36, 0
      %p273 = por %p271, %p272
      %s275 = sadd.s32 %s274, 1
      %p278 = scmp.eq.s32.totalorder %s30, 3
      %p279 = scmp.ne.s32.totalorder %s274, %s276
      %p280 = scmp.eq.s32.totalorder %s30, 0
      %p281 = por %p279, %p280
      %p282 = scmp.ne.s32.totalorder %s274, %s276
      %p283 = scmp.eq.s32.totalorder %s35, 3
      %p284 = por %p282, %p283
      %p285 = scmp.ne.s32.totalorder %s276, %s277
      %p286 = scmp.eq.s32.totalorder %s35, 0
      %p287 = por %p285, %p286
      %p288 = scmp.ne.s32.totalorder %s276, %s277
      %p289 = scmp.eq.s32.totalorder %s36, 3
      %p290 = por %p288, %p289
      %p292 = scmp.ne.s32.totalorder %s277, %s291
      %p293 = scmp.eq.s32.totalorder %s36, 0
      %p294 = por %p292, %p293
      %s296 = sadd.s32 %s295, 1
      %p299 = scmp.eq.s32.totalorder %s30, 3
      %p300 = scmp.ne.s32.totalorder %s295, %s297
      %p301 = scmp.eq.s32.totalorder %s30, 0
      %p302 = por %p300, %p301
      %p303 = scmp.ne.s32.totalorder %s295, %s297
      %p304 = scmp.eq.s32.totalorder %s35, 3
      %p305 = por %p303, %p304
      %p306 = scmp.ne.s32.totalorder %s297, %s298
      %p307 = scmp.eq.s32.totalorder %s35, 0
      %p308 = por %p306, %p307
      %p309 = scmp.ne.s32.totalorder %s297, %s298
      %p310 = scmp.eq.s32.totalorder %s36, 3
      %p311 = por %p309, %p310
      %p313 = scmp.ne.s32.totalorder %s298, %s312
      %p314 = scmp.eq.s32.totalorder %s36, 0
      %p315 = por %p313, %p314
      %s317 = sadd.s32 %s316, 1
      %p320 = scmp.eq.s32.totalorder %s30, 3
      %p321 = scmp.ne.s32.totalorder %s316, %s318
      %p322 = scmp.eq.s32.totalorder %s30, 0
      %p323 = por %p321, %p322
      %p324 = scmp.ne.s32.totalorder %s316, %s318
      %p325 = scmp.eq.s32.totalorder %s35, 3
      %p326 = por %p324, %p325
      %p327 = scmp.ne.s32.totalorder %s318, %s319
      %p328 = scmp.eq.s32.totalorder %s35, 0
      %p329 = por %p327, %p328
      %p330 = scmp.ne.s32.totalorder %s318, %s319
      %p331 = scmp.eq.s32.totalorder %s36, 3
      %p332 = por %p330, %p331
      %p334 = scmp.ne.s32.totalorder %s319, %s333
      %p335 = scmp.eq.s32.totalorder %s36, 0
      %p336 = por %p334, %p335
      %s338 = sadd.s32 %s337, 1
      %p341 = scmp.eq.s32.totalorder %s30, 3
      %p342 = scmp.ne.s32.totalorder %s337, %s339
      %p343 = scmp.eq.s32.totalorder %s30, 0
      %p344 = por %p342, %p343
      %p345 = scmp.ne.s32.totalorder %s337, %s339
      %p346 = scmp.eq.s32.totalorder %s35, 3
      %p347 = por %p345, %p346
      %p348 = scmp.ne.s32.totalorder %s339, %s340
      %p349 = scmp.eq.s32.totalorder %s35, 0
      %p350 = por %p348, %p349
      %p351 = scmp.ne.s32.totalorder %s339, %s340
      %p352 = scmp.eq.s32.totalorder %s36, 3
      %p353 = por %p351, %p352
      %p355 = scmp.ne.s32.totalorder %s340, %s354
      %p356 = scmp.eq.s32.totalorder %s36, 0
      %p357 = por %p355, %p356
      %s359 = sadd.s32 %s358, 1
      %p362 = scmp.eq.s32.totalorder %s30, 3
      %p363 = scmp.ne.s32.totalorder %s358, %s360
      %p364 = scmp.eq.s32.totalorder %s30, 0
      %p365 = por %p363, %p364
      %p366 = scmp.ne.s32.totalorder %s358, %s360
      %p367 = scmp.eq.s32.totalorder %s35, 3
      %p368 = por %p366, %p367
      %p369 = scmp.ne.s32.totalorder %s360, %s361
      %p370 = scmp.eq.s32.totalorder %s35, 0
      %p371 = por %p369, %p370
      %p372 = scmp.ne.s32.totalorder %s360, %s361
      %p373 = scmp.eq.s32.totalorder %s36, 3
      %p374 = por %p372, %p373
      %p376 = scmp.ne.s32.totalorder %s361, %s375
      %p377 = scmp.eq.s32.totalorder %s36, 0
      %p378 = por %p376, %p377
      %s380 = sadd.s32 %s379, 1
      %p383 = scmp.eq.s32.totalorder %s30, 3
      %p384 = scmp.ne.s32.totalorder %s379, %s381
      %p385 = scmp.eq.s32.totalorder %s30, 0
      %p386 = por %p384, %p385
      %p387 = scmp.ne.s32.totalorder %s379, %s381
      %p388 = scmp.eq.s32.totalorder %s35, 3
      %p389 = por %p387, %p388
      %p390 = scmp.ne.s32.totalorder %s381, %s382
      %p391 = scmp.eq.s32.totalorder %s35, 0
      %p392 = por %p390, %p391
      %p393 = scmp.ne.s32.totalorder %s381, %s382
      %p394 = scmp.eq.s32.totalorder %s36, 3
      %p395 = por %p393, %p394
      %p397 = scmp.ne.s32.totalorder %s382, %s396
      %p398 = scmp.eq.s32.totalorder %s36, 0
      %p399 = por %p397, %p398
      %s401 = sadd.s32 %s400, 1
      %p404 = scmp.eq.s32.totalorder %s30, 3
      %p405 = scmp.ne.s32.totalorder %s400, %s402
      %p406 = scmp.eq.s32.totalorder %s30, 0
      %p407 = por %p405, %p406
      %p408 = scmp.ne.s32.totalorder %s400, %s402
      %p409 = scmp.eq.s32.totalorder %s35, 3
      %p410 = por %p408, %p409
      %p411 = scmp.ne.s32.totalorder %s402, %s403
      %p412 = scmp.eq.s32.totalorder %s35, 0
      %p413 = por %p411, %p412
      %p414 = scmp.ne.s32.totalorder %s402, %s403
      %p415 = scmp.eq.s32.totalorder %s36, 3
      %p416 = por %p414, %p415
      %p418 = scmp.ne.s32.totalorder %s403, %s417
      %p419 = scmp.eq.s32.totalorder %s36, 0
      %p420 = por %p418, %p419
      %s422 = sadd.s32 %s421, 1
      %p425 = scmp.eq.s32.totalorder %s30, 3
      %p426 = scmp.ne.s32.totalorder %s421, %s423
      %p427 = scmp.eq.s32.totalorder %s30, 0
      %p428 = por %p426, %p427
      %p429 = scmp.ne.s32.totalorder %s421, %s423
      %p430 = scmp.eq.s32.totalorder %s35, 3
      %p431 = por %p429, %p430
      %p432 = scmp.ne.s32.totalorder %s423, %s424
      %p433 = scmp.eq.s32.totalorder %s35, 0
      %p434 = por %p432, %p433
      %p435 = scmp.ne.s32.totalorder %s423, %s424
      %p436 = scmp.eq.s32.totalorder %s36, 3
      %p437 = por %p435, %p436
      %p439 = scmp.ne.s32.totalorder %s424, %s438
      %p440 = scmp.eq.s32.totalorder %s36, 0
      %p441 = por %p439, %p440
      %s443 = sadd.s32 %s442, 1
      %p446 = scmp.eq.s32.totalorder %s30, 3
      %p447 = scmp.ne.s32.totalorder %s442, %s444
      %p448 = scmp.eq.s32.totalorder %s30, 0
      %p449 = por %p447, %p448
      %p450 = scmp.ne.s32.totalorder %s442, %s444
      %p451 = scmp.eq.s32.totalorder %s35, 3
      %p452 = por %p450, %p451
      %p453 = scmp.ne.s32.totalorder %s444, %s445
      %p454 = scmp.eq.s32.totalorder %s35, 0
      %p455 = por %p453, %p454
      %p456 = scmp.ne.s32.totalorder %s444, %s445
      %p457 = scmp.eq.s32.totalorder %s36, 3
      %p458 = por %p456, %p457
      %p460 = scmp.ne.s32.totalorder %s445, %s459
      %p461 = scmp.eq.s32.totalorder %s36, 0
      %p462 = por %p460, %p461
      %s464 = sadd.s32 %s463, 1
      %p467 = scmp.eq.s32.totalorder %s30, 3
      %p468 = scmp.ne.s32.totalorder %s463, %s465
      %p469 = scmp.eq.s32.totalorder %s30, 0
      %p470 = por %p468, %p469
      %p471 = scmp.ne.s32.totalorder %s463, %s465
      %p472 = scmp.eq.s32.totalorder %s35, 3
      %p473 = por %p471, %p472
      %p474 = scmp.ne.s32.totalorder %s465, %s466
      %p475 = scmp.eq.s32.totalorder %s35, 0
      %p476 = por %p474, %p475
      %p477 = scmp.ne.s32.totalorder %s465, %s466
      %p478 = scmp.eq.s32.totalorder %s36, 3
      %p479 = por %p477, %p478
      %p481 = scmp.ne.s32.totalorder %s466, %s480
      %p482 = scmp.eq.s32.totalorder %s36, 0
      %p483 = por %p481, %p482
      %s484 = ssub.s32 %s30, %s37
      %p485 = scmp.eq.s32.totalorder %s484, 0
      %s487 = sadd.s32 %s486, 1
      %s488 = scalar_select %p485, %s486, %s487
      %p491 = pneg %p485
      %p492 = scmp.eq.s32.totalorder %s30, 3
      %p493 = por %p491, %p492
      %p494 = scmp.ne.s32.totalorder %s486, %s489
      %p495 = scmp.eq.s32.totalorder %s30, 0
      %p496 = por %p494, %p495
      %p497 = scmp.ne.s32.totalorder %s486, %s489
      %p498 = scmp.eq.s32.totalorder %s35, 3
      %p499 = por %p497, %p498
      %p500 = scmp.ne.s32.totalorder %s489, %s490
      %p501 = scmp.eq.s32.totalorder %s35, 0
      %p502 = por %p500, %p501
      %p503 = scmp.ne.s32.totalorder %s489, %s490
      %p504 = scmp.eq.s32.totalorder %s36, 3
      %p505 = por %p503, %p504
      %p507 = scmp.ne.s32.totalorder %s490, %s506
      %p508 = scmp.eq.s32.totalorder %s36, 0
      %p509 = por %p507, %p508
      %p510 = scmp.le.s32.totalorder 1, %s30
      %p511 = scmp.lt.s32.totalorder %s30, 5
      %p512 = pnand %p510, %p511
      %p513 = pneg %p512
      // Predicated region
      $region9: #{net_classifier2_forward_batched.1} parent=5 // pred_check
        _
      $region10: #{net_classifier2_forward_batched.1} parent=5 // pred_check_branch
        %515 = sbr.rel (%p512) target = $region12
      $region11: #{net_classifier2_forward_batched.1} parent=5 // pred_region
        %s516 = ssub.s32 %s30, 1
        // Predicated region
        $region13: #{net_classifier2_forward_batched.1} parent=11 // pred_check
          %p517 = pneg %p77
        $region14: #{net_classifier2_forward_batched.1} parent=11 // pred_check_branch
          %519 = sbr.rel (%p517) target = $region16
        $region15: #{net_classifier2_forward_batched.1} parent=11 // pred_region
          _
        $region16: #{net_classifier2_forward_batched.1} parent=11 // pred_fallthru
          _
        // Predicated region
        $region17: #{net_classifier2_forward_batched.1} parent=11 // pred_check
          %p520 = pneg %p98
        $region18: #{net_classifier2_forward_batched.1} parent=11 // pred_check_branch
          %522 = sbr.rel (%p520) target = $region20
        $region19: #{net_classifier2_forward_batched.1} parent=11 // pred_region
          _
        $region20: #{net_classifier2_forward_batched.1} parent=11 // pred_fallthru
          _
        // Predicated region
        $region21: #{net_classifier2_forward_batched.1} parent=11 // pred_check
          %p523 = pneg %p119
        $region22: #{net_classifier2_forward_batched.1} parent=11 // pred_check_branch
          %525 = sbr.rel (%p523) target = $region24
        $region23: #{net_classifier2_forward_batched.1} parent=11 // pred_region
          _
        $region24: #{net_classifier2_forward_batched.1} parent=11 // pred_fallthru
          _
        // Predicated region
        $region25: #{net_classifier2_forward_batched.1} parent=11 // pred_check
          %p526 = pneg %p140
        $region26: #{net_classifier2_forward_batched.1} parent=11 // pred_check_branch
          %528 = sbr.rel (%p526) target = $region28
        $region27: #{net_classifier2_forward_batched.1} parent=11 // pred_region
          _
        $region28: #{net_classifier2_forward_batched.1} parent=11 // pred_fallthru
          _
        // Predicated region
        $region29: #{net_classifier2_forward_batched.1} parent=11 // pred_check
          %p529 = pneg %p161
        $region30: #{net_classifier2_forward_batched.1} parent=11 // pred_check_branch
          %531 = sbr.rel (%p529) target = $region32
        $region31: #{net_classifier2_forward_batched.1} parent=11 // pred_region
          _
        $region32: #{net_classifier2_forward_batched.1} parent=11 // pred_fallthru
          _
        // Predicated region
        $region33: #{net_classifier2_forward_batched.1} parent=11 // pred_check
          %p532 = pneg %p182
        $region34: #{net_classifier2_forward_batched.1} parent=11 // pred_check_branch
          %534 = sbr.rel (%p532) target = $region36
        $region35: #{net_classifier2_forward_batched.1} parent=11 // pred_region
          _
        $region36: #{net_classifier2_forward_batched.1} parent=11 // pred_fallthru
          _
        // Predicated region
        $region37: #{net_classifier2_forward_batched.1} parent=11 // pred_check
          %p535 = pneg %p203
        $region38: #{net_classifier2_forward_batched.1} parent=11 // pred_check_branch
          %537 = sbr.rel (%p535) target = $region40
        $region39: #{net_classifier2_forward_batched.1} parent=11 // pred_region
          _
        $region40: #{net_classifier2_forward_batched.1} parent=11 // pred_fallthru
          _
        // Predicated region
        $region41: #{net_classifier2_forward_batched.1} parent=11 // pred_check
          %p538 = pneg %p224
        $region42: #{net_classifier2_forward_batched.1} parent=11 // pred_check_branch
          %540 = sbr.rel (%p538) target = $region44
        $region43: #{net_classifier2_forward_batched.1} parent=11 // pred_region
          _
        $region44: #{net_classifier2_forward_batched.1} parent=11 // pred_fallthru
          _
        // Predicated region
        $region45: #{net_classifier2_forward_batched.1} parent=11 // pred_check
          %p541 = pneg %p245
        $region46: #{net_classifier2_forward_batched.1} parent=11 // pred_check_branch
          %543 = sbr.rel (%p541) target = $region48
        $region47: #{net_classifier2_forward_batched.1} parent=11 // pred_region
          _
        $region48: #{net_classifier2_forward_batched.1} parent=11 // pred_fallthru
          _
        // Predicated region
        $region49: #{net_classifier2_forward_batched.1} parent=11 // pred_check
          %p544 = pneg %p266
        $region50: #{net_classifier2_forward_batched.1} parent=11 // pred_check_branch
          %546 = sbr.rel (%p544) target = $region52
        $region51: #{net_classifier2_forward_batched.1} parent=11 // pred_region
          _
        $region52: #{net_classifier2_forward_batched.1} parent=11 // pred_fallthru
          _
        // Predicated region
        $region53: #{net_classifier2_forward_batched.1} parent=11 // pred_check
          %p547 = pneg %p287
        $region54: #{net_classifier2_forward_batched.1} parent=11 // pred_check_branch
          %549 = sbr.rel (%p547) target = $region56
        $region55: #{net_classifier2_forward_batched.1} parent=11 // pred_region
          _
        $region56: #{net_classifier2_forward_batched.1} parent=11 // pred_fallthru
          _
        // Predicated region
        $region57: #{net_classifier2_forward_batched.1} parent=11 // pred_check
          %p550 = pneg %p308
        $region58: #{net_classifier2_forward_batched.1} parent=11 // pred_check_branch
          %552 = sbr.rel (%p550) target = $region60
        $region59: #{net_classifier2_forward_batched.1} parent=11 // pred_region
          _
        $region60: #{net_classifier2_forward_batched.1} parent=11 // pred_fallthru
          _
        // Predicated region
        $region61: #{net_classifier2_forward_batched.1} parent=11 // pred_check
          %p553 = pneg %p329
        $region62: #{net_classifier2_forward_batched.1} parent=11 // pred_check_branch
          %555 = sbr.rel (%p553) target = $region64
        $region63: #{net_classifier2_forward_batched.1} parent=11 // pred_region
          _
        $region64: #{net_classifier2_forward_batched.1} parent=11 // pred_fallthru
          _
        // Predicated region
        $region65: #{net_classifier2_forward_batched.1} parent=11 // pred_check
          %p556 = pneg %p350
        $region66: #{net_classifier2_forward_batched.1} parent=11 // pred_check_branch
          %558 = sbr.rel (%p556) target = $region68
        $region67: #{net_classifier2_forward_batched.1} parent=11 // pred_region
          _
        $region68: #{net_classifier2_forward_batched.1} parent=11 // pred_fallthru
          _
        // Predicated region
        $region69: #{net_classifier2_forward_batched.1} parent=11 // pred_check
          %p559 = pneg %p371
        $region70: #{net_classifier2_forward_batched.1} parent=11 // pred_check_branch
          %561 = sbr.rel (%p559) target = $region72
        $region71: #{net_classifier2_forward_batched.1} parent=11 // pred_region
          _
        $region72: #{net_classifier2_forward_batched.1} parent=11 // pred_fallthru
          _
        // Predicated region
        $region73: #{net_classifier2_forward_batched.1} parent=11 // pred_check
          %p562 = pneg %p392
        $region74: #{net_classifier2_forward_batched.1} parent=11 // pred_check_branch
          %564 = sbr.rel (%p562) target = $region76
        $region75: #{net_classifier2_forward_batched.1} parent=11 // pred_region
          _
        $region76: #{net_classifier2_forward_batched.1} parent=11 // pred_fallthru
          _
        // Predicated region
        $region77: #{net_classifier2_forward_batched.1} parent=11 // pred_check
          %p565 = pneg %p413
        $region78: #{net_classifier2_forward_batched.1} parent=11 // pred_check_branch
          %567 = sbr.rel (%p565) target = $region80
        $region79: #{net_classifier2_forward_batched.1} parent=11 // pred_region
          _
        $region80: #{net_classifier2_forward_batched.1} parent=11 // pred_fallthru
          _
        // Predicated region
        $region81: #{net_classifier2_forward_batched.1} parent=11 // pred_check
          %p568 = pneg %p434
        $region82: #{net_classifier2_forward_batched.1} parent=11 // pred_check_branch
          %570 = sbr.rel (%p568) target = $region84
        $region83: #{net_classifier2_forward_batched.1} parent=11 // pred_region
          _
        $region84: #{net_classifier2_forward_batched.1} parent=11 // pred_fallthru
          _
        // Predicated region
        $region85: #{net_classifier2_forward_batched.1} parent=11 // pred_check
          %p571 = pneg %p455
        $region86: #{net_classifier2_forward_batched.1} parent=11 // pred_check_branch
          %573 = sbr.rel (%p571) target = $region88
        $region87: #{net_classifier2_forward_batched.1} parent=11 // pred_region
          _
        $region88: #{net_classifier2_forward_batched.1} parent=11 // pred_fallthru
          _
        // Predicated region
        $region89: #{net_classifier2_forward_batched.1} parent=11 // pred_check
          %p574 = pneg %p476
        $region90: #{net_classifier2_forward_batched.1} parent=11 // pred_check_branch
          %576 = sbr.rel (%p574) target = $region92
        $region91: #{net_classifier2_forward_batched.1} parent=11 // pred_region
          _
        $region92: #{net_classifier2_forward_batched.1} parent=11 // pred_fallthru
          _
      $region12: #{net_classifier2_forward_batched.1} parent=5 // pred_fallthru
        _
      %p577 = scmp.lt.s32.totalorder %s30, 4
      // Predicated region
      $region93: #{net_classifier2_forward_batched.1} parent=5 // pred_check
        %p578 = pneg %p577
      $region94: #{net_classifier2_forward_batched.1} parent=5 // pred_check_branch
        %580 = sbr.rel (%p578) target = $region96
      $region95: #{net_classifier2_forward_batched.1} parent=5 // pred_region
        // Predicated region
        $region97: #{net_classifier2_forward_batched.1} parent=95 // pred_check
          %p581 = pneg %p50
        $region98: #{net_classifier2_forward_batched.1} parent=95 // pred_check_branch
          %583 = sbr.rel (%p581) target = $region100
        $region99: #{net_classifier2_forward_batched.1} parent=95 // pred_region
          %p584 = scmp.lt.s32.totalorder %s30, 3
          %s585 = scalar_select %p584, %s30, 3
          %s586 = smul.addr %s585, 8
          %s587 = scalar_lea.vmem %s0, %s586
        $region100: #{net_classifier2_forward_batched.1} parent=95 // pred_fallthru
          _
      $region96: #{net_classifier2_forward_batched.1} parent=5 // pred_fallthru
        _
      %p588 = scmp.le.s32.totalorder 1, %s30
      %p589 = scmp.lt.s32.totalorder %s30, 5
      %p590 = pnand %p588, %p589
      %p591 = pneg %p590
      // Predicated region
      $region101: #{net_classifier2_forward_batched.1} parent=5 // pred_check
        _
      $region102: #{net_classifier2_forward_batched.1} parent=5 // pred_check_branch
        %593 = sbr.rel (%p590) target = $region104
      $region103: #{net_classifier2_forward_batched.1} parent=5 // pred_region
        %s594 = ssub.s32 %s30, 1
        %p595 = scmp.lt.s32.totalorder %s35, 3
        %s596 = scalar_select %p595, %s35, 3
        %s597 = smul.addr %s596, 8
        %s598 = scalar_lea.vmem %s0, %s597
        %p599 = pneg %p56
        %p600 = pneg %p53
        %p601 = pneg %p77
        %p602 = pneg %p74
        %p603 = pneg %p98
        %p604 = pneg %p95
        %p605 = pneg %p119
        %p606 = pneg %p116
        %p607 = pneg %p140
        %p608 = pneg %p137
        %p609 = pneg %p161
        %p610 = pneg %p158
        %p611 = pneg %p182
        %p612 = pneg %p179
        %p613 = pneg %p203
        %p614 = pneg %p200
        %p615 = pneg %p224
        %p616 = pneg %p221
        %p617 = pneg %p245
        %p618 = pneg %p242
        %p619 = pneg %p266
        %p620 = pneg %p263
        %p621 = pneg %p287
        %p622 = pneg %p284
        %p623 = pneg %p308
        %p624 = pneg %p305
        %p625 = pneg %p329
        %p626 = pneg %p326
        %p627 = pneg %p350
        %p628 = pneg %p347
        %p629 = pneg %p371
        %p630 = pneg %p368
        %p631 = pneg %p392
        %p632 = pneg %p389
        %p633 = pneg %p413
        %p634 = pneg %p410
        %p635 = pneg %p434
        %p636 = pneg %p431
        %p637 = pneg %p455
        %p638 = pneg %p452
        %p639 = pneg %p476
        %p640 = pneg %p473
        %p641 = pneg %p502
        %p642 = pneg %p499
        %s643 = sand.u32 %s489, 1
        %s644 = scalar_lea.sflag [#allocation3], %s643
        %s645 = sand.u32 %s489, 1
        %s646 = smul.addr %s645, 2
        %s647 = scalar_lea.vmem [#allocation2], %s646
        %p648 = scmp.lt.s32.totalorder %s35, 3
        %s649 = scalar_select %p648, %s35, 3
        %s650 = smul.addr %s649, 8
        %s651 = scalar_lea.vmem %s0, %s650
        %v652 = vld [vmem:[%s651] sm:$0xff]
        %v653 = vld [vmem:[%s1] sm:$0xff]
        %v654 = vld [vmem:[%s1 + $0x8] sm:$0xff]
        %v655 = vld [vmem:[%s1 + $0x10] sm:$0xff]
        %v656 = vlaneseq
        %v657 = vand.u32 %v656, 127
        %658 = vset.pattern.permute.xlu0 0
        %659 = vperm.xlu0 %658, %v653
        %v660 = vpop.permute.xlu0 %659
        %661 = vset.pattern.permute.xlu0 0
        %662 = vperm.xlu0 %661, %v654
        %v663 = vpop.permute.xlu0 %662
        %664 = vset.pattern.permute.xlu0 0
        %665 = vperm.xlu0 %664, %v655
        %v666 = vpop.permute.xlu0 %665
        %vm667 = vcmp.eq.s32.totalorder %v660, %v657
        %vm668 = vcmp.eq.s32.totalorder %v663, %v657
        %vm669 = vcmp.eq.s32.totalorder %v666, %v657
        %v670 = vsel %vm667, 1, 0
        %v671 = vsel %vm668, 1, 0
        %v672 = vsel %vm669, 1, 0
        %v673 = vcvt.s32.f32 %v670
        %v674 = vcvt.s32.f32 %v671
        %v675 = vcvt.s32.f32 %v672
        %v676 = vld [vmem:[%s2] sm:$0xff]
        %v677 = vld [vmem:[%s2 + $0x8] sm:$0xff]
        %v678 = vld [vmem:[%s2 + $0x10] sm:$0xff]
        %679 = vset.pattern.permute.xlu0 0
        %680 = vperm.xlu0 %679, %v676
        %v681 = vpop.permute.xlu0 %680
        %682 = vset.pattern.permute.xlu0 0
        %683 = vperm.xlu0 %682, %v677
        %v684 = vpop.permute.xlu0 %683
        %685 = vset.pattern.permute.xlu0 0
        %686 = vperm.xlu0 %685, %v678
        %v687 = vpop.permute.xlu0 %686
        %vm688 = vcmp.eq.s32.totalorder %v681, %v657
        %vm689 = vcmp.eq.s32.totalorder %v684, %v657
        %vm690 = vcmp.eq.s32.totalorder %v687, %v657
        %v691 = vsel %vm688, 1, 0
        %v692 = vsel %vm689, 1, 0
        %v693 = vsel %vm690, 1, 0
        %v694 = vcvt.s32.f32 %v691
        %v695 = vcvt.s32.f32 %v692
        %v696 = vcvt.s32.f32 %v693
        %v697 = vld [vmem:[%s3] sm:$0x1]
        %v698 = vlaneseq
        %v699 = vshrl.u32 %v698, 7
        %v700 = vlaneseq
        %v701 = vshrl.u32 %v700, 7
        %v702 = vsub.s32 0, %v701
        %v703 = vrot.slane %v697, %v702
        %vm704 = vcmp.eq.s32.totalorder %v703, %v699
        %v705 = vsel %vm704, 1, 0
        %v706 = vcvt.s32.f32 %v705
        %v707 = vld [vmem:[%s4] sm:$0x1]
        %v708 = vlaneseq
        %v709 = vshrl.u32 %v708, 7
        %v710 = vsub.s32 0, %v709
        %v711 = vrot.slane %v707, %v710
        %vm712 = vcmp.eq.s32.totalorder %v711, %v699
        %v713 = vsel %vm712, 1, 0
        %v714 = vcvt.s32.f32 %v713
        %vm715 = vcmask 64512
        %v717 = vsel %vm715, %v673, 0
        %v720 = vsel %vm715, %v674, 0
        %v723 = vsel %vm715, %v675, 0
        %725 = vmatprep.subr.mxu0 0.0
        %726 = vmatpush1.msra.mxu0 %v652
        %727 = vmatprep.subr.mxu0 0.0
        %728 = vmatpush1.msra.mxu0 0.0
        %729 = vmatprep.subr.mxu0 0.0
        %730 = vmatpush1.msra.mxu0 0.0
        %731 = vmatprep.subr.mxu0 0.0
        %732 = vmatpush1.msra.mxu0 0.0
        %733 = vmatprep.subr.mxu0 0.0
        %734 = vmatpush1.msra.mxu0 0.0
        %735 = vmatprep.subr.mxu0 0.0
        %736 = vmatpush1.msra.mxu0 0.0
        %737 = vmatprep.subr.mxu0 0.0
        %738 = vmatpush1.msra.mxu0 0.0
        %739 = vmatprep.subr.mxu0 0.0
        %740 = vmatpush1.msra.mxu0 0.0
        %741 = vmatprep.subr.mxu0 0.0
        %742 = vmatpush1.msra.mxu0 0.0
        %743 = vmatprep.subr.mxu0 0.0
        %744 = vmatpush1.msra.mxu0 0.0
        %745 = vmatprep.subr.mxu0 0.0
        %746 = vmatpush1.msra.mxu0 0.0
        %747 = vmatprep.subr.mxu0 0.0
        %748 = vmatpush1.msra.mxu0 0.0
        %749 = vmatprep.subr.mxu0 0.0
        %750 = vmatpush1.msra.mxu0 0.0
        %751 = vmatprep.subr.mxu0 0.0
        %752 = vmatpush1.msra.mxu0 0.0
        %753 = vmatprep.subr.mxu0 0.0
        %754 = vmatpush1.msra.mxu0 0.0
        %755 = vmatprep.subr.mxu0 0.0
        %756 = vmatpush1.msra.mxu0 0.0
        %757 = vmatprep.subr.mxu0 0.0
        %758 = vmatpush1.msra.mxu0 0.0
        %759 = vmatprep.subr.mxu0 0.0
        %760 = vmatpush1.msra.mxu0 0.0
        %761 = vmatprep.subr.mxu0 0.0
        %762 = vmatpush1.msra.mxu0 0.0
        %763 = vmatprep.subr.mxu0 0.0
        %764 = vmatpush1.msra.mxu0 0.0
        %765 = vmatprep.subr.mxu0 0.0
        %766 = vmatpush1.msra.mxu0 0.0
        %767 = vmatprep.subr.mxu0 0.0
        %768 = vmatpush1.msra.mxu0 0.0
        %769 = vmatprep.subr.mxu0 0.0
        %770 = vmatpush1.msra.mxu0 0.0
        %771 = vmatprep.subr.mxu0 0.0
        %772 = vmatpush1.msra.mxu0 0.0
        %773 = vmatprep.subr.mxu0 0.0
        %774 = vmatpush1.msra.mxu0 0.0
        %775 = vmatprep.subr.mxu0 0.0
        %776 = vmatpush1.msra.mxu0 0.0
        %777 = vmatprep.subr.mxu0 0.0
        %778 = vmatpush1.msra.mxu0 0.0
        %779 = vmatprep.subr.mxu0 0.0
        %780 = vmatpush1.msra.mxu0 0.0
        %781 = vmatprep.subr.mxu0 0.0
        %782 = vmatpush1.msra.mxu0 0.0
        %783 = vmatprep.subr.mxu0 0.0
        %784 = vmatpush1.msra.mxu0 0.0
        %785 = vmatprep.subr.mxu0 0.0
        %786 = vmatpush1.msra.mxu0 0.0
        %787 = vmatprep.subr.mxu0 0.0
        %788 = vmatpush1.msra.mxu0 0.0
        %789 = vmatprep.mubr.f32.mxu0 0.0
        %790 = vmatmul.mubr.f32.gmra.mrb[0].mxu0 %v717
        %v791 = vpop.f32.mrb[0].mxu0
        %v792 = vadd.f32 0.0, %v791
        %v793 = vpop.f32.mrb[0].mxu0
        %794 = vmatprep.mubr.f32.mxu0 0.0
        %795 = vmatmul.mubr.f32.gmra.mrb[0].mxu0 %v720
        %v796 = vpop.f32.mrb[0].mxu0
        %v797 = vadd.f32 0.0, %v796
        %v798 = vpop.f32.mrb[0].mxu0
        %799 = vmatprep.mubr.f32.mxu0 0.0
        %800 = vmatmul.mubr.f32.gmra.mrb[0].mxu0 %v723
        %v801 = vpop.f32.mrb[0].mxu0
        %v802 = vadd.f32 0.0, %v801
        %v803 = vpop.f32.mrb[0].mxu0
        %804 = vdwg.mxu0
        %v806 = vsel %vm715, %v694, 0
        %v809 = vsel %vm715, %v695, 0
        %v812 = vsel %vm715, %v696, 0
        %814 = vmatprep.subr.mxu0 0.0
        %815 = vmatpush1.msra.mxu0 %v652
        %816 = vmatprep.subr.mxu0 0.0
        %817 = vmatpush1.msra.mxu0 0.0
        %818 = vmatprep.subr.mxu0 0.0
        %819 = vmatpush1.msra.mxu0 0.0
        %820 = vmatprep.subr.mxu0 0.0
        %821 = vmatpush1.msra.mxu0 0.0
        %822 = vmatprep.subr.mxu0 0.0
        %823 = vmatpush1.msra.mxu0 0.0
        %824 = vmatprep.subr.mxu0 0.0
        %825 = vmatpush1.msra.mxu0 0.0
        %826 = vmatprep.subr.mxu0 0.0
        %827 = vmatpush1.msra.mxu0 0.0
        %828 = vmatprep.subr.mxu0 0.0
        %829 = vmatpush1.msra.mxu0 0.0
        %830 = vmatprep.subr.mxu0 0.0
        %831 = vmatpush1.msra.mxu0 0.0
        %832 = vmatprep.subr.mxu0 0.0
        %833 = vmatpush1.msra.mxu0 0.0
        %834 = vmatprep.subr.mxu0 0.0
        %835 = vmatpush1.msra.mxu0 0.0
        %836 = vmatprep.subr.mxu0 0.0
        %837 = vmatpush1.msra.mxu0 0.0
        %838 = vmatprep.subr.mxu0 0.0
        %839 = vmatpush1.msra.mxu0 0.0
        %840 = vmatprep.subr.mxu0 0.0
        %841 = vmatpush1.msra.mxu0 0.0
        %842 = vmatprep.subr.mxu0 0.0
        %843 = vmatpush1.msra.mxu0 0.0
        %844 = vmatprep.subr.mxu0 0.0
        %845 = vmatpush1.msra.mxu0 0.0
        %846 = vmatprep.subr.mxu0 0.0
        %847 = vmatpush1.msra.mxu0 0.0
        %848 = vmatprep.subr.mxu0 0.0
        %849 = vmatpush1.msra.mxu0 0.0
        %850 = vmatprep.subr.mxu0 0.0
        %851 = vmatpush1.msra.mxu0 0.0
        %852 = vmatprep.subr.mxu0 0.0
        %853 = vmatpush1.msra.mxu0 0.0
        %854 = vmatprep.subr.mxu0 0.0
        %855 = vmatpush1.msra.mxu0 0.0
        %856 = vmatprep.subr.mxu0 0.0
        %857 = vmatpush1.msra.mxu0 0.0
        %858 = vmatprep.subr.mxu0 0.0
        %859 = vmatpush1.msra.mxu0 0.0
        %860 = vmatprep.subr.mxu0 0.0
        %861 = vmatpush1.msra.mxu0 0.0
        %862 = vmatprep.subr.mxu0 0.0
        %863 = vmatpush1.msra.mxu0 0.0
        %864 = vmatprep.subr.mxu0 0.0
        %865 = vmatpush1.msra.mxu0 0.0
        %866 = vmatprep.subr.mxu0 0.0
        %867 = vmatpush1.msra.mxu0 0.0
        %868 = vmatprep.subr.mxu0 0.0
        %869 = vmatpush1.msra.mxu0 0.0
        %870 = vmatprep.subr.mxu0 0.0
        %871 = vmatpush1.msra.mxu0 0.0
        %872 = vmatprep.subr.mxu0 0.0
        %873 = vmatpush1.msra.mxu0 0.0
        %874 = vmatprep.subr.mxu0 0.0
        %875 = vmatpush1.msra.mxu0 0.0
        %876 = vmatprep.subr.mxu0 0.0
        %877 = vmatpush1.msra.mxu0 0.0
        %878 = vmatprep.mubr.f32.mxu0 0.0
        %879 = vmatmul.mubr.f32.gmra.mrb[0].mxu0 %v806
        %v880 = vpop.f32.mrb[0].mxu0
        %v881 = vadd.f32 0.0, %v880
        %v882 = vpop.f32.mrb[0].mxu0
        %883 = vmatprep.mubr.f32.mxu0 0.0
        %884 = vmatmul.mubr.f32.gmra.mrb[0].mxu0 %v809
        %v885 = vpop.f32.mrb[0].mxu0
        %v886 = vadd.f32 0.0, %v885
        %v887 = vpop.f32.mrb[0].mxu0
        %888 = vmatprep.mubr.f32.mxu0 0.0
        %889 = vmatmul.mubr.f32.gmra.mrb[0].mxu0 %v812
        %v890 = vpop.f32.mrb[0].mxu0
        %v891 = vadd.f32 0.0, %v890
        %v892 = vpop.f32.mrb[0].mxu0
        %893 = vdwg.mxu0
        %v894 = vsub.f32 %v881, %v792
        %v895 = vsub.f32 %v886, %v797
        %v896 = vsub.f32 %v891, %v802
        %vm897 = vcmask 23552
        %v898 = vsel %vm897, %v881, 0.0
        %v899 = vsel %vm897, %v886, 0.0
        %v900 = vadd.f32 %v898, %v899
        %v901 = vsel %vm897, %v891, 0.0
        %v902 = vadd.f32 %v900, %v901
        %v903 = vrot.slane %v902, 4
        %v904 = vadd.f32 %v902, %v903
        %v905 = vrot.slane %v904, 2
        %v906 = vadd.f32 %v904, %v905
        %v907 = vrot.slane %v906, 1
        %v908 = vadd.f32 %v906, %v907
        %v909 = vmul.f32 %v908, 0.041666668
        %v910 = vsub.f32 %v792, %v909
        %v911 = vsub.f32 %v797, %v909
        %v912 = vsub.f32 %v802, %v909
        %v913 = vmul.f32 %v910, %v910
        %v914 = vmul.f32 %v911, %v911
        %v915 = vmul.f32 %v912, %v912
        %v916 = vmul.f32 %v913, 0.041666668
        %v917 = vmul.f32 %v914, 0.041666668
        %v918 = vmul.f32 %v915, 0.041666668
        %v919 = vrsqrt.pop %v916
        %v920 = vmul.f32 %v916, %v919
        %vm921 = vcmp.eq.f32.partialorder %v916, inf
        %v922 = vsel %vm921, %v916, %v920
        %vm923 = vcmp.eq.f32.partialorder %v916, 0.0
        %v924 = vand.u32 %v916, 2147483648
        %v925 = vsel %vm923, %v924, %v922
        %v926 = vrsqrt.pop %v917
        %v927 = vmul.f32 %v917, %v926
        %vm928 = vcmp.eq.f32.partialorder %v917, inf
        %v929 = vsel %vm928, %v917, %v927
        %vm930 = vcmp.eq.f32.partialorder %v917, 0.0
        %v931 = vand.u32 %v917, 2147483648
        %v932 = vsel %vm930, %v931, %v929
        %v933 = vrsqrt.pop %v918
        %v934 = vmul.f32 %v918, %v933
        %vm935 = vcmp.eq.f32.partialorder %v918, inf
        %v936 = vsel %vm935, %v918, %v934
        %vm937 = vcmp.eq.f32.partialorder %v918, 0.0
        %v938 = vand.u32 %v918, 2147483648
        %v939 = vsel %vm937, %v938, %v936
        %v940 = vsub.f32 %v792, %v881
        %v941 = vsub.f32 %v797, %v886
        %v942 = vsub.f32 %v802, %v891
        %v943 = vmul.f32 %v940, %v940
        %v944 = vmul.f32 %v941, %v941
        %v945 = vmul.f32 %v942, %v942
        %v946 = vsel %vm897, %v943, 0.0
        %947 = vadd.xlane.f32.xlu0 %v946
        %v948 = vpop.xlane.xlu0 %947
        %v949 = vsel %vm897, %v944, 0.0
        %950 = vadd.xlane.f32.xlu0 %v949
        %v951 = vpop.xlane.xlu0 %950
        %v952 = vsel %vm897, %v945, 0.0
        %953 = vadd.xlane.f32.xlu0 %v952
        %v954 = vpop.xlane.xlu0 %953
        %v955 = vrsqrt.pop %v948
        %v956 = vmul.f32 %v948, %v955
        %vm957 = vcmp.eq.f32.partialorder %v948, inf
        %v958 = vsel %vm957, %v948, %v956
        %vm959 = vcmp.eq.f32.partialorder %v948, 0.0
        %v960 = vand.u32 %v948, 2147483648
        %v961 = vsel %vm959, %v960, %v958
        %v962 = vrsqrt.pop %v951
        %v963 = vmul.f32 %v951, %v962
        %vm964 = vcmp.eq.f32.partialorder %v951, inf
        %v965 = vsel %vm964, %v951, %v963
        %vm966 = vcmp.eq.f32.partialorder %v951, 0.0
        %v967 = vand.u32 %v951, 2147483648
        %v968 = vsel %vm966, %v967, %v965
        %v969 = vrsqrt.pop %v954
        %v970 = vmul.f32 %v954, %v969
        %vm971 = vcmp.eq.f32.partialorder %v954, inf
        %v972 = vsel %vm971, %v954, %v970
        %vm973 = vcmp.eq.f32.partialorder %v954, 0.0
        %v974 = vand.u32 %v954, 2147483648
        %v975 = vsel %vm973, %v974, %v972
        %979 = vrot.lane.b32.xlu0 %v925, 3
        %v980 = vpop.permute.xlu0 %979
        %981 = vrot.lane.b32.xlu0 %v932, 3
        %v982 = vpop.permute.xlu0 %981
        %983 = vrot.lane.b32.xlu0 %v939, 3
        %v984 = vpop.permute.xlu0 %983
        %v988 = vsel %vm897, %v894, %v980
        %v989 = vsel %vm897, %v895, %v982
        %v990 = vsel %vm897, %v896, %v984
        %v991 = vld [vmem:[%s5] sm:$0x3f]
        %v992 = vld [vmem:[%s6] sm:$0x1]
        %v994 = vlaneseq
        %v995 = vshrl.u32 %v994, 7
        %v996 = vsub.s32 0, %v995
        %v997 = vrot.slane %v992, %v996
        %v999 = vmul.f32 %v961, %v997
        %v1000 = vmul.f32 %v968, %v997
        %v1001 = vmul.f32 %v975, %v997
        %vm1002 = vcmask 48128
        %v1004 = vsel %vm1002, %v988, 0
        %v1007 = vsel %vm1002, %v989, 0
        %v1010 = vsel %vm1002, %v990, 0
        %vm1012 = vcmask 1045504
        %v1014 = vsel %vm1012, %v991, 0
        %1016 = vmatprep.subr.mxu0 0.0
        %1017 = vmatpush1.msra.mxu0 %v1014
        %1018 = vmatprep.subr.mxu0 0.0
        %1019 = vmatpush1.msra.mxu0 0.0
        %1020 = vmatprep.subr.mxu0 0.0
        %1021 = vmatpush1.msra.mxu0 0.0
        %1022 = vmatprep.subr.mxu0 0.0
        %1023 = vmatpush1.msra.mxu0 0.0
        %1024 = vmatprep.subr.mxu0 0.0
        %1025 = vmatpush1.msra.mxu0 0.0
        %1026 = vmatprep.subr.mxu0 0.0
        %1027 = vmatpush1.msra.mxu0 0.0
        %1028 = vmatprep.subr.mxu0 0.0
        %1029 = vmatpush1.msra.mxu0 0.0
        %1030 = vmatprep.subr.mxu0 0.0
        %1031 = vmatpush1.msra.mxu0 0.0
        %1032 = vmatprep.subr.mxu0 0.0
        %1033 = vmatpush1.msra.mxu0 0.0
        %1034 = vmatprep.subr.mxu0 0.0
        %1035 = vmatpush1.msra.mxu0 0.0
        %1036 = vmatprep.subr.mxu0 0.0
        %1037 = vmatpush1.msra.mxu0 0.0
        %1038 = vmatprep.subr.mxu0 0.0
        %1039 = vmatpush1.msra.mxu0 0.0
        %1040 = vmatprep.subr.mxu0 0.0
        %1041 = vmatpush1.msra.mxu0 0.0
        %1042 = vmatprep.subr.mxu0 0.0
        %1043 = vmatpush1.msra.mxu0 0.0
        %1044 = vmatprep.subr.mxu0 0.0
        %1045 = vmatpush1.msra.mxu0 0.0
        %1046 = vmatprep.subr.mxu0 0.0
        %1047 = vmatpush1.msra.mxu0 0.0
        %1048 = vmatprep.subr.mxu0 0.0
        %1049 = vmatpush1.msra.mxu0 0.0
        %1050 = vmatprep.subr.mxu0 0.0
        %1051 = vmatpush1.msra.mxu0 0.0
        %1052 = vmatprep.subr.mxu0 0.0
        %1053 = vmatpush1.msra.mxu0 0.0
        %1054 = vmatprep.subr.mxu0 0.0
        %1055 = vmatpush1.msra.mxu0 0.0
        %1056 = vmatprep.subr.mxu0 0.0
        %1057 = vmatpush1.msra.mxu0 0.0
        %1058 = vmatprep.subr.mxu0 0.0
        %1059 = vmatpush1.msra.mxu0 0.0
        %1060 = vmatprep.subr.mxu0 0.0
        %1061 = vmatpush1.msra.mxu0 0.0
        %1062 = vmatprep.subr.mxu0 0.0
        %1063 = vmatpush1.msra.mxu0 0.0
        %1064 = vmatprep.subr.mxu0 0.0
        %1065 = vmatpush1.msra.mxu0 0.0
        %1066 = vmatprep.subr.mxu0 0.0
        %1067 = vmatpush1.msra.mxu0 0.0
        %1068 = vmatprep.subr.mxu0 0.0
        %1069 = vmatpush1.msra.mxu0 0.0
        %1070 = vmatprep.subr.mxu0 0.0
        %1071 = vmatpush1.msra.mxu0 0.0
        %1072 = vmatprep.subr.mxu0 0.0
        %1073 = vmatpush1.msra.mxu0 0.0
        %1074 = vmatprep.subr.mxu0 0.0
        %1075 = vmatpush1.msra.mxu0 0.0
        %1076 = vmatprep.subr.mxu0 0.0
        %1077 = vmatpush1.msra.mxu0 0.0
        %1078 = vmatprep.subr.mxu0 0.0
        %1079 = vmatpush1.msra.mxu0 0.0
        %1080 = vmatprep.mubr.f32.mxu0 0.0
        %1081 = vmatmul.mubr.f32.gmra.mrb[0].mxu0 %v1004
        %v1082 = vpop.f32.mrb[0].mxu0
        %v1083 = vadd.f32 %v999, %v1082
        %v1084 = vpop.f32.mrb[0].mxu0
        %1085 = vmatprep.mubr.f32.mxu0 0.0
        %1086 = vmatmul.mubr.f32.gmra.mrb[0].mxu0 %v1007
        %v1087 = vpop.f32.mrb[0].mxu0
        %v1088 = vadd.f32 %v1000, %v1087
        %v1089 = vpop.f32.mrb[0].mxu0
        %1090 = vmatprep.mubr.f32.mxu0 0.0
        %1091 = vmatmul.mubr.f32.gmra.mrb[0].mxu0 %v1010
        %v1092 = vpop.f32.mrb[0].mxu0
        %v1093 = vadd.f32 %v1001, %v1092
        %v1094 = vpop.f32.mrb[0].mxu0
        %1095 = vdwg.mxu0
        %v1096 = vld [vmem:[%s7] sm:$0x1]
        %v1098 = vlaneseq
        %v1099 = vshrl.u32 %v1098, 7
        %v1100 = vsub.s32 0, %v1099
        %v1101 = vrot.slane %v1096, %v1100
        %v1103 = vadd.f32 %v1083, %v1101
        %v1104 = vadd.f32 %v1088, %v1101
        %v1105 = vadd.f32 %v1093, %v1101
        %vm1106 = vcmask 195584
        %v1108 = vsel %vm1106, %v706, 0
        %1110 = vmatprep.subr.mxu0 0.0
        %1111 = vmatpush1.msra.mxu0 %v1103
        %1112 = vmatprep.subr.mxu0 0.0
        %1113 = vmatpush1.msra.mxu0 %v1104
        %1114 = vmatprep.subr.mxu0 0.0
        %1115 = vmatpush1.msra.mxu0 %v1105
        %1116 = vmatprep.subr.mxu0 0.0
        %1117 = vmatpush1.msra.mxu0 0.0
        %1118 = vmatprep.subr.mxu0 0.0
        %1119 = vmatpush1.msra.mxu0 0.0
        %1120 = vmatprep.subr.mxu0 0.0
        %1121 = vmatpush1.msra.mxu0 0.0
        %1122 = vmatprep.subr.mxu0 0.0
        %1123 = vmatpush1.msra.mxu0 0.0
        %1124 = vmatprep.subr.mxu0 0.0
        %1125 = vmatpush1.msra.mxu0 0.0
        %1126 = vmatprep.subr.mxu0 0.0
        %1127 = vmatpush1.msra.mxu0 0.0
        %1128 = vmatprep.subr.mxu0 0.0
        %1129 = vmatpush1.msra.mxu0 0.0
        %1130 = vmatprep.subr.mxu0 0.0
        %1131 = vmatpush1.msra.mxu0 0.0
        %1132 = vmatprep.subr.mxu0 0.0
        %1133 = vmatpush1.msra.mxu0 0.0
        %1134 = vmatprep.subr.mxu0 0.0
        %1135 = vmatpush1.msra.mxu0 0.0
        %1136 = vmatprep.subr.mxu0 0.0
        %1137 = vmatpush1.msra.mxu0 0.0
        %1138 = vmatprep.subr.mxu0 0.0
        %1139 = vmatpush1.msra.mxu0 0.0
        %1140 = vmatprep.subr.mxu0 0.0
        %1141 = vmatpush1.msra.mxu0 0.0
        %1142 = vmatprep.subr.mxu0 0.0
        %1143 = vmatpush1.msra.mxu0 0.0
        %1144 = vmatprep.subr.mxu0 0.0
        %1145 = vmatpush1.msra.mxu0 0.0
        %1146 = vmatprep.subr.mxu0 0.0
        %1147 = vmatpush1.msra.mxu0 0.0
        %1148 = vmatprep.subr.mxu0 0.0
        %1149 = vmatpush1.msra.mxu0 0.0
        %1150 = vmatprep.subr.mxu0 0.0
        %1151 = vmatpush1.msra.mxu0 0.0
        %1152 = vmatprep.subr.mxu0 0.0
        %1153 = vmatpush1.msra.mxu0 0.0
        %1154 = vmatprep.subr.mxu0 0.0
        %1155 = vmatpush1.msra.mxu0 0.0
        %1156 = vmatprep.subr.mxu0 0.0
        %1157 = vmatpush1.msra.mxu0 0.0
        %1158 = vmatprep.subr.mxu0 0.0
        %1159 = vmatpush1.msra.mxu0 0.0
        %1160 = vmatprep.subr.mxu0 0.0
        %1161 = vmatpush1.msra.mxu0 0.0
        %1162 = vmatprep.subr.mxu0 0.0
        %1163 = vmatpush1.msra.mxu0 0.0
        %1164 = vmatprep.subr.mxu0 0.0
        %1165 = vmatpush1.msra.mxu0 0.0
        %1166 = vmatprep.subr.mxu0 0.0
        %1167 = vmatpush1.msra.mxu0 0.0
        %1168 = vmatprep.subr.mxu0 0.0
        %1169 = vmatpush1.msra.mxu0 0.0
        %1170 = vmatprep.subr.mxu0 0.0
        %1171 = vmatpush1.msra.mxu0 0.0
        %1172 = vmatprep.subr.mxu0 0.0
        %1173 = vmatpush1.msra.mxu0 0.0
        %1174 = vmatprep.mubr.f32.mxu0 0.0
        %1175 = vmatmul.mubr.f32.gmra.mrb[0].mxu0 %v1108
        %v1176 = vpop.f32.mrb[0].mxu0
        %v1177 = vadd.f32 0.0, %v1176
        %v1178 = vpop.f32.mrb[0].mxu0
        %1179 = vdwg.mxu0
        %v1180 = vsub.f32 0.0, %v1177
        %v1181 = vmul.f32 %v1180, 1.442695
        %v1182 = vpow.pop %v1181
        %v1183 = vadd.f32 %v1182, 1.0
        %v1184 = vrcp.pop %v1183
        %v1186 = vsel %vm715, %v714, 0
        %1188 = vmatprep.subr.mxu0 0.0
        %1189 = vmatpush1.msra.mxu0 %v1184
        %1190 = vmatprep.subr.mxu0 0.0
        %1191 = vmatpush1.msra.mxu0 0.0
        %1192 = vmatprep.subr.mxu0 0.0
        %1193 = vmatpush1.msra.mxu0 0.0
        %1194 = vmatprep.subr.mxu0 0.0
        %1195 = vmatpush1.msra.mxu0 0.0
        %1196 = vmatprep.subr.mxu0 0.0
        %1197 = vmatpush1.msra.mxu0 0.0
        %1198 = vmatprep.subr.mxu0 0.0
        %1199 = vmatpush1.msra.mxu0 0.0
        %1200 = vmatprep.subr.mxu0 0.0
        %1201 = vmatpush1.msra.mxu0 0.0
        %1202 = vmatprep.subr.mxu0 0.0
        %1203 = vmatpush1.msra.mxu0 0.0
        %1204 = vmatprep.subr.mxu0 0.0
        %1205 = vmatpush1.msra.mxu0 0.0
        %1206 = vmatprep.subr.mxu0 0.0
        %1207 = vmatpush1.msra.mxu0 0.0
        %1208 = vmatprep.subr.mxu0 0.0
        %1209 = vmatpush1.msra.mxu0 0.0
        %1210 = vmatprep.subr.mxu0 0.0
        %1211 = vmatpush1.msra.mxu0 0.0
        %1212 = vmatprep.subr.mxu0 0.0
        %1213 = vmatpush1.msra.mxu0 0.0
        %1214 = vmatprep.subr.mxu0 0.0
        %1215 = vmatpush1.msra.mxu0 0.0
        %1216 = vmatprep.subr.mxu0 0.0
        %1217 = vmatpush1.msra.mxu0 0.0
        %1218 = vmatprep.subr.mxu0 0.0
        %1219 = vmatpush1.msra.mxu0 0.0
        %1220 = vmatprep.subr.mxu0 0.0
        %1221 = vmatpush1.msra.mxu0 0.0
        %1222 = vmatprep.subr.mxu0 0.0
        %1223 = vmatpush1.msra.mxu0 0.0
        %1224 = vmatprep.subr.mxu0 0.0
        %1225 = vmatpush1.msra.mxu0 0.0
        %1226 = vmatprep.subr.mxu0 0.0
        %1227 = vmatpush1.msra.mxu0 0.0
        %1228 = vmatprep.subr.mxu0 0.0
        %1229 = vmatpush1.msra.mxu0 0.0
        %1230 = vmatprep.subr.mxu0 0.0
        %1231 = vmatpush1.msra.mxu0 0.0
        %1232 = vmatprep.subr.mxu0 0.0
        %1233 = vmatpush1.msra.mxu0 0.0
        %1234 = vmatprep.subr.mxu0 0.0
        %1235 = vmatpush1.msra.mxu0 0.0
        %1236 = vmatprep.subr.mxu0 0.0
        %1237 = vmatpush1.msra.mxu0 0.0
        %1238 = vmatprep.subr.mxu0 0.0
        %1239 = vmatpush1.msra.mxu0 0.0
        %1240 = vmatprep.subr.mxu0 0.0
        %1241 = vmatpush1.msra.mxu0 0.0
        %1242 = vmatprep.subr.mxu0 0.0
        %1243 = vmatpush1.msra.mxu0 0.0
        %1244 = vmatprep.subr.mxu0 0.0
        %1245 = vmatpush1.msra.mxu0 0.0
        %1246 = vmatprep.subr.mxu0 0.0
        %1247 = vmatpush1.msra.mxu0 0.0
        %1248 = vmatprep.subr.mxu0 0.0
        %1249 = vmatpush1.msra.mxu0 0.0
        %1250 = vmatprep.subr.mxu0 0.0
        %1251 = vmatpush1.msra.mxu0 0.0
        %1252 = vmatprep.mubr.f32.mxu0 0.0
        %1253 = vmatmul.mubr.f32.gmra.mrb[0].mxu0 %v1186
        %v1254 = vpop.f32.mrb[0].mxu0
        %v1255 = vadd.f32 0.0, %v1254
        %v1256 = vpop.f32.mrb[0].mxu0
        %1257 = vdwg.mxu0
        %vm1258 = vcmask 50176
        %v1259 = vsel %vm1258, %v1255, inf
        %1260 = vmin.xlane.f32.xlu0 %v1259
        %v1261 = vpop.xlane.xlu0 %1260
        %v1262 = vrot.slane %v1261, 4
        %v1263 = vmin.f32 %v1261, %v1262
        %v1264 = vrot.slane %v1263, 2
        %v1265 = vmin.f32 %v1263, %v1264
        %v1266 = vrot.slane %v1265, 1
        %v1267 = vmin.f32 %v1265, %v1266
        %s1268 = vtos %v1267
        %v1269 = vstv %s1268
        %v1270 = vsel %vm1258, %v1255, -inf
        %1271 = vmax.xlane.f32.xlu0 %v1270
        %v1272 = vpop.xlane.xlu0 %1271
        %v1273 = vrot.slane %v1272, 4
        %v1274 = vmax.f32 %v1272, %v1273
        %v1275 = vrot.slane %v1274, 2
        %v1276 = vmax.f32 %v1274, %v1275
        %v1277 = vrot.slane %v1276, 1
        %v1278 = vmax.f32 %v1276, %v1277
        %s1279 = vtos %v1278
        %v1280 = vstv %s1279
        %v1281 = vsub.f32 %v1280, %v1269
        %vm1282 = vcmp.gt.f32.partialorder %v1281, 0.0
        %v1283 = vsel %vm1282, %v1281, 1.0
        %v1284 = vsub.f32 %v1255, %v1269
        %v1285 = vrcp.pop %v1283
        %v1286 = vmul.f32 %v1284, %v1285
        %v1287 = vsel %vm1282, 1, 0
        %vm1288 = vcmp.eq.s32.totalorder %v1287, 1
        %v1289 = vsel %vm1288, %v1286, 0.0
        %v1290 = vld [vmem:[%s8] sm:$0x7f]
        %v1291 = vld [vmem:[%s9] sm:$0x1]
        %v1293 = vlaneseq
        %v1294 = vshrl.u32 %v1293, 7
        %v1295 = vsub.s32 0, %v1294
        %v1296 = vrot.slane %v1291, %v1295
        %vm1298 = vcmask 56320
        %v1300 = vsel %vm1298, %v1289, 0
        %vm1302 = vcmask 1046528
        %v1304 = vsel %vm1302, %v1290, 0
        %1306 = vmatprep.subr.mxu0 0.0
        %1307 = vmatpush1.msra.mxu0 %v1304
        %1308 = vmatprep.subr.mxu0 0.0
        %1309 = vmatpush1.msra.mxu0 0.0
        %1310 = vmatprep.subr.mxu0 0.0
        %1311 = vmatpush1.msra.mxu0 0.0
        %1312 = vmatprep.subr.mxu0 0.0
        %1313 = vmatpush1.msra.mxu0 0.0
        %1314 = vmatprep.subr.mxu0 0.0
        %1315 = vmatpush1.msra.mxu0 0.0
        %1316 = vmatprep.subr.mxu0 0.0
        %1317 = vmatpush1.msra.mxu0 0.0
        %1318 = vmatprep.subr.mxu0 0.0
        %1319 = vmatpush1.msra.mxu0 0.0
        %1320 = vmatprep.subr.mxu0 0.0
        %1321 = vmatpush1.msra.mxu0 0.0
        %1322 = vmatprep.subr.mxu0 0.0
        %1323 = vmatpush1.msra.mxu0 0.0
        %1324 = vmatprep.subr.mxu0 0.0
        %1325 = vmatpush1.msra.mxu0 0.0
        %1326 = vmatprep.subr.mxu0 0.0
        %1327 = vmatpush1.msra.mxu0 0.0
        %1328 = vmatprep.subr.mxu0 0.0
        %1329 = vmatpush1.msra.mxu0 0.0
        %1330 = vmatprep.subr.mxu0 0.0
        %1331 = vmatpush1.msra.mxu0 0.0
        %1332 = vmatprep.subr.mxu0 0.0
        %1333 = vmatpush1.msra.mxu0 0.0
        %1334 = vmatprep.subr.mxu0 0.0
        %1335 = vmatpush1.msra.mxu0 0.0
        %1336 = vmatprep.subr.mxu0 0.0
        %1337 = vmatpush1.msra.mxu0 0.0
        %1338 = vmatprep.subr.mxu0 0.0
        %1339 = vmatpush1.msra.mxu0 0.0
        %1340 = vmatprep.subr.mxu0 0.0
        %1341 = vmatpush1.msra.mxu0 0.0
        %1342 = vmatprep.subr.mxu0 0.0
        %1343 = vmatpush1.msra.mxu0 0.0
        %1344 = vmatprep.subr.mxu0 0.0
        %1345 = vmatpush1.msra.mxu0 0.0
        %1346 = vmatprep.subr.mxu0 0.0
        %1347 = vmatpush1.msra.mxu0 0.0
        %1348 = vmatprep.subr.mxu0 0.0
        %1349 = vmatpush1.msra.mxu0 0.0
        %1350 = vmatprep.subr.mxu0 0.0
        %1351 = vmatpush1.msra.mxu0 0.0
        %1352 = vmatprep.subr.mxu0 0.0
        %1353 = vmatpush1.msra.mxu0 0.0
        %1354 = vmatprep.subr.mxu0 0.0
        %1355 = vmatpush1.msra.mxu0 0.0
        %1356 = vmatprep.subr.mxu0 0.0
        %1357 = vmatpush1.msra.mxu0 0.0
        %1358 = vmatprep.subr.mxu0 0.0
        %1359 = vmatpush1.msra.mxu0 0.0
        %1360 = vmatprep.subr.mxu0 0.0
        %1361 = vmatpush1.msra.mxu0 0.0
        %1362 = vmatprep.subr.mxu0 0.0
        %1363 = vmatpush1.msra.mxu0 0.0
        %1364 = vmatprep.subr.mxu0 0.0
        %1365 = vmatpush1.msra.mxu0 0.0
        %1366 = vmatprep.subr.mxu0 0.0
        %1367 = vmatpush1.msra.mxu0 0.0
        %1368 = vmatprep.subr.mxu0 0.0
        %1369 = vmatpush1.msra.mxu0 0.0
        %1370 = vmatprep.mubr.f32.mxu0 0.0
        %1371 = vmatmul.mubr.f32.gmra.mrb[0].mxu0 %v1300
        %v1372 = vpop.f32.mrb[0].mxu0
        %v1373 = vadd.f32 %v1296, %v1372
        %v1374 = vpop.f32.mrb[0].mxu0
        %1375 = vdwg.mxu0
        %v1378 = vunpack.c.l.s4 1966171168
        %v1379 = vunpack.c.0.s8 %v1378
        %v1380 = vlaneseq
        %v1381 = vshrl.u32 %v1380, 7
        %v1382 = vsub.s32 %v1379, %v1381
        %v1383 = vrot.slane %v1373, %v1382
        %v1384 = vcombine.high %v1383, %v1383
        %v1386 = vunpack.c.l.s4 1966171168
        %v1387 = vunpack.c.0.s8 %v1386
        %v1388 = vlaneseq
        %v1389 = vshrl.u32 %v1388, 7
        %v1390 = vsub.s32 %v1387, %v1389
        %v1391 = vrot.slane %v1383, %v1390
        %v1393 = vunpack.c.l.s4 1966171168
        %v1394 = vunpack.c.0.s8 %v1393
        %v1395 = vlaneseq
        %v1396 = vshrl.u32 %v1395, 7
        %v1397 = vsub.s32 %v1394, %v1396
        %v1398 = vrot.slane %v1384, %v1397
        %v1399 = vlaneseq
        %v1400 = vshrl.u32 %v1399, 7
        %v1401 = vsub.s32 0, %v1400
        %v1402 = vrot.slane %v1391, %v1401
        %v1403 = vlaneseq
        %v1404 = vshrl.u32 %v1403, 7
        %v1405 = vsub.s32 0, %v1404
        %v1406 = vrot.slane %v1398, %v1405
        %1409 = vrot.lane.b32.xlu0 %v1373, 121
        %v1410 = vpop.permute.xlu0 %1409
        %v1412 = vmul.f32 %v1402, %v1410
        %v1413 = vmul.f32 %v1406, %v1410
        %vm1414 = vcmask 107576
        %v1415 = vsel %vm1414, %v1412, -inf
        %v1416 = vrot.slane %v1415, 4
        %v1417 = vmax.f32 %v1415, %v1416
        %v1418 = vrot.slane %v1417, 2
        %v1419 = vmax.f32 %v1417, %v1418
        %v1420 = vrot.slane %v1419, 1
        %v1421 = vmax.f32 %v1419, %v1420
        %v1422 = vsel %vm1414, %v1413, -inf
        %v1423 = vrot.slane %v1422, 4
        %v1424 = vmax.f32 %v1422, %v1423
        %v1425 = vrot.slane %v1424, 2
        %v1426 = vmax.f32 %v1424, %v1425
        %v1427 = vrot.slane %v1426, 1
        %v1428 = vmax.f32 %v1426, %v1427
        %v1429 = vsub.f32 %v1412, %v1421
        %v1430 = vsub.f32 %v1413, %v1428
        %v1431 = vmul.f32 %v1429, 1.442695
        %v1432 = vpow.pop %v1431
        %v1433 = vmul.f32 %v1430, 1.442695
        %v1434 = vpow.pop %v1433
        %1435 = vrot.lane.b32.xlu0 %v1373, 114
        %v1436 = vpop.permute.xlu0 %1435
        %v1438 = vmul.f32 %v1432, %v1436
        %v1439 = vmul.f32 %v1434, %v1436
        %v1440 = vsel %vm1414, %v1438, 0.0
        %v1441 = vrot.slane %v1440, 4
        %v1442 = vadd.f32 %v1440, %v1441
        %v1443 = vrot.slane %v1442, 2
        %v1444 = vadd.f32 %v1442, %v1443
        %v1445 = vrot.slane %v1444, 1
        %v1446 = vadd.f32 %v1444, %v1445
        %v1447 = vsel %vm1414, %v1439, 0.0
        %v1448 = vrot.slane %v1447, 4
        %v1449 = vadd.f32 %v1447, %v1448
        %v1450 = vrot.slane %v1449, 2
        %v1451 = vadd.f32 %v1449, %v1450
        %v1452 = vrot.slane %v1451, 1
        %v1453 = vadd.f32 %v1451, %v1452
        %v1454 = vsel %vm1414, %v1432, 0.0
        %v1455 = vrot.slane %v1454, 4
        %v1456 = vadd.f32 %v1454, %v1455
        %v1457 = vrot.slane %v1456, 2
        %v1458 = vadd.f32 %v1456, %v1457
        %v1459 = vrot.slane %v1458, 1
        %v1460 = vadd.f32 %v1458, %v1459
        %v1461 = vsel %vm1414, %v1434, 0.0
        %v1462 = vrot.slane %v1461, 4
        %v1463 = vadd.f32 %v1461, %v1462
        %v1464 = vrot.slane %v1463, 2
        %v1465 = vadd.f32 %v1463, %v1464
        %v1466 = vrot.slane %v1465, 1
        %v1467 = vadd.f32 %v1465, %v1466
        %v1468 = vrcp.pop %v1460
        %v1469 = vrcp.pop %v1467
        %v1470 = vmul.f32 %v1446, %v1468
        %v1471 = vmul.f32 %v1453, %v1469
        %s1472 = scalar_lea.vmem %s10, 8
        %v1473 = vld [vmem:[%s1472] sm:$0x7f]
        %v1474 = vld [vmem:[%s18 + $0x1] sm:$0x1]
        %v1475 = vlaneseq
        %v1476 = vshrl.u32 %v1475, 7
        %v1477 = vsub.s32 0, %v1476
        %v1478 = vrot.slane %v1474, %v1477
        %vm1481 = vcmask 1041409
        %v1482 = vsel %vm1481, %v1471, %v1470
        %1483 = vrot.lane.b32.xlu0 %v1482, 121
        %v1484 = vpop.permute.xlu0 %1483
        %v1485 = vsel %vm1298, %v1484, 0
        %v1488 = vsel %vm1302, %v1473, 0
        %1490 = vmatprep.subr.mxu0 0.0
        %1491 = vmatpush1.msra.mxu0 %v1488
        %1492 = vmatprep.subr.mxu0 0.0
        %1493 = vmatpush1.msra.mxu0 0.0
        %1494 = vmatprep.subr.mxu0 0.0
        %1495 = vmatpush1.msra.mxu0 0.0
        %1496 = vmatprep.subr.mxu0 0.0
        %1497 = vmatpush1.msra.mxu0 0.0
        %1498 = vmatprep.subr.mxu0 0.0
        %1499 = vmatpush1.msra.mxu0 0.0
        %1500 = vmatprep.subr.mxu0 0.0
        %1501 = vmatpush1.msra.mxu0 0.0
        %1502 = vmatprep.subr.mxu0 0.0
        %1503 = vmatpush1.msra.mxu0 0.0
        %1504 = vmatprep.subr.mxu0 0.0
        %1505 = vmatpush1.msra.mxu0 0.0
        %1506 = vmatprep.subr.mxu0 0.0
        %1507 = vmatpush1.msra.mxu0 0.0
        %1508 = vmatprep.subr.mxu0 0.0
        %1509 = vmatpush1.msra.mxu0 0.0
        %1510 = vmatprep.subr.mxu0 0.0
        %1511 = vmatpush1.msra.mxu0 0.0
        %1512 = vmatprep.subr.mxu0 0.0
        %1513 = vmatpush1.msra.mxu0 0.0
        %1514 = vmatprep.subr.mxu0 0.0
        %1515 = vmatpush1.msra.mxu0 0.0
        %1516 = vmatprep.subr.mxu0 0.0
        %1517 = vmatpush1.msra.mxu0 0.0
        %1518 = vmatprep.subr.mxu0 0.0
        %1519 = vmatpush1.msra.mxu0 0.0
        %1520 = vmatprep.subr.mxu0 0.0
        %1521 = vmatpush1.msra.mxu0 0.0
        %1522 = vmatprep.subr.mxu0 0.0
        %1523 = vmatpush1.msra.mxu0 0.0
        %1524 = vmatprep.subr.mxu0 0.0
        %1525 = vmatpush1.msra.mxu0 0.0
        %1526 = vmatprep.subr.mxu0 0.0
        %1527 = vmatpush1.msra.mxu0 0.0
        %1528 = vmatprep.subr.mxu0 0.0
        %1529 = vmatpush1.msra.mxu0 0.0
        %1530 = vmatprep.subr.mxu0 0.0
        %1531 = vmatpush1.msra.mxu0 0.0
        %1532 = vmatprep.subr.mxu0 0.0
        %1533 = vmatpush1.msra.mxu0 0.0
        %1534 = vmatprep.subr.mxu0 0.0
        %1535 = vmatpush1.msra.mxu0 0.0
        %1536 = vmatprep.subr.mxu0 0.0
        %1537 = vmatpush1.msra.mxu0 0.0
        %1538 = vmatprep.subr.mxu0 0.0
        %1539 = vmatpush1.msra.mxu0 0.0
        %1540 = vmatprep.subr.mxu0 0.0
        %1541 = vmatpush1.msra.mxu0 0.0
        %1542 = vmatprep.subr.mxu0 0.0
        %1543 = vmatpush1.msra.mxu0 0.0
        %1544 = vmatprep.subr.mxu0 0.0
        %1545 = vmatpush1.msra.mxu0 0.0
        %1546 = vmatprep.subr.mxu0 0.0
        %1547 = vmatpush1.msra.mxu0 0.0
        %1548 = vmatprep.subr.mxu0 0.0
        %1549 = vmatpush1.msra.mxu0 0.0
        %1550 = vmatprep.subr.mxu0 0.0
        %1551 = vmatpush1.msra.mxu0 0.0
        %1552 = vmatprep.subr.mxu0 0.0
        %1553 = vmatpush1.msra.mxu0 0.0
        %1554 = vmatprep.mubr.f32.mxu0 0.0
        %1555 = vmatmul.mubr.f32.gmra.mrb[0].mxu0 %v1485
        %v1556 = vpop.f32.mrb[0].mxu0
        %v1557 = vadd.f32 %v1478, %v1556
        %v1558 = vpop.f32.mrb[0].mxu0
        %1559 = vdwg.mxu0
        %v1560 = vadd.f32 %v1289, %v1557
        %v1561 = vsel %vm1258, %v1560, 0.0
        %1562 = vadd.xlane.f32.xlu0 %v1561
        %v1563 = vpop.xlane.xlu0 %1562
        %v1564 = vrcp.pop 7.0
        %v1565 = vmul.f32 %v1563, %v1564
        %v1566 = vsub.f32 %v1560, %v1565
        %v1567 = vmul.f32 %v1566, %v1566
        %v1568 = vsel %vm1258, %v1567, 0.0
        %1569 = vadd.xlane.f32.xlu0 %v1568
        %v1570 = vpop.xlane.xlu0 %1569
        %v1571 = vmul.f32 %v1570, %v1564
        %v1572 = vadd.f32 %v1571, 1e-05
        %v1573 = vrsqrt.pop %v1572
        %v1574 = vmul.f32 %v1566, %v1573
        %v1575 = vld [vmem:[%s18 + $0x6] sm:$0x1]
        %v1576 = vlaneseq
        %v1577 = vshrl.u32 %v1576, 7
        %v1578 = vsub.s32 0, %v1577
        %v1579 = vrot.slane %v1575, %v1578
        %v1580 = vmul.f32 %v1574, %v1579
        %v1581 = vld [vmem:[%s18 + $0x7] sm:$0x1]
        %v1582 = vlaneseq
        %v1583 = vshrl.u32 %v1582, 7
        %v1584 = vsub.s32 0, %v1583
        %v1585 = vrot.slane %v1581, %v1584
        %v1586 = vadd.f32 %v1580, %v1585
        %v1587 = vld [vmem:[%s15] sm:$0x7f]
        %v1588 = vld [vmem:[%s16] sm:$0x1]
        %v1589 = vlaneseq
        %v1590 = vshrl.u32 %v1589, 7
        %v1591 = vsub.s32 0, %v1590
        %v1592 = vrot.slane %v1588, %v1591
        %v1594 = vsel %vm1298, %v1586, 0
        %v1597 = vsel %vm1302, %v1587, 0
        %1599 = vmatprep.subr.mxu0 0.0
        %1600 = vmatpush1.msra.mxu0 %v1597
        %1601 = vmatprep.subr.mxu0 0.0
        %1602 = vmatpush1.msra.mxu0 0.0
        %1603 = vmatprep.subr.mxu0 0.0
        %1604 = vmatpush1.msra.mxu0 0.0
        %1605 = vmatprep.subr.mxu0 0.0
        %1606 = vmatpush1.msra.mxu0 0.0
        %1607 = vmatprep.subr.mxu0 0.0
        %1608 = vmatpush1.msra.mxu0 0.0
        %1609 = vmatprep.subr.mxu0 0.0
        %1610 = vmatpush1.msra.mxu0 0.0
        %1611 = vmatprep.subr.mxu0 0.0
        %1612 = vmatpush1.msra.mxu0 0.0
        %1613 = vmatprep.subr.mxu0 0.0
        %1614 = vmatpush1.msra.mxu0 0.0
        %1615 = vmatprep.subr.mxu0 0.0
        %1616 = vmatpush1.msra.mxu0 0.0
        %1617 = vmatprep.subr.mxu0 0.0
        %1618 = vmatpush1.msra.mxu0 0.0
        %1619 = vmatprep.subr.mxu0 0.0
        %1620 = vmatpush1.msra.mxu0 0.0
        %1621 = vmatprep.subr.mxu0 0.0
        %1622 = vmatpush1.msra.mxu0 0.0
        %1623 = vmatprep.subr.mxu0 0.0
        %1624 = vmatpush1.msra.mxu0 0.0
        %1625 = vmatprep.subr.mxu0 0.0
        %1626 = vmatpush1.msra.mxu0 0.0
        %1627 = vmatprep.subr.mxu0 0.0
        %1628 = vmatpush1.msra.mxu0 0.0
        %1629 = vmatprep.subr.mxu0 0.0
        %1630 = vmatpush1.msra.mxu0 0.0
        %1631 = vmatprep.subr.mxu0 0.0
        %1632 = vmatpush1.msra.mxu0 0.0
        %1633 = vmatprep.subr.mxu0 0.0
        %1634 = vmatpush1.msra.mxu0 0.0
        %1635 = vmatprep.subr.mxu0 0.0
        %1636 = vmatpush1.msra.mxu0 0.0
        %1637 = vmatprep.subr.mxu0 0.0
        %1638 = vmatpush1.msra.mxu0 0.0
        %1639 = vmatprep.subr.mxu0 0.0
        %1640 = vmatpush1.msra.mxu0 0.0
        %1641 = vmatprep.subr.mxu0 0.0
        %1642 = vmatpush1.msra.mxu0 0.0
        %1643 = vmatprep.subr.mxu0 0.0
        %1644 = vmatpush1.msra.mxu0 0.0
        %1645 = vmatprep.subr.mxu0 0.0
        %1646 = vmatpush1.msra.mxu0 0.0
        %1647 = vmatprep.subr.mxu0 0.0
        %1648 = vmatpush1.msra.mxu0 0.0
        %1649 = vmatprep.subr.mxu0 0.0
        %1650 = vmatpush1.msra.mxu0 0.0
        %1651 = vmatprep.subr.mxu0 0.0
        %1652 = vmatpush1.msra.mxu0 0.0
        %1653 = vmatprep.subr.mxu0 0.0
        %1654 = vmatpush1.msra.mxu0 0.0
        %1655 = vmatprep.subr.mxu0 0.0
        %1656 = vmatpush1.msra.mxu0 0.0
        %1657 = vmatprep.subr.mxu0 0.0
        %1658 = vmatpush1.msra.mxu0 0.0
        %1659 = vmatprep.subr.mxu0 0.0
        %1660 = vmatpush1.msra.mxu0 0.0
        %1661 = vmatprep.subr.mxu0 0.0
        %1662 = vmatpush1.msra.mxu0 0.0
        %1663 = vmatprep.mubr.f32.mxu0 0.0
        %1664 = vmatmul.mubr.f32.gmra.mrb[0].mxu0 %v1594
        %v1665 = vpop.f32.mrb[0].mxu0
        %v1666 = vadd.f32 %v1592, %v1665
        %v1667 = vpop.f32.mrb[0].mxu0
        %1668 = vdwg.mxu0
        %v1669 = vmax.f32 %v1666, 0.0
        %v1670 = vld [vmem:[%s17] sm:$0xff]
        %v1671 = vld [vmem:[%s17 + $0x8] sm:$0x3f]
        %v1672 = vld [vmem:[%s18 + $0x4] sm:$0x1]
        %v1673 = vlaneseq
        %v1674 = vshrl.u32 %v1673, 7
        %v1675 = vsub.s32 0, %v1674
        %v1676 = vrot.slane %v1672, %v1675
        %vm1677 = vcmask 113664
        %v1679 = vsel %vm1677, %v1669, 0
        %v1682 = vsel %vm1012, %v1671, 0
        %1684 = vmatprep.subr.mxu0 0.0
        %1685 = vmatpush1.msra.mxu0 %v1670
        %1686 = vmatprep.subr.mxu0 0.0
        %1687 = vmatpush1.msra.mxu0 %v1682
        %1688 = vmatprep.subr.mxu0 0.0
        %1689 = vmatpush1.msra.mxu0 0.0
        %1690 = vmatprep.subr.mxu0 0.0
        %1691 = vmatpush1.msra.mxu0 0.0
        %1692 = vmatprep.subr.mxu0 0.0
        %1693 = vmatpush1.msra.mxu0 0.0
        %1694 = vmatprep.subr.mxu0 0.0
        %1695 = vmatpush1.msra.mxu0 0.0
        %1696 = vmatprep.subr.mxu0 0.0
        %1697 = vmatpush1.msra.mxu0 0.0
        %1698 = vmatprep.subr.mxu0 0.0
        %1699 = vmatpush1.msra.mxu0 0.0
        %1700 = vmatprep.subr.mxu0 0.0
        %1701 = vmatpush1.msra.mxu0 0.0
        %1702 = vmatprep.subr.mxu0 0.0
        %1703 = vmatpush1.msra.mxu0 0.0
        %1704 = vmatprep.subr.mxu0 0.0
        %1705 = vmatpush1.msra.mxu0 0.0
        %1706 = vmatprep.subr.mxu0 0.0
        %1707 = vmatpush1.msra.mxu0 0.0
        %1708 = vmatprep.subr.mxu0 0.0
        %1709 = vmatpush1.msra.mxu0 0.0
        %1710 = vmatprep.subr.mxu0 0.0
        %1711 = vmatpush1.msra.mxu0 0.0
        %1712 = vmatprep.subr.mxu0 0.0
        %1713 = vmatpush1.msra.mxu0 0.0
        %1714 = vmatprep.subr.mxu0 0.0
        %1715 = vmatpush1.msra.mxu0 0.0
        %1716 = vmatprep.subr.mxu0 0.0
        %1717 = vmatpush1.msra.mxu0 0.0
        %1718 = vmatprep.subr.mxu0 0.0
        %1719 = vmatpush1.msra.mxu0 0.0
        %1720 = vmatprep.subr.mxu0 0.0
        %1721 = vmatpush1.msra.mxu0 0.0
        %1722 = vmatprep.subr.mxu0 0.0
        %1723 = vmatpush1.msra.mxu0 0.0
        %1724 = vmatprep.subr.mxu0 0.0
        %1725 = vmatpush1.msra.mxu0 0.0
        %1726 = vmatprep.subr.mxu0 0.0
        %1727 = vmatpush1.msra.mxu0 0.0
        %1728 = vmatprep.subr.mxu0 0.0
        %1729 = vmatpush1.msra.mxu0 0.0
        %1730 = vmatprep.subr.mxu0 0.0
        %1731 = vmatpush1.msra.mxu0 0.0
        %1732 = vmatprep.subr.mxu0 0.0
        %1733 = vmatpush1.msra.mxu0 0.0
        %1734 = vmatprep.subr.mxu0 0.0
        %1735 = vmatpush1.msra.mxu0 0.0
        %1736 = vmatprep.subr.mxu0 0.0
        %1737 = vmatpush1.msra.mxu0 0.0
        %1738 = vmatprep.subr.mxu0 0.0
        %1739 = vmatpush1.msra.mxu0 0.0
        %1740 = vmatprep.subr.mxu0 0.0
        %1741 = vmatpush1.msra.mxu0 0.0
        %1742 = vmatprep.subr.mxu0 0.0
        %1743 = vmatpush1.msra.mxu0 0.0
        %1744 = vmatprep.subr.mxu0 0.0
        %1745 = vmatpush1.msra.mxu0 0.0
        %1746 = vmatprep.subr.mxu0 0.0
        %1747 = vmatpush1.msra.mxu0 0.0
        %1748 = vmatprep.mubr.f32.mxu0 0.0
        %1749 = vmatmul.mubr.f32.gmra.mrb[0].mxu0 %v1679
        %v1750 = vpop.f32.mrb[0].mxu0
        %v1751 = vadd.f32 %v1676, %v1750
        %v1752 = vpop.f32.mrb[0].mxu0
        %1753 = vdwg.mxu0
        %v1754 = vadd.f32 %v1586, %v1751
        %v1755 = vsel %vm1258, %v1754, 0.0
        %1756 = vadd.xlane.f32.xlu0 %v1755
        %v1757 = vpop.xlane.xlu0 %1756
        %v1758 = vmul.f32 %v1757, %v1564
        %v1759 = vsub.f32 %v1754, %v1758
        %v1760 = vmul.f32 %v1759, %v1759
        %v1761 = vsel %vm1258, %v1760, 0.0
        %1762 = vadd.xlane.f32.xlu0 %v1761
        %v1763 = vpop.xlane.xlu0 %1762
        %v1764 = vmul.f32 %v1763, %v1564
        %v1765 = vadd.f32 %v1764, 1e-05
        %v1766 = vrsqrt.pop %v1765
        %v1767 = vmul.f32 %v1759, %v1766
        %v1768 = vld [vmem:[%s18 + $0x8] sm:$0x1]
        %v1769 = vlaneseq
        %v1770 = vshrl.u32 %v1769, 7
        %v1771 = vsub.s32 0, %v1770
        %v1772 = vrot.slane %v1768, %v1771
        %v1773 = vmul.f32 %v1767, %v1772
        %v1774 = vld [vmem:[%s18 + $0x9] sm:$0x1]
        %v1775 = vlaneseq
        %v1776 = vshrl.u32 %v1775, 7
        %v1777 = vsub.s32 0, %v1776
        %v1778 = vrot.slane %v1774, %v1777
        %v1779 = vadd.f32 %v1773, %v1778
        %v1780 = vsel %vm1258, %v1779, 0.0
        %1781 = vadd.xlane.f32.xlu0 %v1780
        %v1782 = vpop.xlane.xlu0 %1781
        %v1783 = vmul.f32 %v1782, %v1564
        %v1784 = vsub.f32 %v1779, %v1783
        %v1785 = vmul.f32 %v1784, %v1784
        %v1786 = vsel %vm1258, %v1785, 0.0
        %1787 = vadd.xlane.f32.xlu0 %v1786
        %v1788 = vpop.xlane.xlu0 %1787
        %v1789 = vmul.f32 %v1788, %v1564
        %v1790 = vadd.f32 %v1789, 1e-05
        %v1791 = vrsqrt.pop %v1790
        %v1792 = vmul.f32 %v1784, %v1791
        %v1793 = vld [vmem:[%s18 + $0xa] sm:$0x1]
        %v1794 = vlaneseq
        %v1795 = vshrl.u32 %v1794, 7
        %v1796 = vsub.s32 0, %v1795
        %v1797 = vrot.slane %v1793, %v1796
        %v1798 = vmul.f32 %v1792, %v1797
        %v1799 = vld [vmem:[%s18 + $0xb] sm:$0x1]
        %v1800 = vlaneseq
        %v1801 = vshrl.u32 %v1800, 7
        %v1802 = vsub.s32 0, %v1801
        %v1803 = vrot.slane %v1799, %v1802
        %v1804 = vadd.f32 %v1798, %v1803
        %v1805 = vld [vmem:[%s11] sm:$0x7f]
        %v1806 = vld [vmem:[%s12] sm:$0x1]
        %v1808 = vlaneseq
        %v1809 = vshrl.u32 %v1808, 7
        %v1810 = vsub.s32 0, %v1809
        %v1811 = vrot.slane %v1806, %v1810
        %v1813 = vsel %vm1298, %v1373, 0
        %v1816 = vsel %vm1302, %v1805, 0
        %1818 = vmatprep.subr.mxu0 0.0
        %1819 = vmatpush1.msra.mxu0 %v1816
        %1820 = vmatprep.subr.mxu0 0.0
        %1821 = vmatpush1.msra.mxu0 0.0
        %1822 = vmatprep.subr.mxu0 0.0
        %1823 = vmatpush1.msra.mxu0 0.0
        %1824 = vmatprep.subr.mxu0 0.0
        %1825 = vmatpush1.msra.mxu0 0.0
        %1826 = vmatprep.subr.mxu0 0.0
        %1827 = vmatpush1.msra.mxu0 0.0
        %1828 = vmatprep.subr.mxu0 0.0
        %1829 = vmatpush1.msra.mxu0 0.0
        %1830 = vmatprep.subr.mxu0 0.0
        %1831 = vmatpush1.msra.mxu0 0.0
        %1832 = vmatprep.subr.mxu0 0.0
        %1833 = vmatpush1.msra.mxu0 0.0
        %1834 = vmatprep.subr.mxu0 0.0
        %1835 = vmatpush1.msra.mxu0 0.0
        %1836 = vmatprep.subr.mxu0 0.0
        %1837 = vmatpush1.msra.mxu0 0.0
        %1838 = vmatprep.subr.mxu0 0.0
        %1839 = vmatpush1.msra.mxu0 0.0
        %1840 = vmatprep.subr.mxu0 0.0
        %1841 = vmatpush1.msra.mxu0 0.0
        %1842 = vmatprep.subr.mxu0 0.0
        %1843 = vmatpush1.msra.mxu0 0.0
        %1844 = vmatprep.subr.mxu0 0.0
        %1845 = vmatpush1.msra.mxu0 0.0
        %1846 = vmatprep.subr.mxu0 0.0
        %1847 = vmatpush1.msra.mxu0 0.0
        %1848 = vmatprep.subr.mxu0 0.0
        %1849 = vmatpush1.msra.mxu0 0.0
        %1850 = vmatprep.subr.mxu0 0.0
        %1851 = vmatpush1.msra.mxu0 0.0
        %1852 = vmatprep.subr.mxu0 0.0
        %1853 = vmatpush1.msra.mxu0 0.0
        %1854 = vmatprep.subr.mxu0 0.0
        %1855 = vmatpush1.msra.mxu0 0.0
        %1856 = vmatprep.subr.mxu0 0.0
        %1857 = vmatpush1.msra.mxu0 0.0
        %1858 = vmatprep.subr.mxu0 0.0
        %1859 = vmatpush1.msra.mxu0 0.0
        %1860 = vmatprep.subr.mxu0 0.0
        %1861 = vmatpush1.msra.mxu0 0.0
        %1862 = vmatprep.subr.mxu0 0.0
        %1863 = vmatpush1.msra.mxu0 0.0
        %1864 = vmatprep.subr.mxu0 0.0
        %1865 = vmatpush1.msra.mxu0 0.0
        %1866 = vmatprep.subr.mxu0 0.0
        %1867 = vmatpush1.msra.mxu0 0.0
        %1868 = vmatprep.subr.mxu0 0.0
        %1869 = vmatpush1.msra.mxu0 0.0
        %1870 = vmatprep.subr.mxu0 0.0
        %1871 = vmatpush1.msra.mxu0 0.0
        %1872 = vmatprep.subr.mxu0 0.0
        %1873 = vmatpush1.msra.mxu0 0.0
        %1874 = vmatprep.subr.mxu0 0.0
        %1875 = vmatpush1.msra.mxu0 0.0
        %1876 = vmatprep.subr.mxu0 0.0
        %1877 = vmatpush1.msra.mxu0 0.0
        %1878 = vmatprep.subr.mxu0 0.0
        %1879 = vmatpush1.msra.mxu0 0.0
        %1880 = vmatprep.subr.mxu0 0.0
        %1881 = vmatpush1.msra.mxu0 0.0
        %1882 = vmatprep.mubr.f32.mxu0 0.0
        %1883 = vmatmul.mubr.f32.gmra.mrb[0].mxu0 %v1813
        %v1884 = vpop.f32.mrb[0].mxu0
        %v1885 = vadd.f32 %v1811, %v1884
        %v1886 = vpop.f32.mrb[0].mxu0
        %1887 = vdwg.mxu0
        %v1890 = vunpack.c.l.s4 1966171168
        %v1891 = vunpack.c.0.s8 %v1890
        %v1892 = vlaneseq
        %v1893 = vshrl.u32 %v1892, 7
        %v1894 = vsub.s32 %v1891, %v1893
        %v1895 = vrot.slane %v1885, %v1894
        %v1896 = vcombine.high %v1895, %v1895
        %v1898 = vunpack.c.l.s4 1966171168
        %v1899 = vunpack.c.0.s8 %v1898
        %v1900 = vlaneseq
        %v1901 = vshrl.u32 %v1900, 7
        %v1902 = vsub.s32 %v1899, %v1901
        %v1903 = vrot.slane %v1895, %v1902
        %v1905 = vunpack.c.l.s4 1966171168
        %v1906 = vunpack.c.0.s8 %v1905
        %v1907 = vlaneseq
        %v1908 = vshrl.u32 %v1907, 7
        %v1909 = vsub.s32 %v1906, %v1908
        %v1910 = vrot.slane %v1896, %v1909
        %v1911 = vlaneseq
        %v1912 = vshrl.u32 %v1911, 7
        %v1913 = vsub.s32 0, %v1912
        %v1914 = vrot.slane %v1903, %v1913
        %v1915 = vlaneseq
        %v1916 = vshrl.u32 %v1915, 7
        %v1917 = vsub.s32 0, %v1916
        %v1918 = vrot.slane %v1910, %v1917
        %1921 = vrot.lane.b32.xlu0 %v1885, 121
        %v1922 = vpop.permute.xlu0 %1921
        %v1924 = vmul.f32 %v1914, %v1922
        %v1925 = vmul.f32 %v1918, %v1922
        %v1926 = vsel %vm1258, %v1924, -inf
        %v1927 = vrot.slane %v1926, 4
        %v1928 = vmax.f32 %v1926, %v1927
        %v1929 = vrot.slane %v1928, 2
        %v1930 = vmax.f32 %v1928, %v1929
        %v1931 = vrot.slane %v1930, 1
        %v1932 = vmax.f32 %v1930, %v1931
        %v1933 = vsel %vm1258, %v1925, -inf
        %v1934 = vrot.slane %v1933, 4
        %v1935 = vmax.f32 %v1933, %v1934
        %v1936 = vrot.slane %v1935, 2
        %v1937 = vmax.f32 %v1935, %v1936
        %v1938 = vrot.slane %v1937, 1
        %v1939 = vmax.f32 %v1937, %v1938
        %v1940 = vsub.f32 %v1924, %v1932
        %v1941 = vsub.f32 %v1925, %v1939
        %v1942 = vmul.f32 %v1940, 1.442695
        %v1943 = vpow.pop %v1942
        %v1944 = vmul.f32 %v1941, 1.442695
        %v1945 = vpow.pop %v1944
        %1946 = vrot.lane.b32.xlu0 %v1885, 114
        %v1947 = vpop.permute.xlu0 %1946
        %v1949 = vmul.f32 %v1943, %v1947
        %v1950 = vmul.f32 %v1945, %v1947
        %v1951 = vsel %vm1258, %v1949, 0.0
        %v1952 = vrot.slane %v1951, 4
        %v1953 = vadd.f32 %v1951, %v1952
        %v1954 = vrot.slane %v1953, 2
        %v1955 = vadd.f32 %v1953, %v1954
        %v1956 = vrot.slane %v1955, 1
        %v1957 = vadd.f32 %v1955, %v1956
        %v1958 = vsel %vm1258, %v1950, 0.0
        %v1959 = vrot.slane %v1958, 4
        %v1960 = vadd.f32 %v1958, %v1959
        %v1961 = vrot.slane %v1960, 2
        %v1962 = vadd.f32 %v1960, %v1961
        %v1963 = vrot.slane %v1962, 1
        %v1964 = vadd.f32 %v1962, %v1963
        %v1965 = vsel %vm1258, %v1943, 0.0
        %v1966 = vrot.slane %v1965, 4
        %v1967 = vadd.f32 %v1965, %v1966
        %v1968 = vrot.slane %v1967, 2
        %v1969 = vadd.f32 %v1967, %v1968
        %v1970 = vrot.slane %v1969, 1
        %v1971 = vadd.f32 %v1969, %v1970
        %v1972 = vsel %vm1258, %v1945, 0.0
        %v1973 = vrot.slane %v1972, 4
        %v1974 = vadd.f32 %v1972, %v1973
        %v1975 = vrot.slane %v1974, 2
        %v1976 = vadd.f32 %v1974, %v1975
        %v1977 = vrot.slane %v1976, 1
        %v1978 = vadd.f32 %v1976, %v1977
        %v1979 = vrcp.pop %v1971
        %v1980 = vrcp.pop %v1978
        %v1981 = vmul.f32 %v1957, %v1979
        %v1982 = vmul.f32 %v1964, %v1980
        %s1983 = scalar_lea.vmem %s10, 16
        %v1984 = vld [vmem:[%s1983] sm:$0x7f]
        %v1985 = vld [vmem:[%s18 + $0x2] sm:$0x1]
        %v1986 = vlaneseq
        %v1987 = vshrl.u32 %v1986, 7
        %v1988 = vsub.s32 0, %v1987
        %v1989 = vrot.slane %v1985, %v1988
        %v1992 = vsel %vm1481, %v1982, %v1981
        %v1993 = vsel %vm1298, %v1992, 0
        %v1996 = vsel %vm1302, %v1984, 0
        %1998 = vmatprep.subr.mxu0 0.0
        %1999 = vmatpush1.msra.mxu0 %v1996
        %2000 = vmatprep.subr.mxu0 0.0
        %2001 = vmatpush1.msra.mxu0 0.0
        %2002 = vmatprep.subr.mxu0 0.0
        %2003 = vmatpush1.msra.mxu0 0.0
        %2004 = vmatprep.subr.mxu0 0.0
        %2005 = vmatpush1.msra.mxu0 0.0
        %2006 = vmatprep.subr.mxu0 0.0
        %2007 = vmatpush1.msra.mxu0 0.0
        %2008 = vmatprep.subr.mxu0 0.0
        %2009 = vmatpush1.msra.mxu0 0.0
        %2010 = vmatprep.subr.mxu0 0.0
        %2011 = vmatpush1.msra.mxu0 0.0
        %2012 = vmatprep.subr.mxu0 0.0
        %2013 = vmatpush1.msra.mxu0 0.0
        %2014 = vmatprep.subr.mxu0 0.0
        %2015 = vmatpush1.msra.mxu0 0.0
        %2016 = vmatprep.subr.mxu0 0.0
        %2017 = vmatpush1.msra.mxu0 0.0
        %2018 = vmatprep.subr.mxu0 0.0
        %2019 = vmatpush1.msra.mxu0 0.0
        %2020 = vmatprep.subr.mxu0 0.0
        %2021 = vmatpush1.msra.mxu0 0.0
        %2022 = vmatprep.subr.mxu0 0.0
        %2023 = vmatpush1.msra.mxu0 0.0
        %2024 = vmatprep.subr.mxu0 0.0
        %2025 = vmatpush1.msra.mxu0 0.0
        %2026 = vmatprep.subr.mxu0 0.0
        %2027 = vmatpush1.msra.mxu0 0.0
        %2028 = vmatprep.subr.mxu0 0.0
        %2029 = vmatpush1.msra.mxu0 0.0
        %2030 = vmatprep.subr.mxu0 0.0
        %2031 = vmatpush1.msra.mxu0 0.0
        %2032 = vmatprep.subr.mxu0 0.0
        %2033 = vmatpush1.msra.mxu0 0.0
        %2034 = vmatprep.subr.mxu0 0.0
        %2035 = vmatpush1.msra.mxu0 0.0
        %2036 = vmatprep.subr.mxu0 0.0
        %2037 = vmatpush1.msra.mxu0 0.0
        %2038 = vmatprep.subr.mxu0 0.0
        %2039 = vmatpush1.msra.mxu0 0.0
        %2040 = vmatprep.subr.mxu0 0.0
        %2041 = vmatpush1.msra.mxu0 0.0
        %2042 = vmatprep.subr.mxu0 0.0
        %2043 = vmatpush1.msra.mxu0 0.0
        %2044 = vmatprep.subr.mxu0 0.0
        %2045 = vmatpush1.msra.mxu0 0.0
        %2046 = vmatprep.subr.mxu0 0.0
        %2047 = vmatpush1.msra.mxu0 0.0
        %2048 = vmatprep.subr.mxu0 0.0
        %2049 = vmatpush1.msra.mxu0 0.0
        %2050 = vmatprep.subr.mxu0 0.0
        %2051 = vmatpush1.msra.mxu0 0.0
        %2052 = vmatprep.subr.mxu0 0.0
        %2053 = vmatpush1.msra.mxu0 0.0
        %2054 = vmatprep.subr.mxu0 0.0
        %2055 = vmatpush1.msra.mxu0 0.0
        %2056 = vmatprep.subr.mxu0 0.0
        %2057 = vmatpush1.msra.mxu0 0.0
        %2058 = vmatprep.subr.mxu0 0.0
        %2059 = vmatpush1.msra.mxu0 0.0
        %2060 = vmatprep.subr.mxu0 0.0
        %2061 = vmatpush1.msra.mxu0 0.0
        %2062 = vmatprep.mubr.f32.mxu0 0.0
        %2063 = vmatmul.mubr.f32.gmra.mrb[0].mxu0 %v1993
        %v2064 = vpop.f32.mrb[0].mxu0
        %v2065 = vadd.f32 %v1989, %v2064
        %v2066 = vpop.f32.mrb[0].mxu0
        %2067 = vdwg.mxu0
        %v2068 = vadd.f32 %v1373, %v2065
        %v2069 = vsel %vm1258, %v2068, 0.0
        %2070 = vadd.xlane.f32.xlu0 %v2069
        %v2071 = vpop.xlane.xlu0 %2070
        %v2072 = vmul.f32 %v2071, %v1564
        %v2073 = vsub.f32 %v2068, %v2072
        %v2074 = vmul.f32 %v2073, %v2073
        %v2075 = vsel %vm1258, %v2074, 0.0
        %2076 = vadd.xlane.f32.xlu0 %v2075
        %v2077 = vpop.xlane.xlu0 %2076
        %v2078 = vmul.f32 %v2077, %v1564
        %v2079 = vadd.f32 %v2078, 1e-05
        %v2080 = vrsqrt.pop %v2079
        %v2081 = vmul.f32 %v2073, %v2080
        %v2082 = vld [vmem:[%s18 + $0xc] sm:$0x1]
        %v2083 = vlaneseq
        %v2084 = vshrl.u32 %v2083, 7
        %v2085 = vsub.s32 0, %v2084
        %v2086 = vrot.slane %v2082, %v2085
        %v2087 = vmul.f32 %v2081, %v2086
        %v2088 = vld [vmem:[%s18 + $0xd] sm:$0x1]
        %v2089 = vlaneseq
        %v2090 = vshrl.u32 %v2089, 7
        %v2091 = vsub.s32 0, %v2090
        %v2092 = vrot.slane %v2088, %v2091
        %v2093 = vadd.f32 %v2087, %v2092
        %v2094 = vld [vmem:[%s10] sm:$0x7f]
        %v2095 = vld [vmem:[%s18] sm:$0x1]
        %v2096 = vlaneseq
        %v2097 = vshrl.u32 %v2096, 7
        %v2098 = vsub.s32 0, %v2097
        %v2099 = vrot.slane %v2095, %v2098
        %v2101 = vsel %vm1298, %v2093, 0
        %v2104 = vsel %vm1302, %v2094, 0
        %2106 = vmatprep.subr.mxu0 0.0
        %2107 = vmatpush1.msra.mxu0 %v2104
        %2108 = vmatprep.subr.mxu0 0.0
        %2109 = vmatpush1.msra.mxu0 0.0
        %2110 = vmatprep.subr.mxu0 0.0
        %2111 = vmatpush1.msra.mxu0 0.0
        %2112 = vmatprep.subr.mxu0 0.0
        %2113 = vmatpush1.msra.mxu0 0.0
        %2114 = vmatprep.subr.mxu0 0.0
        %2115 = vmatpush1.msra.mxu0 0.0
        %2116 = vmatprep.subr.mxu0 0.0
        %2117 = vmatpush1.msra.mxu0 0.0
        %2118 = vmatprep.subr.mxu0 0.0
        %2119 = vmatpush1.msra.mxu0 0.0
        %2120 = vmatprep.subr.mxu0 0.0
        %2121 = vmatpush1.msra.mxu0 0.0
        %2122 = vmatprep.subr.mxu0 0.0
        %2123 = vmatpush1.msra.mxu0 0.0
        %2124 = vmatprep.subr.mxu0 0.0
        %2125 = vmatpush1.msra.mxu0 0.0
        %2126 = vmatprep.subr.mxu0 0.0
        %2127 = vmatpush1.msra.mxu0 0.0
        %2128 = vmatprep.subr.mxu0 0.0
        %2129 = vmatpush1.msra.mxu0 0.0
        %2130 = vmatprep.subr.mxu0 0.0
        %2131 = vmatpush1.msra.mxu0 0.0
        %2132 = vmatprep.subr.mxu0 0.0
        %2133 = vmatpush1.msra.mxu0 0.0
        %2134 = vmatprep.subr.mxu0 0.0
        %2135 = vmatpush1.msra.mxu0 0.0
        %2136 = vmatprep.subr.mxu0 0.0
        %2137 = vmatpush1.msra.mxu0 0.0
        %2138 = vmatprep.subr.mxu0 0.0
        %2139 = vmatpush1.msra.mxu0 0.0
        %2140 = vmatprep.subr.mxu0 0.0
        %2141 = vmatpush1.msra.mxu0 0.0
        %2142 = vmatprep.subr.mxu0 0.0
        %2143 = vmatpush1.msra.mxu0 0.0
        %2144 = vmatprep.subr.mxu0 0.0
        %2145 = vmatpush1.msra.mxu0 0.0
        %2146 = vmatprep.subr.mxu0 0.0
        %2147 = vmatpush1.msra.mxu0 0.0
        %2148 = vmatprep.subr.mxu0 0.0
        %2149 = vmatpush1.msra.mxu0 0.0
        %2150 = vmatprep.subr.mxu0 0.0
        %2151 = vmatpush1.msra.mxu0 0.0
        %2152 = vmatprep.subr.mxu0 0.0
        %2153 = vmatpush1.msra.mxu0 0.0
        %2154 = vmatprep.subr.mxu0 0.0
        %2155 = vmatpush1.msra.mxu0 0.0
        %2156 = vmatprep.subr.mxu0 0.0
        %2157 = vmatpush1.msra.mxu0 0.0
        %2158 = vmatprep.subr.mxu0 0.0
        %2159 = vmatpush1.msra.mxu0 0.0
        %2160 = vmatprep.subr.mxu0 0.0
        %2161 = vmatpush1.msra.mxu0 0.0
        %2162 = vmatprep.subr.mxu0 0.0
        %2163 = vmatpush1.msra.mxu0 0.0
        %2164 = vmatprep.subr.mxu0 0.0
        %2165 = vmatpush1.msra.mxu0 0.0
        %2166 = vmatprep.subr.mxu0 0.0
        %2167 = vmatpush1.msra.mxu0 0.0
        %2168 = vmatprep.subr.mxu0 0.0
        %2169 = vmatpush1.msra.mxu0 0.0
        %2170 = vmatprep.mubr.f32.mxu0 0.0
        %2171 = vmatmul.mubr.f32.gmra.mrb[0].mxu0 %v2101
        %v2172 = vpop.f32.mrb[0].mxu0
        %v2173 = vadd.f32 %v2099, %v2172
        %v2174 = vpop.f32.mrb[0].mxu0
        %2175 = vdwg.mxu0
        %v2176 = vld [vmem:[%s13] sm:$0x7f]
        %v2177 = vld [vmem:[%s14] sm:$0x1]
        %v2179 = vlaneseq
        %v2180 = vshrl.u32 %v2179, 7
        %v2181 = vsub.s32 0, %v2180
        %v2182 = vrot.slane %v2177, %v2181
        %v2185 = vsel %vm1298, %v1804, 0
        %v2188 = vsel %vm1302, %v2176, 0
        %2190 = vmatprep.subr.mxu0 0.0
        %2191 = vmatpush1.msra.mxu0 %v2188
        %2192 = vmatprep.subr.mxu0 0.0
        %2193 = vmatpush1.msra.mxu0 0.0
        %2194 = vmatprep.subr.mxu0 0.0
        %2195 = vmatpush1.msra.mxu0 0.0
        %2196 = vmatprep.subr.mxu0 0.0
        %2197 = vmatpush1.msra.mxu0 0.0
        %2198 = vmatprep.subr.mxu0 0.0
        %2199 = vmatpush1.msra.mxu0 0.0
        %2200 = vmatprep.subr.mxu0 0.0
        %2201 = vmatpush1.msra.mxu0 0.0
        %2202 = vmatprep.subr.mxu0 0.0
        %2203 = vmatpush1.msra.mxu0 0.0
        %2204 = vmatprep.subr.mxu0 0.0
        %2205 = vmatpush1.msra.mxu0 0.0
        %2206 = vmatprep.subr.mxu0 0.0
        %2207 = vmatpush1.msra.mxu0 0.0
        %2208 = vmatprep.subr.mxu0 0.0
        %2209 = vmatpush1.msra.mxu0 0.0
        %2210 = vmatprep.subr.mxu0 0.0
        %2211 = vmatpush1.msra.mxu0 0.0
        %2212 = vmatprep.subr.mxu0 0.0
        %2213 = vmatpush1.msra.mxu0 0.0
        %2214 = vmatprep.subr.mxu0 0.0
        %2215 = vmatpush1.msra.mxu0 0.0
        %2216 = vmatprep.subr.mxu0 0.0
        %2217 = vmatpush1.msra.mxu0 0.0
        %2218 = vmatprep.subr.mxu0 0.0
        %2219 = vmatpush1.msra.mxu0 0.0
        %2220 = vmatprep.subr.mxu0 0.0
        %2221 = vmatpush1.msra.mxu0 0.0
        %2222 = vmatprep.subr.mxu0 0.0
        %2223 = vmatpush1.msra.mxu0 0.0
        %2224 = vmatprep.subr.mxu0 0.0
        %2225 = vmatpush1.msra.mxu0 0.0
        %2226 = vmatprep.subr.mxu0 0.0
        %2227 = vmatpush1.msra.mxu0 0.0
        %2228 = vmatprep.subr.mxu0 0.0
        %2229 = vmatpush1.msra.mxu0 0.0
        %2230 = vmatprep.subr.mxu0 0.0
        %2231 = vmatpush1.msra.mxu0 0.0
        %2232 = vmatprep.subr.mxu0 0.0
        %2233 = vmatpush1.msra.mxu0 0.0
        %2234 = vmatprep.subr.mxu0 0.0
        %2235 = vmatpush1.msra.mxu0 0.0
        %2236 = vmatprep.subr.mxu0 0.0
        %2237 = vmatpush1.msra.mxu0 0.0
        %2238 = vmatprep.subr.mxu0 0.0
        %2239 = vmatpush1.msra.mxu0 0.0
        %2240 = vmatprep.subr.mxu0 0.0
        %2241 = vmatpush1.msra.mxu0 0.0
        %2242 = vmatprep.subr.mxu0 0.0
        %2243 = vmatpush1.msra.mxu0 0.0
        %2244 = vmatprep.subr.mxu0 0.0
        %2245 = vmatpush1.msra.mxu0 0.0
        %2246 = vmatprep.subr.mxu0 0.0
        %2247 = vmatpush1.msra.mxu0 0.0
        %2248 = vmatprep.subr.mxu0 0.0
        %2249 = vmatpush1.msra.mxu0 0.0
        %2250 = vmatprep.subr.mxu0 0.0
        %2251 = vmatpush1.msra.mxu0 0.0
        %2252 = vmatprep.subr.mxu0 0.0
        %2253 = vmatpush1.msra.mxu0 0.0
        %2254 = vmatprep.mubr.f32.mxu0 0.0
        %2255 = vmatmul.mubr.f32.gmra.mrb[0].mxu0 %v2185
        %v2256 = vpop.f32.mrb[0].mxu0
        %v2257 = vadd.f32 %v2182, %v2256
        %v2258 = vpop.f32.mrb[0].mxu0
        %2259 = vdwg.mxu0
        %v2262 = vunpack.c.l.s4 1966171168
        %v2263 = vunpack.c.0.s8 %v2262
        %v2264 = vlaneseq
        %v2265 = vshrl.u32 %v2264, 7
        %v2266 = vsub.s32 %v2263, %v2265
        %v2267 = vrot.slane %v2173, %v2266
        %v2268 = vcombine.high %v2267, %v2267
        %v2270 = vunpack.c.l.s4 1966171168
        %v2271 = vunpack.c.0.s8 %v2270
        %v2272 = vlaneseq
        %v2273 = vshrl.u32 %v2272, 7
        %v2274 = vsub.s32 %v2271, %v2273
        %v2275 = vrot.slane %v2267, %v2274
        %v2277 = vunpack.c.l.s4 1966171168
        %v2278 = vunpack.c.0.s8 %v2277
        %v2279 = vlaneseq
        %v2280 = vshrl.u32 %v2279, 7
        %v2281 = vsub.s32 %v2278, %v2280
        %v2282 = vrot.slane %v2268, %v2281
        %v2283 = vlaneseq
        %v2284 = vshrl.u32 %v2283, 7
        %v2285 = vsub.s32 0, %v2284
        %v2286 = vrot.slane %v2275, %v2285
        %v2287 = vlaneseq
        %v2288 = vshrl.u32 %v2287, 7
        %v2289 = vsub.s32 0, %v2288
        %v2290 = vrot.slane %v2282, %v2289
        %v2293 = vmul.f32 %v2286, %v2257
        %v2294 = vmul.f32 %v2290, %v2257
        %v2295 = vsel %vm1258, %v2293, -inf
        %v2296 = vrot.slane %v2295, 4
        %v2297 = vmax.f32 %v2295, %v2296
        %v2298 = vrot.slane %v2297, 2
        %v2299 = vmax.f32 %v2297, %v2298
        %v2300 = vrot.slane %v2299, 1
        %v2301 = vmax.f32 %v2299, %v2300
        %v2302 = vsel %vm1258, %v2294, -inf
        %v2303 = vrot.slane %v2302, 4
        %v2304 = vmax.f32 %v2302, %v2303
        %v2305 = vrot.slane %v2304, 2
        %v2306 = vmax.f32 %v2304, %v2305
        %v2307 = vrot.slane %v2306, 1
        %v2308 = vmax.f32 %v2306, %v2307
        %v2309 = vsub.f32 %v2293, %v2301
        %v2310 = vsub.f32 %v2294, %v2308
        %v2311 = vmul.f32 %v2309, 1.442695
        %v2312 = vpow.pop %v2311
        %v2313 = vmul.f32 %v2310, 1.442695
        %v2314 = vpow.pop %v2313
        %2316 = vrot.lane.b32.xlu0 %v2257, 121
        %v2317 = vpop.permute.xlu0 %2316
        %v2319 = vmul.f32 %v2312, %v2317
        %v2320 = vmul.f32 %v2314, %v2317
        %v2321 = vsel %vm1258, %v2319, 0.0
        %v2322 = vrot.slane %v2321, 4
        %v2323 = vadd.f32 %v2321, %v2322
        %v2324 = vrot.slane %v2323, 2
        %v2325 = vadd.f32 %v2323, %v2324
        %v2326 = vrot.slane %v2325, 1
        %v2327 = vadd.f32 %v2325, %v2326
        %v2328 = vsel %vm1258, %v2320, 0.0
        %v2329 = vrot.slane %v2328, 4
        %v2330 = vadd.f32 %v2328, %v2329
        %v2331 = vrot.slane %v2330, 2
        %v2332 = vadd.f32 %v2330, %v2331
        %v2333 = vrot.slane %v2332, 1
        %v2334 = vadd.f32 %v2332, %v2333
        %v2335 = vsel %vm1258, %v2312, 0.0
        %v2336 = vrot.slane %v2335, 4
        %v2337 = vadd.f32 %v2335, %v2336
        %v2338 = vrot.slane %v2337, 2
        %v2339 = vadd.f32 %v2337, %v2338
        %v2340 = vrot.slane %v2339, 1
        %v2341 = vadd.f32 %v2339, %v2340
        %v2342 = vsel %vm1258, %v2314, 0.0
        %v2343 = vrot.slane %v2342, 4
        %v2344 = vadd.f32 %v2342, %v2343
        %v2345 = vrot.slane %v2344, 2
        %v2346 = vadd.f32 %v2344, %v2345
        %v2347 = vrot.slane %v2346, 1
        %v2348 = vadd.f32 %v2346, %v2347
        %v2349 = vrcp.pop %v2341
        %v2350 = vrcp.pop %v2348
        %v2351 = vmul.f32 %v2327, %v2349
        %v2352 = vmul.f32 %v2334, %v2350
        %s2353 = scalar_lea.vmem %s10, 24
        %v2354 = vld [vmem:[%s2353] sm:$0x7f]
        %v2355 = vld [vmem:[%s18 + $0x3] sm:$0x1]
        %v2356 = vlaneseq
        %v2357 = vshrl.u32 %v2356, 7
        %v2358 = vsub.s32 0, %v2357
        %v2359 = vrot.slane %v2355, %v2358
        %v2362 = vsel %vm1481, %v2352, %v2351
        %v2363 = vsel %vm1298, %v2362, 0
        %v2366 = vsel %vm1302, %v2354, 0
        %2368 = vmatprep.subr.mxu0 0.0
        %2369 = vmatpush1.msra.mxu0 %v2366
        %2370 = vmatprep.subr.mxu0 0.0
        %2371 = vmatpush1.msra.mxu0 0.0
        %2372 = vmatprep.subr.mxu0 0.0
        %2373 = vmatpush1.msra.mxu0 0.0
        %2374 = vmatprep.subr.mxu0 0.0
        %2375 = vmatpush1.msra.mxu0 0.0
        %2376 = vmatprep.subr.mxu0 0.0
        %2377 = vmatpush1.msra.mxu0 0.0
        %2378 = vmatprep.subr.mxu0 0.0
        %2379 = vmatpush1.msra.mxu0 0.0
        %2380 = vmatprep.subr.mxu0 0.0
        %2381 = vmatpush1.msra.mxu0 0.0
        %2382 = vmatprep.subr.mxu0 0.0
        %2383 = vmatpush1.msra.mxu0 0.0
        %2384 = vmatprep.subr.mxu0 0.0
        %2385 = vmatpush1.msra.mxu0 0.0
        %2386 = vmatprep.subr.mxu0 0.0
        %2387 = vmatpush1.msra.mxu0 0.0
        %2388 = vmatprep.subr.mxu0 0.0
        %2389 = vmatpush1.msra.mxu0 0.0
        %2390 = vmatprep.subr.mxu0 0.0
        %2391 = vmatpush1.msra.mxu0 0.0
        %2392 = vmatprep.subr.mxu0 0.0
        %2393 = vmatpush1.msra.mxu0 0.0
        %2394 = vmatprep.subr.mxu0 0.0
        %2395 = vmatpush1.msra.mxu0 0.0
        %2396 = vmatprep.subr.mxu0 0.0
        %2397 = vmatpush1.msra.mxu0 0.0
        %2398 = vmatprep.subr.mxu0 0.0
        %2399 = vmatpush1.msra.mxu0 0.0
        %2400 = vmatprep.subr.mxu0 0.0
        %2401 = vmatpush1.msra.mxu0 0.0
        %2402 = vmatprep.subr.mxu0 0.0
        %2403 = vmatpush1.msra.mxu0 0.0
        %2404 = vmatprep.subr.mxu0 0.0
        %2405 = vmatpush1.msra.mxu0 0.0
        %2406 = vmatprep.subr.mxu0 0.0
        %2407 = vmatpush1.msra.mxu0 0.0
        %2408 = vmatprep.subr.mxu0 0.0
        %2409 = vmatpush1.msra.mxu0 0.0
        %2410 = vmatprep.subr.mxu0 0.0
        %2411 = vmatpush1.msra.mxu0 0.0
        %2412 = vmatprep.subr.mxu0 0.0
        %2413 = vmatpush1.msra.mxu0 0.0
        %2414 = vmatprep.subr.mxu0 0.0
        %2415 = vmatpush1.msra.mxu0 0.0
        %2416 = vmatprep.subr.mxu0 0.0
        %2417 = vmatpush1.msra.mxu0 0.0
        %2418 = vmatprep.subr.mxu0 0.0
        %2419 = vmatpush1.msra.mxu0 0.0
        %2420 = vmatprep.subr.mxu0 0.0
        %2421 = vmatpush1.msra.mxu0 0.0
        %2422 = vmatprep.subr.mxu0 0.0
        %2423 = vmatpush1.msra.mxu0 0.0
        %2424 = vmatprep.subr.mxu0 0.0
        %2425 = vmatpush1.msra.mxu0 0.0
        %2426 = vmatprep.subr.mxu0 0.0
        %2427 = vmatpush1.msra.mxu0 0.0
        %2428 = vmatprep.subr.mxu0 0.0
        %2429 = vmatpush1.msra.mxu0 0.0
        %2430 = vmatprep.subr.mxu0 0.0
        %2431 = vmatpush1.msra.mxu0 0.0
        %2432 = vmatprep.mubr.f32.mxu0 0.0
        %2433 = vmatmul.mubr.f32.gmra.mrb[0].mxu0 %v2363
        %v2434 = vpop.f32.mrb[0].mxu0
        %v2435 = vadd.f32 %v2359, %v2434
        %v2436 = vpop.f32.mrb[0].mxu0
        %2437 = vdwg.mxu0
        %v2438 = vadd.f32 %v2093, %v2435
        %v2439 = vsel %vm1258, %v2438, 0.0
        %2440 = vadd.xlane.f32.xlu0 %v2439
        %v2441 = vpop.xlane.xlu0 %2440
        %v2442 = vmul.f32 %v2441, %v1564
        %v2443 = vsub.f32 %v2438, %v2442
        %v2444 = vmul.f32 %v2443, %v2443
        %v2445 = vsel %vm1258, %v2444, 0.0
        %2446 = vadd.xlane.f32.xlu0 %v2445
        %v2447 = vpop.xlane.xlu0 %2446
        %v2448 = vmul.f32 %v2447, %v1564
        %v2449 = vadd.f32 %v2448, 1e-05
        %v2450 = vrsqrt.pop %v2449
        %v2451 = vmul.f32 %v2443, %v2450
        %v2452 = vld [vmem:[%s18 + $0xe] sm:$0x1]
        %v2453 = vlaneseq
        %v2454 = vshrl.u32 %v2453, 7
        %v2455 = vsub.s32 0, %v2454
        %v2456 = vrot.slane %v2452, %v2455
        %v2457 = vmul.f32 %v2451, %v2456
        %v2458 = vld [vmem:[%s18 + $0xf] sm:$0x1]
        %v2459 = vlaneseq
        %v2460 = vshrl.u32 %v2459, 7
        %v2461 = vsub.s32 0, %v2460
        %v2462 = vrot.slane %v2458, %v2461
        %v2463 = vadd.f32 %v2457, %v2462
        %s2464 = scalar_lea.vmem %s15, 8
        %v2465 = vld [vmem:[%s2464] sm:$0x7f]
        %v2466 = vld [vmem:[%s16 + $0x1] sm:$0x1]
        %v2467 = vlaneseq
        %v2468 = vshrl.u32 %v2467, 7
        %v2469 = vsub.s32 0, %v2468
        %v2470 = vrot.slane %v2466, %v2469
        %v2472 = vsel %vm1298, %v2463, 0
        %v2475 = vsel %vm1302, %v2465, 0
        %2477 = vmatprep.subr.mxu0 0.0
        %2478 = vmatpush1.msra.mxu0 %v2475
        %2479 = vmatprep.subr.mxu0 0.0
        %2480 = vmatpush1.msra.mxu0 0.0
        %2481 = vmatprep.subr.mxu0 0.0
        %2482 = vmatpush1.msra.mxu0 0.0
        %2483 = vmatprep.subr.mxu0 0.0
        %2484 = vmatpush1.msra.mxu0 0.0
        %2485 = vmatprep.subr.mxu0 0.0
        %2486 = vmatpush1.msra.mxu0 0.0
        %2487 = vmatprep.subr.mxu0 0.0
        %2488 = vmatpush1.msra.mxu0 0.0
        %2489 = vmatprep.subr.mxu0 0.0
        %2490 = vmatpush1.msra.mxu0 0.0
        %2491 = vmatprep.subr.mxu0 0.0
        %2492 = vmatpush1.msra.mxu0 0.0
        %2493 = vmatprep.subr.mxu0 0.0
        %2494 = vmatpush1.msra.mxu0 0.0
        %2495 = vmatprep.subr.mxu0 0.0
        %2496 = vmatpush1.msra.mxu0 0.0
        %2497 = vmatprep.subr.mxu0 0.0
        %2498 = vmatpush1.msra.mxu0 0.0
        %2499 = vmatprep.subr.mxu0 0.0
        %2500 = vmatpush1.msra.mxu0 0.0
        %2501 = vmatprep.subr.mxu0 0.0
        %2502 = vmatpush1.msra.mxu0 0.0
        %2503 = vmatprep.subr.mxu0 0.0
        %2504 = vmatpush1.msra.mxu0 0.0
        %2505 = vmatprep.subr.mxu0 0.0
        %2506 = vmatpush1.msra.mxu0 0.0
        %2507 = vmatprep.subr.mxu0 0.0
        %2508 = vmatpush1.msra.mxu0 0.0
        %2509 = vmatprep.subr.mxu0 0.0
        %2510 = vmatpush1.msra.mxu0 0.0
        %2511 = vmatprep.subr.mxu0 0.0
        %2512 = vmatpush1.msra.mxu0 0.0
        %2513 = vmatprep.subr.mxu0 0.0
        %2514 = vmatpush1.msra.mxu0 0.0
        %2515 = vmatprep.subr.mxu0 0.0
        %2516 = vmatpush1.msra.mxu0 0.0
        %2517 = vmatprep.subr.mxu0 0.0
        %2518 = vmatpush1.msra.mxu0 0.0
        %2519 = vmatprep.subr.mxu0 0.0
        %2520 = vmatpush1.msra.mxu0 0.0
        %2521 = vmatprep.subr.mxu0 0.0
        %2522 = vmatpush1.msra.mxu0 0.0
        %2523 = vmatprep.subr.mxu0 0.0
        %2524 = vmatpush1.msra.mxu0 0.0
        %2525 = vmatprep.subr.mxu0 0.0
        %2526 = vmatpush1.msra.mxu0 0.0
        %2527 = vmatprep.subr.mxu0 0.0
        %2528 = vmatpush1.msra.mxu0 0.0
        %2529 = vmatprep.subr.mxu0 0.0
        %2530 = vmatpush1.msra.mxu0 0.0
        %2531 = vmatprep.subr.mxu0 0.0
        %2532 = vmatpush1.msra.mxu0 0.0
        %2533 = vmatprep.subr.mxu0 0.0
        %2534 = vmatpush1.msra.mxu0 0.0
        %2535 = vmatprep.subr.mxu0 0.0
        %2536 = vmatpush1.msra.mxu0 0.0
        %2537 = vmatprep.subr.mxu0 0.0
        %2538 = vmatpush1.msra.mxu0 0.0
        %2539 = vmatprep.subr.mxu0 0.0
        %2540 = vmatpush1.msra.mxu0 0.0
        %2541 = vmatprep.mubr.f32.mxu0 0.0
        %2542 = vmatmul.mubr.f32.gmra.mrb[0].mxu0 %v2472
        %v2543 = vpop.f32.mrb[0].mxu0
        %v2544 = vadd.f32 %v2470, %v2543
        %v2545 = vpop.f32.mrb[0].mxu0
        %2546 = vdwg.mxu0
        %v2547 = vmax.f32 %v2544, 0.0
        %s2548 = scalar_lea.vmem %s17, 16
        %v2549 = vld [vmem:[%s2548] sm:$0xff]
        %v2550 = vld [vmem:[%s2548 + $0x8] sm:$0x3f]
        %v2551 = vld [vmem:[%s18 + $0x5] sm:$0x1]
        %v2552 = vlaneseq
        %v2553 = vshrl.u32 %v2552, 7
        %v2554 = vsub.s32 0, %v2553
        %v2555 = vrot.slane %v2551, %v2554
        %v2557 = vsel %vm1677, %v2547, 0
        %v2560 = vsel %vm1012, %v2550, 0
        %2562 = vmatprep.subr.mxu0 0.0
        %2563 = vmatpush1.msra.mxu0 %v2549
        %2564 = vmatprep.subr.mxu0 0.0
        %2565 = vmatpush1.msra.mxu0 %v2560
        %2566 = vmatprep.subr.mxu0 0.0
        %2567 = vmatpush1.msra.mxu0 0.0
        %2568 = vmatprep.subr.mxu0 0.0
        %2569 = vmatpush1.msra.mxu0 0.0
        %2570 = vmatprep.subr.mxu0 0.0
        %2571 = vmatpush1.msra.mxu0 0.0
        %2572 = vmatprep.subr.mxu0 0.0
        %2573 = vmatpush1.msra.mxu0 0.0
        %2574 = vmatprep.subr.mxu0 0.0
        %2575 = vmatpush1.msra.mxu0 0.0
        %2576 = vmatprep.subr.mxu0 0.0
        %2577 = vmatpush1.msra.mxu0 0.0
        %2578 = vmatprep.subr.mxu0 0.0
        %2579 = vmatpush1.msra.mxu0 0.0
        %2580 = vmatprep.subr.mxu0 0.0
        %2581 = vmatpush1.msra.mxu0 0.0
        %2582 = vmatprep.subr.mxu0 0.0
        %2583 = vmatpush1.msra.mxu0 0.0
        %2584 = vmatprep.subr.mxu0 0.0
        %2585 = vmatpush1.msra.mxu0 0.0
        %2586 = vmatprep.subr.mxu0 0.0
        %2587 = vmatpush1.msra.mxu0 0.0
        %2588 = vmatprep.subr.mxu0 0.0
        %2589 = vmatpush1.msra.mxu0 0.0
        %2590 = vmatprep.subr.mxu0 0.0
        %2591 = vmatpush1.msra.mxu0 0.0
        %2592 = vmatprep.subr.mxu0 0.0
        %2593 = vmatpush1.msra.mxu0 0.0
        %2594 = vmatprep.subr.mxu0 0.0
        %2595 = vmatpush1.msra.mxu0 0.0
        %2596 = vmatprep.subr.mxu0 0.0
        %2597 = vmatpush1.msra.mxu0 0.0
        %2598 = vmatprep.subr.mxu0 0.0
        %2599 = vmatpush1.msra.mxu0 0.0
        %2600 = vmatprep.subr.mxu0 0.0
        %2601 = vmatpush1.msra.mxu0 0.0
        %2602 = vmatprep.subr.mxu0 0.0
        %2603 = vmatpush1.msra.mxu0 0.0
        %2604 = vmatprep.subr.mxu0 0.0
        %2605 = vmatpush1.msra.mxu0 0.0
        %2606 = vmatprep.subr.mxu0 0.0
        %2607 = vmatpush1.msra.mxu0 0.0
        %2608 = vmatprep.subr.mxu0 0.0
        %2609 = vmatpush1.msra.mxu0 0.0
        %2610 = vmatprep.subr.mxu0 0.0
        %2611 = vmatpush1.msra.mxu0 0.0
        %2612 = vmatprep.subr.mxu0 0.0
        %2613 = vmatpush1.msra.mxu0 0.0
        %2614 = vmatprep.subr.mxu0 0.0
        %2615 = vmatpush1.msra.mxu0 0.0
        %2616 = vmatprep.subr.mxu0 0.0
        %2617 = vmatpush1.msra.mxu0 0.0
        %2618 = vmatprep.subr.mxu0 0.0
        %2619 = vmatpush1.msra.mxu0 0.0
        %2620 = vmatprep.subr.mxu0 0.0
        %2621 = vmatpush1.msra.mxu0 0.0
        %2622 = vmatprep.subr.mxu0 0.0
        %2623 = vmatpush1.msra.mxu0 0.0
        %2624 = vmatprep.subr.mxu0 0.0
        %2625 = vmatpush1.msra.mxu0 0.0
        %2626 = vmatprep.mubr.f32.mxu0 0.0
        %2627 = vmatmul.mubr.f32.gmra.mrb[0].mxu0 %v2557
        %v2628 = vpop.f32.mrb[0].mxu0
        %v2629 = vadd.f32 %v2555, %v2628
        %v2630 = vpop.f32.mrb[0].mxu0
        %2631 = vdwg.mxu0
        %v2632 = vadd.f32 %v2463, %v2629
        %v2633 = vsel %vm1258, %v2632, 0.0
        %2634 = vadd.xlane.f32.xlu0 %v2633
        %v2635 = vpop.xlane.xlu0 %2634
        %v2636 = vmul.f32 %v2635, %v1564
        %v2637 = vsub.f32 %v2632, %v2636
        %v2638 = vmul.f32 %v2637, %v2637
        %v2639 = vsel %vm1258, %v2638, 0.0
        %2640 = vadd.xlane.f32.xlu0 %v2639
        %v2641 = vpop.xlane.xlu0 %2640
        %v2642 = vmul.f32 %v2641, %v1564
        %v2643 = vadd.f32 %v2642, 1e-05
        %v2644 = vrsqrt.pop %v2643
        %v2645 = vmul.f32 %v2637, %v2644
        %v2646 = vld [vmem:[%s18 + $0x10] sm:$0x1]
        %v2647 = vlaneseq
        %v2648 = vshrl.u32 %v2647, 7
        %v2649 = vsub.s32 0, %v2648
        %v2650 = vrot.slane %v2646, %v2649
        %v2651 = vmul.f32 %v2645, %v2650
        %v2652 = vld [vmem:[%s18 + $0x11] sm:$0x1]
        %v2653 = vlaneseq
        %v2654 = vshrl.u32 %v2653, 7
        %v2655 = vsub.s32 0, %v2654
        %v2656 = vrot.slane %v2652, %v2655
        %v2657 = vadd.f32 %v2651, %v2656
        %v2658 = vsel %vm1258, %v2657, 0.0
        %2659 = vadd.xlane.f32.xlu0 %v2658
        %v2660 = vpop.xlane.xlu0 %2659
        %v2661 = vmul.f32 %v2660, %v1564
        %v2662 = vsub.f32 %v2657, %v2661
        %v2663 = vmul.f32 %v2662, %v2662
        %v2664 = vsel %vm1258, %v2663, 0.0
        %2665 = vadd.xlane.f32.xlu0 %v2664
        %v2666 = vpop.xlane.xlu0 %2665
        %v2667 = vmul.f32 %v2666, %v1564
        %v2668 = vadd.f32 %v2667, 1e-05
        %v2669 = vrsqrt.pop %v2668
        %v2670 = vmul.f32 %v2662, %v2669
        %v2671 = vld [vmem:[%s18 + $0x12] sm:$0x1]
        %v2672 = vlaneseq
        %v2673 = vshrl.u32 %v2672, 7
        %v2674 = vsub.s32 0, %v2673
        %v2675 = vrot.slane %v2671, %v2674
        %v2676 = vmul.f32 %v2670, %v2675
        %v2677 = vld [vmem:[%s18 + $0x13] sm:$0x1]
        %v2678 = vlaneseq
        %v2679 = vshrl.u32 %v2678, 7
        %v2680 = vsub.s32 0, %v2679
        %v2681 = vrot.slane %v2677, %v2680
        %v2682 = vadd.f32 %v2676, %v2681
        %v2683 = vld [vmem:[%s19] sm:$0x7f]
        %v2684 = vld [vmem:[%s20] sm:$0x1]
        %v2686 = vlaneseq
        %v2687 = vshrl.u32 %v2686, 7
        %v2688 = vsub.s32 0, %v2687
        %v2689 = vrot.slane %v2684, %v2688
        %v2692 = vsel %vm1298, %v2682, 0
        %v2695 = vsel %vm1302, %v2683, 0
        %2697 = vmatprep.subr.mxu0 0.0
        %2698 = vmatpush1.msra.mxu0 %v2695
        %2699 = vmatprep.subr.mxu0 0.0
        %2700 = vmatpush1.msra.mxu0 0.0
        %2701 = vmatprep.subr.mxu0 0.0
        %2702 = vmatpush1.msra.mxu0 0.0
        %2703 = vmatprep.subr.mxu0 0.0
        %2704 = vmatpush1.msra.mxu0 0.0
        %2705 = vmatprep.subr.mxu0 0.0
        %2706 = vmatpush1.msra.mxu0 0.0
        %2707 = vmatprep.subr.mxu0 0.0
        %2708 = vmatpush1.msra.mxu0 0.0
        %2709 = vmatprep.subr.mxu0 0.0
        %2710 = vmatpush1.msra.mxu0 0.0
        %2711 = vmatprep.subr.mxu0 0.0
        %2712 = vmatpush1.msra.mxu0 0.0
        %2713 = vmatprep.subr.mxu0 0.0
        %2714 = vmatpush1.msra.mxu0 0.0
        %2715 = vmatprep.subr.mxu0 0.0
        %2716 = vmatpush1.msra.mxu0 0.0
        %2717 = vmatprep.subr.mxu0 0.0
        %2718 = vmatpush1.msra.mxu0 0.0
        %2719 = vmatprep.subr.mxu0 0.0
        %2720 = vmatpush1.msra.mxu0 0.0
        %2721 = vmatprep.subr.mxu0 0.0
        %2722 = vmatpush1.msra.mxu0 0.0
        %2723 = vmatprep.subr.mxu0 0.0
        %2724 = vmatpush1.msra.mxu0 0.0
        %2725 = vmatprep.subr.mxu0 0.0
        %2726 = vmatpush1.msra.mxu0 0.0
        %2727 = vmatprep.subr.mxu0 0.0
        %2728 = vmatpush1.msra.mxu0 0.0
        %2729 = vmatprep.subr.mxu0 0.0
        %2730 = vmatpush1.msra.mxu0 0.0
        %2731 = vmatprep.subr.mxu0 0.0
        %2732 = vmatpush1.msra.mxu0 0.0
        %2733 = vmatprep.subr.mxu0 0.0
        %2734 = vmatpush1.msra.mxu0 0.0
        %2735 = vmatprep.subr.mxu0 0.0
        %2736 = vmatpush1.msra.mxu0 0.0
        %2737 = vmatprep.subr.mxu0 0.0
        %2738 = vmatpush1.msra.mxu0 0.0
        %2739 = vmatprep.subr.mxu0 0.0
        %2740 = vmatpush1.msra.mxu0 0.0
        %2741 = vmatprep.subr.mxu0 0.0
        %2742 = vmatpush1.msra.mxu0 0.0
        %2743 = vmatprep.subr.mxu0 0.0
        %2744 = vmatpush1.msra.mxu0 0.0
        %2745 = vmatprep.subr.mxu0 0.0
        %2746 = vmatpush1.msra.mxu0 0.0
        %2747 = vmatprep.subr.mxu0 0.0
        %2748 = vmatpush1.msra.mxu0 0.0
        %2749 = vmatprep.subr.mxu0 0.0
        %2750 = vmatpush1.msra.mxu0 0.0
        %2751 = vmatprep.subr.mxu0 0.0
        %2752 = vmatpush1.msra.mxu0 0.0
        %2753 = vmatprep.subr.mxu0 0.0
        %2754 = vmatpush1.msra.mxu0 0.0
        %2755 = vmatprep.subr.mxu0 0.0
        %2756 = vmatpush1.msra.mxu0 0.0
        %2757 = vmatprep.subr.mxu0 0.0
        %2758 = vmatpush1.msra.mxu0 0.0
        %2759 = vmatprep.subr.mxu0 0.0
        %2760 = vmatpush1.msra.mxu0 0.0
        %2761 = vmatprep.mubr.f32.mxu0 0.0
        %2762 = vmatmul.mubr.f32.gmra.mrb[0].mxu0 %v2692
        %v2763 = vpop.f32.mrb[0].mxu0
        %v2764 = vadd.f32 %v2689, %v2763
        %v2765 = vpop.f32.mrb[0].mxu0
        %2766 = vdwg.mxu0
        %vm2767 = vcmask 25600
        %2768 = vst.msk [vmem:[%s647] sm:$0x3] %vm2767, %v2764
        %s2769 = sand.u32 %s489, 1
        %s2770 = scalar_lea.sflag [#allocation3], %s2769
        %s2771 = sand.u32 %s489, 1
        %s2772 = smul.addr %s2771, 2
        %s2773 = scalar_lea.vmem [#allocation2], %s2772
        // Predicated region
        $region105: #{net_classifier2_forward_batched.1} parent=103 // pred_check
          %p2774 = pneg %p499
        $region106: #{net_classifier2_forward_batched.1} parent=103 // pred_check_branch
          %2776 = sbr.rel (%p2774) target = $region108
        $region107: #{net_classifier2_forward_batched.1} parent=103 // pred_region
          %s2778 = ssub.s32 32, 32
          %2779 = vsyncadd %s2770, %s2778
          %s2780 = smul.addr %s35, 32
          %s2781 = scalar_lea.hbm %s21, %s2780
          %s2783 = sshll.u32 %s2773, 4
          %s2784 = int_to_ptr.vmem [resolvable:$true] %s2783
          %2786 = dma.vmem_to_hbm [thread:$0]  %s2784, 32, %s2781, %s2770
        $region108: #{net_classifier2_forward_batched.1} parent=103 // pred_fallthru
          _
      $region104: #{net_classifier2_forward_batched.1} parent=5 // pred_fallthru
        _
      %p2787 = scmp.le.s32.totalorder 2, %s30
      // Predicated region
      $region109: #{net_classifier2_forward_batched.1} parent=5 // pred_check
        %p2788 = pneg %p2787
      $region110: #{net_classifier2_forward_batched.1} parent=5 // pred_check_branch
        %2790 = sbr.rel (%p2788) target = $region112
      $region111: #{net_classifier2_forward_batched.1} parent=5 // pred_region
        %s2791 = ssub.s32 %s30, 2
        // Predicated region
        $region113: #{net_classifier2_forward_batched.1} parent=111 // pred_check
          %p2792 = pneg %p505
        $region114: #{net_classifier2_forward_batched.1} parent=111 // pred_check_branch
          %2794 = sbr.rel (%p2792) target = $region116
        $region115: #{net_classifier2_forward_batched.1} parent=111 // pred_region
          %s2795 = sand.u32 %s490, 1
          %s2796 = scalar_lea.sflag [#allocation3], %s2795
          %s2797 = sand.u32 %s490, 1
          %s2798 = smul.addr %s2797, 2
          %s2799 = scalar_lea.vmem [#allocation2], %s2798
          %2800 = dma.done %s2796, 32
        $region116: #{net_classifier2_forward_batched.1} parent=111 // pred_fallthru
          _
      $region112: #{net_classifier2_forward_batched.1} parent=5 // pred_fallthru
        _
    $region6: #{net_classifier2_forward_batched.1} parent=1 // loop_footer
      %s34 = sadd.s32 1, %s30
    $region7: #{net_classifier2_forward_batched.1} parent=1 // loop_footer_branch
      %29 = sbr.rel target = $region3
    $region8: #{net_classifier2_forward_batched.1} parent=1 // loop_exit
      _
    %2801 = vsyncpa [#allocation3], 1
    %s2802 = scalar_lea.sflag [#allocation3], 1
    %2803 = vsyncpa %s2802, 1

</llo_original>
